<compile_context>
chip_gen: v7x
topology: tpu7x:2x2x1
jax: 0.10.0
libtpu: 0.0.40
codegen_flags: <defaults>
</compile_context>

<pallas_src>
import functools

import jax
import jax.numpy as jnp
from jax.experimental import pallas as pl
from jax.experimental.pallas import tpu as pltpu


# ----------------------------------------------------------------------------
# Fused kernel: one batch-chunk (bs samples fused into lanes) per grid step.
# refs = (x, masks, S, St, vecs, w_1x1,
#         [wkvq_aug, wo, wm1, wm2] * depth, w_proj, out)
# ----------------------------------------------------------------------------
def _fused_kernel(*refs, depth, H, W, bs):
    x_ref, mask_ref, s_ref, st_ref, vec_ref, w1_ref = refs[:6]
    blk_refs = refs[6:6 + 4 * depth]
    wp_ref = refs[6 + 4 * depth]
    o_ref = refs[-1]

    HW = H * W
    N = bs * HW
    eps = 1e-5

    x = x_ref[0].astype(jnp.float32)                     # (Cin, N)
    Cin = x.shape[0]
    Cd = w1_ref.shape[0]
    Cout = o_ref.shape[1]

    def vcol(col, rows):                                 # packed bias/tap column
        return vec_ref[0:rows, col:col + 1]

    # --- depthwise 3x3 (padding=1), BN scale pre-folded into taps, + ReLU ----
    # Tap t enumerates (dy, dx) row-major, matching conv weight[:, 0, ky, kx].
    # Circular lane rolls never leak across samples: every out-of-image
    # neighbour is zeroed by the precomputed mask plane.
    acc = x * vcol(4, Cin)                               # centre tap, mask == 1
    t = 0
    for dy in (-1, 0, 1):
        for dx in (-1, 0, 1):
            off = dy * W + dx
            if off != 0:
                shifted = pltpu.roll(x, (-off) % N, axis=1)
                acc = acc + shifted * mask_ref[t:t + 1, :] * vcol(t, Cin)
            t += 1
    y = jnp.maximum(acc + vcol(9, Cin), 0.0)

    # --- conv_1x1 (no bias): project to transformer dim ----------------------
    xt = jnp.dot(w1_ref[...], y.astype(jnp.bfloat16),
                 preferred_element_type=jnp.float32)     # (Cd, N) f32

    S = s_ref[...]                                       # (N, bs*P)  bf16
    St = st_ref[...]                                     # (bs*P, N)  bf16

    def standardize(z):
        # GroupNorm(num_groups=1): per-sample mean/var over (C, H, W),
        # single-pass statistics (sum & sum-of-squares together).
        nelem = float(z.shape[0] * HW)
        mus, rss = [], []
        for b in range(bs):
            zb = z[:, b * HW:(b + 1) * HW]
            s1 = jnp.sum(zb)
            s2 = jnp.sum(zb * zb)
            mu = s1 / nelem
            var = s2 / nelem - mu * mu
            mus.append(jnp.full((1, HW), mu, jnp.float32))
            rss.append(jnp.full((1, HW), jax.lax.rsqrt(var + eps), jnp.float32))
        mu_l = mus[0] if bs == 1 else jnp.concatenate(mus, axis=1)
        rs_l = rss[0] if bs == 1 else jnp.concatenate(rss, axis=1)
        return (z - mu_l) * rs_l

    # --- LinearTransformerBlocks (statically unrolled over depth) ------------
    for d in range(depth):
        wkvq, wo, wm1, wm2 = blk_refs[4 * d:4 * d + 4]
        hd = wm1.shape[0]
        c0 = 11 + 4 * d
        b_kvq = vcol(c0 + 0, 2 * Cd + 2)
        b_o = vcol(c0 + 1, Cd)
        b_m1 = vcol(c0 + 2, hd)
        b_m2 = vcol(c0 + 3, Cd)

        # Linear self-attention. norm1 affine is pre-folded into wkvq/b_kvq.
        # kvq row layout: [v (Cd); k (Cd); ones (1); q (1)] -> [k*e ; e] is
        # one contiguous slice and the group sums are a single MXU dot with S.
        xn = standardize(xt).astype(jnp.bfloat16)
        kvq = jnp.dot(wkvq[...], xn,
                      preferred_element_type=jnp.float32) + b_kvq
        v = kvq[0:Cd]                                    # (Cd, N)
        kq1 = kvq[Cd:2 * Cd + 1]                         # (Cd+1, N): [k ; ones]
        q = kvq[2 * Cd + 1:2 * Cd + 2]                   # (1, N)

        e = jnp.exp(q - jnp.max(q))        # per-group softmax numerator
        ke_e = kq1 * e                     # [k*e ; e]
        grp = jnp.dot(ke_e.astype(jnp.bfloat16), S,
                      preferred_element_type=jnp.float32)   # (Cd+1, bs*P)
        ctx_g = grp[0:Cd] * pl.reciprocal(grp[Cd:Cd + 1], approx=True)
        ctx = jnp.dot(ctx_g.astype(jnp.bfloat16), St,
                      preferred_element_type=jnp.float32)   # (Cd, N)
        attn = jnp.maximum(v, 0.0) * ctx
        xt = xt + jnp.dot(wo[...], attn.astype(jnp.bfloat16),
                          preferred_element_type=jnp.float32) + b_o

        # ConvMlp: fc1 -> SiLU -> fc2. norm2 affine pre-folded into wm1/b_m1.
        xn2 = standardize(xt).astype(jnp.bfloat16)
        h = jnp.dot(wm1[...], xn2,
                    preferred_element_type=jnp.float32) + b_m1
        h = h * jax.nn.sigmoid(h)
        xt = xt + jnp.dot(wm2[...], h.astype(jnp.bfloat16),
                          preferred_element_type=jnp.float32) + b_m2

    # --- final GroupNorm (affine folded into w_proj) + conv_proj + BN bias ---
    xn = standardize(xt).astype(jnp.bfloat16)
    yo = jnp.dot(wp_ref[...], xn,
                 preferred_element_type=jnp.float32) + vcol(10, Cout)
    o_ref[0] = yo.astype(o_ref.dtype)


# ----------------------------------------------------------------------------
# Host-side parameter preparation: all algebraic folds, packing and constants.
# ----------------------------------------------------------------------------
def prepare_params(params, H, W, patch_size, samples_per_step):
    ph = pw = patch_size
    HW = H * W
    bs = samples_per_step
    N = bs * HW
    P = ph * pw
    cd = params['w_1x1'].shape[0]

    # Depthwise-3x3 validity masks (9, N): 0/1 planes, tiled per fused sample.
    i = jnp.arange(HW, dtype=jnp.int32)
    row, col = i // W, i % W
    mlist = []
    for dy in (-1, 0, 1):
        for dx in (-1, 0, 1):
            mlist.append((row + dy >= 0) & (row + dy < H) &
                         (col + dx >= 0) & (col + dx < W))
    masks = jnp.tile(jnp.stack(mlist).astype(jnp.float32), (1, bs))

    # Block-diagonal patch-position selector S (N, bs*P): column g is the
    # one-hot indicator of "sample b, within-patch position p" (g = b*P + p).
    pid = (row % ph) * pw + (col % pw)
    gid = jnp.concatenate([pid + b * P for b in range(bs)])
    S = (gid[:, None] == jnp.arange(bs * P)[None, :]).astype(jnp.float32)
    St = S.T

    # Fold BN scales into weights; fold GroupNorm affines into the 1x1 convs.
    dw_w = params['dw_w'] * params['dw_scale']                       # (Cin, 9)
    w_proj = (params['proj_scale'] * params['w_proj']) * params['norm_g'].T
    proj_bias = (params['proj_scale'] * (params['w_proj'] @ params['norm_b'])
                 + params['proj_bias'])

    cols = [dw_w[:, t:t + 1] for t in range(9)] + [params['dw_bias'], proj_bias]
    blk_w = []
    for blk in params['blocks']:
        g1, b1 = blk['g1'], blk['b1']
        # Augmented qkv: rows [v; k; ones; q] (ones row: zero weights, bias 1).
        W0 = jnp.concatenate([blk['wv'], blk['wk'],
                              jnp.zeros((1, cd), jnp.float32), blk['wq']], 0)
        b0 = jnp.concatenate([blk['bv'], blk['bk'],
                              jnp.ones((1, 1), jnp.float32), blk['bq']], 0)
        b_kvq = W0 @ b1 + b0                  # fold norm1 beta (ones row stays 1)
        w_kvq = W0 * g1.T                     # fold norm1 gamma (zero row stays 0)
        g2, b2 = blk['g2'], blk['b2']
        b_m1 = blk['wm1'] @ b2 + blk['bm1']   # fold norm2 beta
        w_m1 = blk['wm1'] * g2.T              # fold norm2 gamma
        blk_w += [w_kvq.astype(jnp.bfloat16), blk['wo'].astype(jnp.bfloat16),
                  w_m1.astype(jnp.bfloat16), blk['wm2'].astype(jnp.bfloat16)]
        cols += [b_kvq, blk['bo'], b_m1, blk['bm2']]

    rmax = max(c.shape[0] for c in cols)
    vecs = jnp.concatenate(
        [jnp.pad(c, ((0, rmax - c.shape[0]), (0, 0))) for c in cols], axis=1)

    return dict(masks=masks, S=S.astype(jnp.bfloat16), St=St.astype(jnp.bfloat16),
                vecs=vecs, w_1x1=params['w_1x1'].astype(jnp.bfloat16),
                blk_w=blk_w, w_proj=w_proj.astype(jnp.bfloat16))


def _auto_samples_per_step(B, max_samples=8):
    """Fuse the whole batch into lanes on single-TC chips; keep >= 2 parallel
    grid steps on multi-TC (megacore) chips so both TensorCores get work."""
    try:
        kind = jax.devices()[0].device_kind.lower()
    except Exception:
        kind = ""
    multi_tc = any(s in kind for s in ("v4", "v5p", "7"))
    target = max(1, B // 2) if (multi_tc and B >= 2) else B
    bs = max(1, min(target, max_samples))
    while B % bs:
        bs -= 1
    return max(bs, 1)


# ----------------------------------------------------------------------------
# Wrapper
# ----------------------------------------------------------------------------
def _full_spec(a):
    nd = a.ndim
    return pl.BlockSpec(a.shape, lambda g, _z=(0,) * nd: _z)


def mobilevit_v2_block(x_nchw, prep, patch_size=2):
    B, Cin, H, W = x_nchw.shape
    ph = pw = patch_size
    # TODO(synk): bilinear resize (align_corners=True) when H/W are not
    # multiples of patch_size — not exercised with these shapes.
    assert H % ph == 0 and W % pw == 0
    HW = H * W
    bs = prep['S'].shape[0] // HW
    assert B % bs == 0
    Bg = B // bs
    N = bs * HW
    depth = len(prep['blk_w']) // 4
    Cout = prep['w_proj'].shape[0]

    # Fuse `bs` samples into the lane dimension: (Bg, Cin, bs*HW), lane-dense.
    x = x_nchw.reshape(Bg, bs, Cin, HW).transpose(0, 2, 1, 3).reshape(Bg, Cin, N)

    inputs = [x, prep['masks'], prep['S'], prep['St'], prep['vecs'],
              prep['w_1x1'], *prep['blk_w'], prep['w_proj']]
    in_specs = ([pl.BlockSpec((1, Cin, N), lambda g: (g, 0, 0))]
                + [_full_spec(a) for a in inputs[1:]])

    kernel = functools.partial(_fused_kernel, depth=depth, H=H, W=W, bs=bs)
    y = pl.pallas_call(
        kernel,
        out_shape=jax.ShapeDtypeStruct((Bg, Cout, N), jnp.float32),
        grid=(Bg,),
        in_specs=in_specs,
        out_specs=pl.BlockSpec((1, Cout, N), lambda g: (g, 0, 0)),
        compiler_params=pltpu.CompilerParams(dimension_semantics=("parallel",)),
    )(*inputs)

    y = y.reshape(Bg, Cout, bs, HW).transpose(0, 2, 1, 3).reshape(B, Cout, H, W)
    return y


# ----------------------------------------------------------------------------
# Deterministic synthetic module-style parameters (eval mode; BatchNorms
# folded to per-channel scale/bias).
# ----------------------------------------------------------------------------
def init_params(key, in_chs, cd, out_chs, depth, mlp_ratio=2.0):
    hd = int(cd * mlp_ratio)
    keys = iter(jax.random.split(key, 512))

    def nrm(shape, scale=0.1):
        return scale * jax.random.normal(next(keys), shape, jnp.float32)

    def bn_fold(c):
        gamma = 1.0 + 0.1 * jax.random.normal(next(keys), (c, 1), jnp.float32)
        beta = nrm((c, 1))
        mean = nrm((c, 1))
        var = jax.random.uniform(next(keys), (c, 1), jnp.float32, 0.5, 1.5)
        scale = gamma * jax.lax.rsqrt(var + 1e-5)
        return scale, beta - mean * scale

    dw_scale, dw_bias = bn_fold(in_chs)
    proj_scale, proj_bias = bn_fold(out_chs)
    params = dict(
        dw_w=nrm((in_chs, 9), 0.2),            # depthwise 3x3 taps (conv_kxk)
        dw_scale=dw_scale, dw_bias=dw_bias,
        w_1x1=nrm((cd, in_chs), 0.2),          # conv_1x1 (no bias)
        blocks=[],
        norm_g=1.0 + nrm((cd, 1)), norm_b=nrm((cd, 1)),   # final GroupNorm1
        w_proj=nrm((out_chs, cd), 0.2),        # conv_proj 1x1 (no bias)
        proj_scale=proj_scale, proj_bias=proj_bias,
    )
    for _ in range(depth):
        params['blocks'].append(dict(
            g1=1.0 + nrm((cd, 1)), b1=nrm((cd, 1)),
            wq=nrm((1, cd), 0.2), bq=nrm((1, 1)),          # qkv_proj (split)
            wk=nrm((cd, cd), 0.2), bk=nrm((cd, 1)),
            wv=nrm((cd, cd), 0.2), bv=nrm((cd, 1)),
            wo=nrm((cd, cd), 0.2), bo=nrm((cd, 1)),        # out_proj
            g2=1.0 + nrm((cd, 1)), b2=nrm((cd, 1)),
            wm1=nrm((hd, cd), 0.2), bm1=nrm((hd, 1)),      # ConvMlp fc1
            wm2=nrm((cd, hd), 0.2), bm2=nrm((cd, 1)),      # ConvMlp fc2
        ))
    return params


if __name__ == "__main__":
    key = jax.random.PRNGKey(0)
    kx, kp = jax.random.split(key)

    B, in_chs, H, W = 2, 16, 16, 16
    patch_size = 2
    transformer_dim = 16   # make_divisible(bottle_ratio * in_chs), bottle_ratio=1.0
    out_chs = 16
    depth = 2

    x = jax.random.normal(kx, (B, in_chs, H, W), jnp.float32)
    params = init_params(kp, in_chs, transformer_dim, out_chs, depth,
                         mlp_ratio=2.0)

    bs = _auto_samples_per_step(B)
    prep = prepare_params(params, H, W, patch_size, bs)

    fn = jax.jit(functools.partial(mobilevit_v2_block, patch_size=patch_size))
    y = jax.block_until_ready(fn(x, prep))

    assert y.shape == (B, out_chs, H, W), y.shape
    assert bool(jnp.all(jnp.isfinite(y)))
    print("KERNEL_OK")
</pallas_src>

<mosaic_0001>
module attributes {stable_mosaic.version = 11 : i64} {
  func.func @_fused_kernel(%arg0: i32, %arg1: memref<1x16x512xf32, #tpu.memory_space<vmem>>, %arg2: memref<9x512xf32, #tpu.memory_space<vmem>>, %arg3: memref<512x8xbf16, #tpu.memory_space<vmem>>, %arg4: memref<8x512xbf16, #tpu.memory_space<vmem>>, %arg5: memref<34x19xf32, #tpu.memory_space<vmem>>, %arg6: memref<16x16xbf16, #tpu.memory_space<vmem>>, %arg7: memref<34x16xbf16, #tpu.memory_space<vmem>>, %arg8: memref<16x16xbf16, #tpu.memory_space<vmem>>, %arg9: memref<32x16xbf16, #tpu.memory_space<vmem>>, %arg10: memref<16x32xbf16, #tpu.memory_space<vmem>>, %arg11: memref<34x16xbf16, #tpu.memory_space<vmem>>, %arg12: memref<16x16xbf16, #tpu.memory_space<vmem>>, %arg13: memref<32x16xbf16, #tpu.memory_space<vmem>>, %arg14: memref<16x32xbf16, #tpu.memory_space<vmem>>, %arg15: memref<16x16xbf16, #tpu.memory_space<vmem>>, %arg16: memref<1x16x512xf32, #tpu.memory_space<vmem>>) attributes {dimension_semantics = [#tpu.dimension_semantics<parallel>], iteration_bounds = array<i64: 1>, scalar_prefetch = 0 : i64, scratch_operands = 0 : i64, tpu.core_type = #tpu.core_type<tc>, window_params = [{transform_indices = @transform_0, window_bounds = array<i64: 1, 16, 512>}, {pipeline_mode = #tpu.pipeline_mode<synchronous>, transform_indices = @transform_1, window_bounds = array<i64: 9, 512>}, {pipeline_mode = #tpu.pipeline_mode<synchronous>, transform_indices = @transform_2, window_bounds = array<i64: 512, 8>}, {pipeline_mode = #tpu.pipeline_mode<synchronous>, transform_indices = @transform_3, window_bounds = array<i64: 8, 512>}, {pipeline_mode = #tpu.pipeline_mode<synchronous>, transform_indices = @transform_4, window_bounds = array<i64: 34, 19>}, {pipeline_mode = #tpu.pipeline_mode<synchronous>, transform_indices = @transform_5, window_bounds = array<i64: 16, 16>}, {pipeline_mode = #tpu.pipeline_mode<synchronous>, transform_indices = @transform_6, window_bounds = array<i64: 34, 16>}, {pipeline_mode = #tpu.pipeline_mode<synchronous>, transform_indices = @transform_7, window_bounds = array<i64: 16, 16>}, {pipeline_mode = #tpu.pipeline_mode<synchronous>, transform_indices = @transform_8, window_bounds = array<i64: 32, 16>}, {pipeline_mode = #tpu.pipeline_mode<synchronous>, transform_indices = @transform_9, window_bounds = array<i64: 16, 32>}, {pipeline_mode = #tpu.pipeline_mode<synchronous>, transform_indices = @transform_10, window_bounds = array<i64: 34, 16>}, {pipeline_mode = #tpu.pipeline_mode<synchronous>, transform_indices = @transform_11, window_bounds = array<i64: 16, 16>}, {pipeline_mode = #tpu.pipeline_mode<synchronous>, transform_indices = @transform_12, window_bounds = array<i64: 32, 16>}, {pipeline_mode = #tpu.pipeline_mode<synchronous>, transform_indices = @transform_13, window_bounds = array<i64: 16, 32>}, {pipeline_mode = #tpu.pipeline_mode<synchronous>, transform_indices = @transform_14, window_bounds = array<i64: 16, 16>}, {transform_indices = @transform_15, window_bounds = array<i64: 1, 16, 512>}]} {
    %c0 = arith.constant 0 : index
    %c0_0 = arith.constant 0 : index
    %c0_1 = arith.constant 0 : index
    %0 = vector.load %arg1[%c0, %c0_0, %c0_1] : memref<1x16x512xf32, #tpu.memory_space<vmem>>, vector<1x16x512xf32>
    %1 = vector.shape_cast %0 : vector<1x16x512xf32> to vector<16x512xf32>
    %c0_2 = arith.constant 0 : index
    %c4 = arith.constant 4 : index
    %2 = vector.load %arg5[%c0_2, %c4] : memref<34x19xf32, #tpu.memory_space<vmem>>, vector<16x1xf32>
    %3 = vector.broadcast %2 : vector<16x1xf32> to vector<16x512xf32>
    %4 = arith.mulf %1, %3 : vector<16x512xf32>
    %c17_i32 = arith.constant 17 : i32
    %5 = tpu.dynamic_rotate %1 by %c17_i32 dim 1 : vector<16x512xf32>, i32 -> vector<16x512xf32>
    %c0_3 = arith.constant 0 : index
    %c0_4 = arith.constant 0 : index
    %6 = vector.load %arg2[%c0_3, %c0_4] : memref<9x512xf32, #tpu.memory_space<vmem>>, vector<1x512xf32>
    %7 = vector.broadcast %6 : vector<1x512xf32> to vector<16x512xf32>
    %8 = arith.mulf %5, %7 : vector<16x512xf32>
    %c0_5 = arith.constant 0 : index
    %c0_6 = arith.constant 0 : index
    %9 = vector.load %arg5[%c0_5, %c0_6] : memref<34x19xf32, #tpu.memory_space<vmem>>, vector<16x1xf32>
    %10 = vector.broadcast %9 : vector<16x1xf32> to vector<16x512xf32>
    %11 = arith.mulf %8, %10 : vector<16x512xf32>
    %12 = arith.addf %4, %11 : vector<16x512xf32>
    %c16_i32 = arith.constant 16 : i32
    %13 = tpu.dynamic_rotate %1 by %c16_i32 dim 1 : vector<16x512xf32>, i32 -> vector<16x512xf32>
    %c1 = arith.constant 1 : index
    %c0_7 = arith.constant 0 : index
    %14 = vector.load %arg2[%c1, %c0_7] : memref<9x512xf32, #tpu.memory_space<vmem>>, vector<1x512xf32>
    %15 = vector.broadcast %14 : vector<1x512xf32> to vector<16x512xf32>
    %16 = arith.mulf %13, %15 : vector<16x512xf32>
    %c0_8 = arith.constant 0 : index
    %c1_9 = arith.constant 1 : index
    %17 = vector.load %arg5[%c0_8, %c1_9] : memref<34x19xf32, #tpu.memory_space<vmem>>, vector<16x1xf32>
    %18 = vector.broadcast %17 : vector<16x1xf32> to vector<16x512xf32>
    %19 = arith.mulf %16, %18 : vector<16x512xf32>
    %20 = arith.addf %12, %19 : vector<16x512xf32>
    %c15_i32 = arith.constant 15 : i32
    %21 = tpu.dynamic_rotate %1 by %c15_i32 dim 1 : vector<16x512xf32>, i32 -> vector<16x512xf32>
    %c2 = arith.constant 2 : index
    %c0_10 = arith.constant 0 : index
    %22 = vector.load %arg2[%c2, %c0_10] : memref<9x512xf32, #tpu.memory_space<vmem>>, vector<1x512xf32>
    %23 = vector.broadcast %22 : vector<1x512xf32> to vector<16x512xf32>
    %24 = arith.mulf %21, %23 : vector<16x512xf32>
    %c0_11 = arith.constant 0 : index
    %c2_12 = arith.constant 2 : index
    %25 = vector.load %arg5[%c0_11, %c2_12] : memref<34x19xf32, #tpu.memory_space<vmem>>, vector<16x1xf32>
    %26 = vector.broadcast %25 : vector<16x1xf32> to vector<16x512xf32>
    %27 = arith.mulf %24, %26 : vector<16x512xf32>
    %28 = arith.addf %20, %27 : vector<16x512xf32>
    %c1_i32 = arith.constant 1 : i32
    %29 = tpu.dynamic_rotate %1 by %c1_i32 dim 1 : vector<16x512xf32>, i32 -> vector<16x512xf32>
    %c3 = arith.constant 3 : index
    %c0_13 = arith.constant 0 : index
    %30 = vector.load %arg2[%c3, %c0_13] : memref<9x512xf32, #tpu.memory_space<vmem>>, vector<1x512xf32>
    %31 = vector.broadcast %30 : vector<1x512xf32> to vector<16x512xf32>
    %32 = arith.mulf %29, %31 : vector<16x512xf32>
    %c0_14 = arith.constant 0 : index
    %c3_15 = arith.constant 3 : index
    %33 = vector.load %arg5[%c0_14, %c3_15] : memref<34x19xf32, #tpu.memory_space<vmem>>, vector<16x1xf32>
    %34 = vector.broadcast %33 : vector<16x1xf32> to vector<16x512xf32>
    %35 = arith.mulf %32, %34 : vector<16x512xf32>
    %36 = arith.addf %28, %35 : vector<16x512xf32>
    %c511_i32 = arith.constant 511 : i32
    %37 = tpu.dynamic_rotate %1 by %c511_i32 dim 1 : vector<16x512xf32>, i32 -> vector<16x512xf32>
    %c5 = arith.constant 5 : index
    %c0_16 = arith.constant 0 : index
    %38 = vector.load %arg2[%c5, %c0_16] : memref<9x512xf32, #tpu.memory_space<vmem>>, vector<1x512xf32>
    %39 = vector.broadcast %38 : vector<1x512xf32> to vector<16x512xf32>
    %40 = arith.mulf %37, %39 : vector<16x512xf32>
    %c0_17 = arith.constant 0 : index
    %c5_18 = arith.constant 5 : index
    %41 = vector.load %arg5[%c0_17, %c5_18] : memref<34x19xf32, #tpu.memory_space<vmem>>, vector<16x1xf32>
    %42 = vector.broadcast %41 : vector<16x1xf32> to vector<16x512xf32>
    %43 = arith.mulf %40, %42 : vector<16x512xf32>
    %44 = arith.addf %36, %43 : vector<16x512xf32>
    %c497_i32 = arith.constant 497 : i32
    %45 = tpu.dynamic_rotate %1 by %c497_i32 dim 1 : vector<16x512xf32>, i32 -> vector<16x512xf32>
    %c6 = arith.constant 6 : index
    %c0_19 = arith.constant 0 : index
    %46 = vector.load %arg2[%c6, %c0_19] : memref<9x512xf32, #tpu.memory_space<vmem>>, vector<1x512xf32>
    %47 = vector.broadcast %46 : vector<1x512xf32> to vector<16x512xf32>
    %48 = arith.mulf %45, %47 : vector<16x512xf32>
    %c0_20 = arith.constant 0 : index
    %c6_21 = arith.constant 6 : index
    %49 = vector.load %arg5[%c0_20, %c6_21] : memref<34x19xf32, #tpu.memory_space<vmem>>, vector<16x1xf32>
    %50 = vector.broadcast %49 : vector<16x1xf32> to vector<16x512xf32>
    %51 = arith.mulf %48, %50 : vector<16x512xf32>
    %52 = arith.addf %44, %51 : vector<16x512xf32>
    %c496_i32 = arith.constant 496 : i32
    %53 = tpu.dynamic_rotate %1 by %c496_i32 dim 1 : vector<16x512xf32>, i32 -> vector<16x512xf32>
    %c7 = arith.constant 7 : index
    %c0_22 = arith.constant 0 : index
    %54 = vector.load %arg2[%c7, %c0_22] : memref<9x512xf32, #tpu.memory_space<vmem>>, vector<1x512xf32>
    %55 = vector.broadcast %54 : vector<1x512xf32> to vector<16x512xf32>
    %56 = arith.mulf %53, %55 : vector<16x512xf32>
    %c0_23 = arith.constant 0 : index
    %c7_24 = arith.constant 7 : index
    %57 = vector.load %arg5[%c0_23, %c7_24] : memref<34x19xf32, #tpu.memory_space<vmem>>, vector<16x1xf32>
    %58 = vector.broadcast %57 : vector<16x1xf32> to vector<16x512xf32>
    %59 = arith.mulf %56, %58 : vector<16x512xf32>
    %60 = arith.addf %52, %59 : vector<16x512xf32>
    %c495_i32 = arith.constant 495 : i32
    %61 = tpu.dynamic_rotate %1 by %c495_i32 dim 1 : vector<16x512xf32>, i32 -> vector<16x512xf32>
    %c8 = arith.constant 8 : index
    %c0_25 = arith.constant 0 : index
    %62 = vector.load %arg2[%c8, %c0_25] : memref<9x512xf32, #tpu.memory_space<vmem>>, vector<1x512xf32>
    %63 = vector.broadcast %62 : vector<1x512xf32> to vector<16x512xf32>
    %64 = arith.mulf %61, %63 : vector<16x512xf32>
    %c0_26 = arith.constant 0 : index
    %c8_27 = arith.constant 8 : index
    %65 = vector.load %arg5[%c0_26, %c8_27] : memref<34x19xf32, #tpu.memory_space<vmem>>, vector<16x1xf32>
    %66 = vector.broadcast %65 : vector<16x1xf32> to vector<16x512xf32>
    %67 = arith.mulf %64, %66 : vector<16x512xf32>
    %68 = arith.addf %60, %67 : vector<16x512xf32>
    %c0_28 = arith.constant 0 : index
    %c9 = arith.constant 9 : index
    %69 = vector.load %arg5[%c0_28, %c9] : memref<34x19xf32, #tpu.memory_space<vmem>>, vector<16x1xf32>
    %70 = vector.broadcast %69 : vector<16x1xf32> to vector<16x512xf32>
    %71 = arith.addf %68, %70 : vector<16x512xf32>
    %cst = arith.constant 0.000000e+00 : f32
    %72 = vector.broadcast %cst : f32 to vector<16x512xf32>
    %73 = arith.maximumf %71, %72 : vector<16x512xf32>
    %c0_29 = arith.constant 0 : index
    %c0_30 = arith.constant 0 : index
    %74 = vector.load %arg6[%c0_29, %c0_30] : memref<16x16xbf16, #tpu.memory_space<vmem>>, vector<16x16xbf16>
    %75 = arith.truncf %73 : vector<16x512xf32> to vector<16x512xbf16>
    %cst_31 = arith.constant dense<0.000000e+00> : vector<16x512xf32>
    %76 = tpu.matmul %74, %75, %cst_31 {dimension_numbers = #tpu.dot_dimension_numbers<[1], [0], [0], [1], [0, 0, 1, 1], [], []>} : vector<16x16xbf16>, vector<16x512xbf16>, vector<16x512xf32> -> vector<16x512xf32>
    %c0_32 = arith.constant 0 : index
    %c0_33 = arith.constant 0 : index
    %77 = vector.load %arg3[%c0_32, %c0_33] : memref<512x8xbf16, #tpu.memory_space<vmem>>, vector<512x8xbf16>
    %c0_34 = arith.constant 0 : index
    %c0_35 = arith.constant 0 : index
    %78 = vector.load %arg4[%c0_34, %c0_35] : memref<8x512xbf16, #tpu.memory_space<vmem>>, vector<8x512xbf16>
    %c0_36 = arith.constant 0 : index
    %c11 = arith.constant 11 : index
    %79 = vector.load %arg5[%c0_36, %c11] : memref<34x19xf32, #tpu.memory_space<vmem>>, vector<34x1xf32>
    %c0_37 = arith.constant 0 : index
    %c12 = arith.constant 12 : index
    %80 = vector.load %arg5[%c0_37, %c12] : memref<34x19xf32, #tpu.memory_space<vmem>>, vector<16x1xf32>
    %c0_38 = arith.constant 0 : index
    %c13 = arith.constant 13 : index
    %81 = vector.load %arg5[%c0_38, %c13] : memref<34x19xf32, #tpu.memory_space<vmem>>, vector<32x1xf32>
    %c0_39 = arith.constant 0 : index
    %c14 = arith.constant 14 : index
    %82 = vector.load %arg5[%c0_39, %c14] : memref<34x19xf32, #tpu.memory_space<vmem>>, vector<16x1xf32>
    %83 = vector.extract_strided_slice %76 {offsets = [0, 0], sizes = [16, 256], strides = [1, 1]} : vector<16x512xf32> to vector<16x256xf32>
    %84 = vector.shape_cast %83 : vector<16x256xf32> to vector<1x16x256xf32>
    %cst_40 = arith.constant dense<0.000000e+00> : vector<1xf32>
    %85 = vector.multi_reduction <add>, %84, %cst_40 [1, 2] : vector<1x16x256xf32> to vector<1xf32>
    %86 = vector.shape_cast %85 : vector<1xf32> to vector<1x1x1xf32>
    %87 = vector.extract %86[0, 0, 0] : f32 from vector<1x1x1xf32>
    %88 = arith.mulf %83, %83 : vector<16x256xf32>
    %89 = vector.shape_cast %88 : vector<16x256xf32> to vector<1x16x256xf32>
    %cst_41 = arith.constant dense<0.000000e+00> : vector<1xf32>
    %90 = vector.multi_reduction <add>, %89, %cst_41 [1, 2] : vector<1x16x256xf32> to vector<1xf32>
    %91 = vector.shape_cast %90 : vector<1xf32> to vector<1x1x1xf32>
    %92 = vector.extract %91[0, 0, 0] : f32 from vector<1x1x1xf32>
    %cst_42 = arith.constant 4.096000e+03 : f32
    %93 = arith.divf %87, %cst_42 : f32
    %cst_43 = arith.constant 4.096000e+03 : f32
    %94 = arith.divf %92, %cst_43 : f32
    %95 = arith.mulf %93, %93 : f32
    %96 = arith.subf %94, %95 : f32
    %97 = vector.broadcast %93 : f32 to vector<1x256xf32>
    %cst_44 = arith.constant 9.99999974E-6 : f32
    %98 = arith.addf %96, %cst_44 : f32
    %99 = math.rsqrt %98 : f32
    %100 = vector.broadcast %99 : f32 to vector<1x256xf32>
    %101 = vector.extract_strided_slice %76 {offsets = [0, 256], sizes = [16, 256], strides = [1, 1]} : vector<16x512xf32> to vector<16x256xf32>
    %102 = vector.shape_cast %101 : vector<16x256xf32> to vector<1x16x256xf32>
    %cst_45 = arith.constant dense<0.000000e+00> : vector<1xf32>
    %103 = vector.multi_reduction <add>, %102, %cst_45 [1, 2] : vector<1x16x256xf32> to vector<1xf32>
    %104 = vector.shape_cast %103 : vector<1xf32> to vector<1x1x1xf32>
    %105 = vector.extract %104[0, 0, 0] : f32 from vector<1x1x1xf32>
    %106 = arith.mulf %101, %101 : vector<16x256xf32>
    %107 = vector.shape_cast %106 : vector<16x256xf32> to vector<1x16x256xf32>
    %cst_46 = arith.constant dense<0.000000e+00> : vector<1xf32>
    %108 = vector.multi_reduction <add>, %107, %cst_46 [1, 2] : vector<1x16x256xf32> to vector<1xf32>
    %109 = vector.shape_cast %108 : vector<1xf32> to vector<1x1x1xf32>
    %110 = vector.extract %109[0, 0, 0] : f32 from vector<1x1x1xf32>
    %cst_47 = arith.constant 4.096000e+03 : f32
    %111 = arith.divf %105, %cst_47 : f32
    %cst_48 = arith.constant 4.096000e+03 : f32
    %112 = arith.divf %110, %cst_48 : f32
    %113 = arith.mulf %111, %111 : f32
    %114 = arith.subf %112, %113 : f32
    %115 = vector.broadcast %111 : f32 to vector<1x256xf32>
    %cst_49 = arith.constant 9.99999974E-6 : f32
    %116 = arith.addf %114, %cst_49 : f32
    %117 = math.rsqrt %116 : f32
    %118 = vector.broadcast %117 : f32 to vector<1x256xf32>
    %119 = tpu.concatenate %97, %115 in 1 : vector<1x256xf32>, vector<1x256xf32> -> vector<1x512xf32>
    %120 = tpu.concatenate %100, %118 in 1 : vector<1x256xf32>, vector<1x256xf32> -> vector<1x512xf32>
    %121 = vector.broadcast %119 : vector<1x512xf32> to vector<16x512xf32>
    %122 = arith.subf %76, %121 : vector<16x512xf32>
    %123 = vector.broadcast %120 : vector<1x512xf32> to vector<16x512xf32>
    %124 = arith.mulf %122, %123 : vector<16x512xf32>
    %125 = arith.truncf %124 : vector<16x512xf32> to vector<16x512xbf16>
    %c0_50 = arith.constant 0 : index
    %c0_51 = arith.constant 0 : index
    %126 = vector.load %arg7[%c0_50, %c0_51] : memref<34x16xbf16, #tpu.memory_space<vmem>>, vector<34x16xbf16>
    %cst_52 = arith.constant dense<0.000000e+00> : vector<34x512xf32>
    %127 = tpu.matmul %126, %125, %cst_52 {dimension_numbers = #tpu.dot_dimension_numbers<[1], [0], [0], [1], [0, 0, 1, 1], [], []>} : vector<34x16xbf16>, vector<16x512xbf16>, vector<34x512xf32> -> vector<34x512xf32>
    %128 = vector.broadcast %79 : vector<34x1xf32> to vector<34x512xf32>
    %129 = arith.addf %127, %128 : vector<34x512xf32>
    %130 = vector.extract_strided_slice %129 {offsets = [0, 0], sizes = [16, 512], strides = [1, 1]} : vector<34x512xf32> to vector<16x512xf32>
    %131 = vector.extract_strided_slice %129 {offsets = [16, 0], sizes = [17, 512], strides = [1, 1]} : vector<34x512xf32> to vector<17x512xf32>
    %132 = vector.extract_strided_slice %129 {offsets = [33, 0], sizes = [1, 512], strides = [1, 1]} : vector<34x512xf32> to vector<1x512xf32>
    %133 = vector.shape_cast %132 : vector<1x512xf32> to vector<1x1x512xf32>
    %cst_53 = arith.constant dense<0xFF800000> : vector<1xf32>
    %134 = vector.multi_reduction <maximumf>, %133, %cst_53 [1, 2] : vector<1x1x512xf32> to vector<1xf32>
    %135 = vector.shape_cast %134 : vector<1xf32> to vector<1x1x1xf32>
    %136 = vector.extract %135[0, 0, 0] : f32 from vector<1x1x1xf32>
    %137 = vector.broadcast %136 : f32 to vector<1x512xf32>
    %138 = arith.subf %132, %137 : vector<1x512xf32>
    %139 = math.exp %138 : vector<1x512xf32>
    %140 = vector.broadcast %139 : vector<1x512xf32> to vector<17x512xf32>
    %141 = arith.mulf %131, %140 : vector<17x512xf32>
    %142 = arith.truncf %141 : vector<17x512xf32> to vector<17x512xbf16>
    %cst_54 = arith.constant dense<0.000000e+00> : vector<17x8xf32>
    %143 = tpu.matmul %142, %77, %cst_54 {dimension_numbers = #tpu.dot_dimension_numbers<[1], [0], [0], [1], [0, 0, 1, 1], [], []>} : vector<17x512xbf16>, vector<512x8xbf16>, vector<17x8xf32> -> vector<17x8xf32>
    %144 = vector.extract_strided_slice %143 {offsets = [0, 0], sizes = [16, 8], strides = [1, 1]} : vector<17x8xf32> to vector<16x8xf32>
    %145 = vector.extract_strided_slice %143 {offsets = [16, 0], sizes = [1, 8], strides = [1, 1]} : vector<17x8xf32> to vector<1x8xf32>
    %146 = tpu.reciprocal %145 {approx = true} : vector<1x8xf32> -> vector<1x8xf32>
    %147 = vector.broadcast %146 : vector<1x8xf32> to vector<16x8xf32>
    %148 = arith.mulf %144, %147 : vector<16x8xf32>
    %149 = arith.truncf %148 : vector<16x8xf32> to vector<16x8xbf16>
    %cst_55 = arith.constant dense<0.000000e+00> : vector<16x512xf32>
    %150 = tpu.matmul %149, %78, %cst_55 {dimension_numbers = #tpu.dot_dimension_numbers<[1], [0], [0], [1], [0, 0, 1, 1], [], []>} : vector<16x8xbf16>, vector<8x512xbf16>, vector<16x512xf32> -> vector<16x512xf32>
    %cst_56 = arith.constant 0.000000e+00 : f32
    %151 = vector.broadcast %cst_56 : f32 to vector<16x512xf32>
    %152 = arith.maximumf %130, %151 : vector<16x512xf32>
    %153 = arith.mulf %152, %150 : vector<16x512xf32>
    %c0_57 = arith.constant 0 : index
    %c0_58 = arith.constant 0 : index
    %154 = vector.load %arg8[%c0_57, %c0_58] : memref<16x16xbf16, #tpu.memory_space<vmem>>, vector<16x16xbf16>
    %155 = arith.truncf %153 : vector<16x512xf32> to vector<16x512xbf16>
    %cst_59 = arith.constant dense<0.000000e+00> : vector<16x512xf32>
    %156 = tpu.matmul %154, %155, %cst_59 {dimension_numbers = #tpu.dot_dimension_numbers<[1], [0], [0], [1], [0, 0, 1, 1], [], []>} : vector<16x16xbf16>, vector<16x512xbf16>, vector<16x512xf32> -> vector<16x512xf32>
    %157 = arith.addf %76, %156 : vector<16x512xf32>
    %158 = vector.broadcast %80 : vector<16x1xf32> to vector<16x512xf32>
    %159 = arith.addf %157, %158 : vector<16x512xf32>
    %160 = vector.extract_strided_slice %159 {offsets = [0, 0], sizes = [16, 256], strides = [1, 1]} : vector<16x512xf32> to vector<16x256xf32>
    %161 = vector.shape_cast %160 : vector<16x256xf32> to vector<1x16x256xf32>
    %cst_60 = arith.constant dense<0.000000e+00> : vector<1xf32>
    %162 = vector.multi_reduction <add>, %161, %cst_60 [1, 2] : vector<1x16x256xf32> to vector<1xf32>
    %163 = vector.shape_cast %162 : vector<1xf32> to vector<1x1x1xf32>
    %164 = vector.extract %163[0, 0, 0] : f32 from vector<1x1x1xf32>
    %165 = arith.mulf %160, %160 : vector<16x256xf32>
    %166 = vector.shape_cast %165 : vector<16x256xf32> to vector<1x16x256xf32>
    %cst_61 = arith.constant dense<0.000000e+00> : vector<1xf32>
    %167 = vector.multi_reduction <add>, %166, %cst_61 [1, 2] : vector<1x16x256xf32> to vector<1xf32>
    %168 = vector.shape_cast %167 : vector<1xf32> to vector<1x1x1xf32>
    %169 = vector.extract %168[0, 0, 0] : f32 from vector<1x1x1xf32>
    %cst_62 = arith.constant 4.096000e+03 : f32
    %170 = arith.divf %164, %cst_62 : f32
    %cst_63 = arith.constant 4.096000e+03 : f32
    %171 = arith.divf %169, %cst_63 : f32
    %172 = arith.mulf %170, %170 : f32
    %173 = arith.subf %171, %172 : f32
    %174 = vector.broadcast %170 : f32 to vector<1x256xf32>
    %cst_64 = arith.constant 9.99999974E-6 : f32
    %175 = arith.addf %173, %cst_64 : f32
    %176 = math.rsqrt %175 : f32
    %177 = vector.broadcast %176 : f32 to vector<1x256xf32>
    %178 = vector.extract_strided_slice %159 {offsets = [0, 256], sizes = [16, 256], strides = [1, 1]} : vector<16x512xf32> to vector<16x256xf32>
    %179 = vector.shape_cast %178 : vector<16x256xf32> to vector<1x16x256xf32>
    %cst_65 = arith.constant dense<0.000000e+00> : vector<1xf32>
    %180 = vector.multi_reduction <add>, %179, %cst_65 [1, 2] : vector<1x16x256xf32> to vector<1xf32>
    %181 = vector.shape_cast %180 : vector<1xf32> to vector<1x1x1xf32>
    %182 = vector.extract %181[0, 0, 0] : f32 from vector<1x1x1xf32>
    %183 = arith.mulf %178, %178 : vector<16x256xf32>
    %184 = vector.shape_cast %183 : vector<16x256xf32> to vector<1x16x256xf32>
    %cst_66 = arith.constant dense<0.000000e+00> : vector<1xf32>
    %185 = vector.multi_reduction <add>, %184, %cst_66 [1, 2] : vector<1x16x256xf32> to vector<1xf32>
    %186 = vector.shape_cast %185 : vector<1xf32> to vector<1x1x1xf32>
    %187 = vector.extract %186[0, 0, 0] : f32 from vector<1x1x1xf32>
    %cst_67 = arith.constant 4.096000e+03 : f32
    %188 = arith.divf %182, %cst_67 : f32
    %cst_68 = arith.constant 4.096000e+03 : f32
    %189 = arith.divf %187, %cst_68 : f32
    %190 = arith.mulf %188, %188 : f32
    %191 = arith.subf %189, %190 : f32
    %192 = vector.broadcast %188 : f32 to vector<1x256xf32>
    %cst_69 = arith.constant 9.99999974E-6 : f32
    %193 = arith.addf %191, %cst_69 : f32
    %194 = math.rsqrt %193 : f32
    %195 = vector.broadcast %194 : f32 to vector<1x256xf32>
    %196 = tpu.concatenate %174, %192 in 1 : vector<1x256xf32>, vector<1x256xf32> -> vector<1x512xf32>
    %197 = tpu.concatenate %177, %195 in 1 : vector<1x256xf32>, vector<1x256xf32> -> vector<1x512xf32>
    %198 = vector.broadcast %196 : vector<1x512xf32> to vector<16x512xf32>
    %199 = arith.subf %159, %198 : vector<16x512xf32>
    %200 = vector.broadcast %197 : vector<1x512xf32> to vector<16x512xf32>
    %201 = arith.mulf %199, %200 : vector<16x512xf32>
    %202 = arith.truncf %201 : vector<16x512xf32> to vector<16x512xbf16>
    %c0_70 = arith.constant 0 : index
    %c0_71 = arith.constant 0 : index
    %203 = vector.load %arg9[%c0_70, %c0_71] : memref<32x16xbf16, #tpu.memory_space<vmem>>, vector<32x16xbf16>
    %cst_72 = arith.constant dense<0.000000e+00> : vector<32x512xf32>
    %204 = tpu.matmul %203, %202, %cst_72 {dimension_numbers = #tpu.dot_dimension_numbers<[1], [0], [0], [1], [0, 0, 1, 1], [], []>} : vector<32x16xbf16>, vector<16x512xbf16>, vector<32x512xf32> -> vector<32x512xf32>
    %205 = vector.broadcast %81 : vector<32x1xf32> to vector<32x512xf32>
    %206 = arith.addf %204, %205 : vector<32x512xf32>
    %207 = arith.negf %206 : vector<32x512xf32>
    %208 = math.exp %207 : vector<32x512xf32>
    %cst_73 = arith.constant 1.000000e+00 : f32
    %209 = vector.broadcast %cst_73 : f32 to vector<32x512xf32>
    %210 = arith.addf %209, %208 : vector<32x512xf32>
    %211 = arith.divf %209, %210 : vector<32x512xf32>
    %212 = arith.mulf %206, %211 : vector<32x512xf32>
    %c0_74 = arith.constant 0 : index
    %c0_75 = arith.constant 0 : index
    %213 = vector.load %arg10[%c0_74, %c0_75] : memref<16x32xbf16, #tpu.memory_space<vmem>>, vector<16x32xbf16>
    %214 = arith.truncf %212 : vector<32x512xf32> to vector<32x512xbf16>
    %cst_76 = arith.constant dense<0.000000e+00> : vector<16x512xf32>
    %215 = tpu.matmul %213, %214, %cst_76 {dimension_numbers = #tpu.dot_dimension_numbers<[1], [0], [0], [1], [0, 0, 1, 1], [], []>} : vector<16x32xbf16>, vector<32x512xbf16>, vector<16x512xf32> -> vector<16x512xf32>
    %216 = arith.addf %159, %215 : vector<16x512xf32>
    %217 = vector.broadcast %82 : vector<16x1xf32> to vector<16x512xf32>
    %218 = arith.addf %216, %217 : vector<16x512xf32>
    %c0_77 = arith.constant 0 : index
    %c15 = arith.constant 15 : index
    %219 = vector.load %arg5[%c0_77, %c15] : memref<34x19xf32, #tpu.memory_space<vmem>>, vector<34x1xf32>
    %c0_78 = arith.constant 0 : index
    %c16 = arith.constant 16 : index
    %220 = vector.load %arg5[%c0_78, %c16] : memref<34x19xf32, #tpu.memory_space<vmem>>, vector<16x1xf32>
    %c0_79 = arith.constant 0 : index
    %c17 = arith.constant 17 : index
    %221 = vector.load %arg5[%c0_79, %c17] : memref<34x19xf32, #tpu.memory_space<vmem>>, vector<32x1xf32>
    %c0_80 = arith.constant 0 : index
    %c18 = arith.constant 18 : index
    %222 = vector.load %arg5[%c0_80, %c18] : memref<34x19xf32, #tpu.memory_space<vmem>>, vector<16x1xf32>
    %223 = vector.extract_strided_slice %218 {offsets = [0, 0], sizes = [16, 256], strides = [1, 1]} : vector<16x512xf32> to vector<16x256xf32>
    %224 = vector.shape_cast %223 : vector<16x256xf32> to vector<1x16x256xf32>
    %cst_81 = arith.constant dense<0.000000e+00> : vector<1xf32>
    %225 = vector.multi_reduction <add>, %224, %cst_81 [1, 2] : vector<1x16x256xf32> to vector<1xf32>
    %226 = vector.shape_cast %225 : vector<1xf32> to vector<1x1x1xf32>
    %227 = vector.extract %226[0, 0, 0] : f32 from vector<1x1x1xf32>
    %228 = arith.mulf %223, %223 : vector<16x256xf32>
    %229 = vector.shape_cast %228 : vector<16x256xf32> to vector<1x16x256xf32>
    %cst_82 = arith.constant dense<0.000000e+00> : vector<1xf32>
    %230 = vector.multi_reduction <add>, %229, %cst_82 [1, 2] : vector<1x16x256xf32> to vector<1xf32>
    %231 = vector.shape_cast %230 : vector<1xf32> to vector<1x1x1xf32>
    %232 = vector.extract %231[0, 0, 0] : f32 from vector<1x1x1xf32>
    %cst_83 = arith.constant 4.096000e+03 : f32
    %233 = arith.divf %227, %cst_83 : f32
    %cst_84 = arith.constant 4.096000e+03 : f32
    %234 = arith.divf %232, %cst_84 : f32
    %235 = arith.mulf %233, %233 : f32
    %236 = arith.subf %234, %235 : f32
    %237 = vector.broadcast %233 : f32 to vector<1x256xf32>
    %cst_85 = arith.constant 9.99999974E-6 : f32
    %238 = arith.addf %236, %cst_85 : f32
    %239 = math.rsqrt %238 : f32
    %240 = vector.broadcast %239 : f32 to vector<1x256xf32>
    %241 = vector.extract_strided_slice %218 {offsets = [0, 256], sizes = [16, 256], strides = [1, 1]} : vector<16x512xf32> to vector<16x256xf32>
    %242 = vector.shape_cast %241 : vector<16x256xf32> to vector<1x16x256xf32>
    %cst_86 = arith.constant dense<0.000000e+00> : vector<1xf32>
    %243 = vector.multi_reduction <add>, %242, %cst_86 [1, 2] : vector<1x16x256xf32> to vector<1xf32>
    %244 = vector.shape_cast %243 : vector<1xf32> to vector<1x1x1xf32>
    %245 = vector.extract %244[0, 0, 0] : f32 from vector<1x1x1xf32>
    %246 = arith.mulf %241, %241 : vector<16x256xf32>
    %247 = vector.shape_cast %246 : vector<16x256xf32> to vector<1x16x256xf32>
    %cst_87 = arith.constant dense<0.000000e+00> : vector<1xf32>
    %248 = vector.multi_reduction <add>, %247, %cst_87 [1, 2] : vector<1x16x256xf32> to vector<1xf32>
    %249 = vector.shape_cast %248 : vector<1xf32> to vector<1x1x1xf32>
    %250 = vector.extract %249[0, 0, 0] : f32 from vector<1x1x1xf32>
    %cst_88 = arith.constant 4.096000e+03 : f32
    %251 = arith.divf %245, %cst_88 : f32
    %cst_89 = arith.constant 4.096000e+03 : f32
    %252 = arith.divf %250, %cst_89 : f32
    %253 = arith.mulf %251, %251 : f32
    %254 = arith.subf %252, %253 : f32
    %255 = vector.broadcast %251 : f32 to vector<1x256xf32>
    %cst_90 = arith.constant 9.99999974E-6 : f32
    %256 = arith.addf %254, %cst_90 : f32
    %257 = math.rsqrt %256 : f32
    %258 = vector.broadcast %257 : f32 to vector<1x256xf32>
    %259 = tpu.concatenate %237, %255 in 1 : vector<1x256xf32>, vector<1x256xf32> -> vector<1x512xf32>
    %260 = tpu.concatenate %240, %258 in 1 : vector<1x256xf32>, vector<1x256xf32> -> vector<1x512xf32>
    %261 = vector.broadcast %259 : vector<1x512xf32> to vector<16x512xf32>
    %262 = arith.subf %218, %261 : vector<16x512xf32>
    %263 = vector.broadcast %260 : vector<1x512xf32> to vector<16x512xf32>
    %264 = arith.mulf %262, %263 : vector<16x512xf32>
    %265 = arith.truncf %264 : vector<16x512xf32> to vector<16x512xbf16>
    %c0_91 = arith.constant 0 : index
    %c0_92 = arith.constant 0 : index
    %266 = vector.load %arg11[%c0_91, %c0_92] : memref<34x16xbf16, #tpu.memory_space<vmem>>, vector<34x16xbf16>
    %cst_93 = arith.constant dense<0.000000e+00> : vector<34x512xf32>
    %267 = tpu.matmul %266, %265, %cst_93 {dimension_numbers = #tpu.dot_dimension_numbers<[1], [0], [0], [1], [0, 0, 1, 1], [], []>} : vector<34x16xbf16>, vector<16x512xbf16>, vector<34x512xf32> -> vector<34x512xf32>
    %268 = vector.broadcast %219 : vector<34x1xf32> to vector<34x512xf32>
    %269 = arith.addf %267, %268 : vector<34x512xf32>
    %270 = vector.extract_strided_slice %269 {offsets = [0, 0], sizes = [16, 512], strides = [1, 1]} : vector<34x512xf32> to vector<16x512xf32>
    %271 = vector.extract_strided_slice %269 {offsets = [16, 0], sizes = [17, 512], strides = [1, 1]} : vector<34x512xf32> to vector<17x512xf32>
    %272 = vector.extract_strided_slice %269 {offsets = [33, 0], sizes = [1, 512], strides = [1, 1]} : vector<34x512xf32> to vector<1x512xf32>
    %273 = vector.shape_cast %272 : vector<1x512xf32> to vector<1x1x512xf32>
    %cst_94 = arith.constant dense<0xFF800000> : vector<1xf32>
    %274 = vector.multi_reduction <maximumf>, %273, %cst_94 [1, 2] : vector<1x1x512xf32> to vector<1xf32>
    %275 = vector.shape_cast %274 : vector<1xf32> to vector<1x1x1xf32>
    %276 = vector.extract %275[0, 0, 0] : f32 from vector<1x1x1xf32>
    %277 = vector.broadcast %276 : f32 to vector<1x512xf32>
    %278 = arith.subf %272, %277 : vector<1x512xf32>
    %279 = math.exp %278 : vector<1x512xf32>
    %280 = vector.broadcast %279 : vector<1x512xf32> to vector<17x512xf32>
    %281 = arith.mulf %271, %280 : vector<17x512xf32>
    %282 = arith.truncf %281 : vector<17x512xf32> to vector<17x512xbf16>
    %cst_95 = arith.constant dense<0.000000e+00> : vector<17x8xf32>
    %283 = tpu.matmul %282, %77, %cst_95 {dimension_numbers = #tpu.dot_dimension_numbers<[1], [0], [0], [1], [0, 0, 1, 1], [], []>} : vector<17x512xbf16>, vector<512x8xbf16>, vector<17x8xf32> -> vector<17x8xf32>
    %284 = vector.extract_strided_slice %283 {offsets = [0, 0], sizes = [16, 8], strides = [1, 1]} : vector<17x8xf32> to vector<16x8xf32>
    %285 = vector.extract_strided_slice %283 {offsets = [16, 0], sizes = [1, 8], strides = [1, 1]} : vector<17x8xf32> to vector<1x8xf32>
    %286 = tpu.reciprocal %285 {approx = true} : vector<1x8xf32> -> vector<1x8xf32>
    %287 = vector.broadcast %286 : vector<1x8xf32> to vector<16x8xf32>
    %288 = arith.mulf %284, %287 : vector<16x8xf32>
    %289 = arith.truncf %288 : vector<16x8xf32> to vector<16x8xbf16>
    %cst_96 = arith.constant dense<0.000000e+00> : vector<16x512xf32>
    %290 = tpu.matmul %289, %78, %cst_96 {dimension_numbers = #tpu.dot_dimension_numbers<[1], [0], [0], [1], [0, 0, 1, 1], [], []>} : vector<16x8xbf16>, vector<8x512xbf16>, vector<16x512xf32> -> vector<16x512xf32>
    %cst_97 = arith.constant 0.000000e+00 : f32
    %291 = vector.broadcast %cst_97 : f32 to vector<16x512xf32>
    %292 = arith.maximumf %270, %291 : vector<16x512xf32>
    %293 = arith.mulf %292, %290 : vector<16x512xf32>
    %c0_98 = arith.constant 0 : index
    %c0_99 = arith.constant 0 : index
    %294 = vector.load %arg12[%c0_98, %c0_99] : memref<16x16xbf16, #tpu.memory_space<vmem>>, vector<16x16xbf16>
    %295 = arith.truncf %293 : vector<16x512xf32> to vector<16x512xbf16>
    %cst_100 = arith.constant dense<0.000000e+00> : vector<16x512xf32>
    %296 = tpu.matmul %294, %295, %cst_100 {dimension_numbers = #tpu.dot_dimension_numbers<[1], [0], [0], [1], [0, 0, 1, 1], [], []>} : vector<16x16xbf16>, vector<16x512xbf16>, vector<16x512xf32> -> vector<16x512xf32>
    %297 = arith.addf %218, %296 : vector<16x512xf32>
    %298 = vector.broadcast %220 : vector<16x1xf32> to vector<16x512xf32>
    %299 = arith.addf %297, %298 : vector<16x512xf32>
    %300 = vector.extract_strided_slice %299 {offsets = [0, 0], sizes = [16, 256], strides = [1, 1]} : vector<16x512xf32> to vector<16x256xf32>
    %301 = vector.shape_cast %300 : vector<16x256xf32> to vector<1x16x256xf32>
    %cst_101 = arith.constant dense<0.000000e+00> : vector<1xf32>
    %302 = vector.multi_reduction <add>, %301, %cst_101 [1, 2] : vector<1x16x256xf32> to vector<1xf32>
    %303 = vector.shape_cast %302 : vector<1xf32> to vector<1x1x1xf32>
    %304 = vector.extract %303[0, 0, 0] : f32 from vector<1x1x1xf32>
    %305 = arith.mulf %300, %300 : vector<16x256xf32>
    %306 = vector.shape_cast %305 : vector<16x256xf32> to vector<1x16x256xf32>
    %cst_102 = arith.constant dense<0.000000e+00> : vector<1xf32>
    %307 = vector.multi_reduction <add>, %306, %cst_102 [1, 2] : vector<1x16x256xf32> to vector<1xf32>
    %308 = vector.shape_cast %307 : vector<1xf32> to vector<1x1x1xf32>
    %309 = vector.extract %308[0, 0, 0] : f32 from vector<1x1x1xf32>
    %cst_103 = arith.constant 4.096000e+03 : f32
    %310 = arith.divf %304, %cst_103 : f32
    %cst_104 = arith.constant 4.096000e+03 : f32
    %311 = arith.divf %309, %cst_104 : f32
    %312 = arith.mulf %310, %310 : f32
    %313 = arith.subf %311, %312 : f32
    %314 = vector.broadcast %310 : f32 to vector<1x256xf32>
    %cst_105 = arith.constant 9.99999974E-6 : f32
    %315 = arith.addf %313, %cst_105 : f32
    %316 = math.rsqrt %315 : f32
    %317 = vector.broadcast %316 : f32 to vector<1x256xf32>
    %318 = vector.extract_strided_slice %299 {offsets = [0, 256], sizes = [16, 256], strides = [1, 1]} : vector<16x512xf32> to vector<16x256xf32>
    %319 = vector.shape_cast %318 : vector<16x256xf32> to vector<1x16x256xf32>
    %cst_106 = arith.constant dense<0.000000e+00> : vector<1xf32>
    %320 = vector.multi_reduction <add>, %319, %cst_106 [1, 2] : vector<1x16x256xf32> to vector<1xf32>
    %321 = vector.shape_cast %320 : vector<1xf32> to vector<1x1x1xf32>
    %322 = vector.extract %321[0, 0, 0] : f32 from vector<1x1x1xf32>
    %323 = arith.mulf %318, %318 : vector<16x256xf32>
    %324 = vector.shape_cast %323 : vector<16x256xf32> to vector<1x16x256xf32>
    %cst_107 = arith.constant dense<0.000000e+00> : vector<1xf32>
    %325 = vector.multi_reduction <add>, %324, %cst_107 [1, 2] : vector<1x16x256xf32> to vector<1xf32>
    %326 = vector.shape_cast %325 : vector<1xf32> to vector<1x1x1xf32>
    %327 = vector.extract %326[0, 0, 0] : f32 from vector<1x1x1xf32>
    %cst_108 = arith.constant 4.096000e+03 : f32
    %328 = arith.divf %322, %cst_108 : f32
    %cst_109 = arith.constant 4.096000e+03 : f32
    %329 = arith.divf %327, %cst_109 : f32
    %330 = arith.mulf %328, %328 : f32
    %331 = arith.subf %329, %330 : f32
    %332 = vector.broadcast %328 : f32 to vector<1x256xf32>
    %cst_110 = arith.constant 9.99999974E-6 : f32
    %333 = arith.addf %331, %cst_110 : f32
    %334 = math.rsqrt %333 : f32
    %335 = vector.broadcast %334 : f32 to vector<1x256xf32>
    %336 = tpu.concatenate %314, %332 in 1 : vector<1x256xf32>, vector<1x256xf32> -> vector<1x512xf32>
    %337 = tpu.concatenate %317, %335 in 1 : vector<1x256xf32>, vector<1x256xf32> -> vector<1x512xf32>
    %338 = vector.broadcast %336 : vector<1x512xf32> to vector<16x512xf32>
    %339 = arith.subf %299, %338 : vector<16x512xf32>
    %340 = vector.broadcast %337 : vector<1x512xf32> to vector<16x512xf32>
    %341 = arith.mulf %339, %340 : vector<16x512xf32>
    %342 = arith.truncf %341 : vector<16x512xf32> to vector<16x512xbf16>
    %c0_111 = arith.constant 0 : index
    %c0_112 = arith.constant 0 : index
    %343 = vector.load %arg13[%c0_111, %c0_112] : memref<32x16xbf16, #tpu.memory_space<vmem>>, vector<32x16xbf16>
    %cst_113 = arith.constant dense<0.000000e+00> : vector<32x512xf32>
    %344 = tpu.matmul %343, %342, %cst_113 {dimension_numbers = #tpu.dot_dimension_numbers<[1], [0], [0], [1], [0, 0, 1, 1], [], []>} : vector<32x16xbf16>, vector<16x512xbf16>, vector<32x512xf32> -> vector<32x512xf32>
    %345 = vector.broadcast %221 : vector<32x1xf32> to vector<32x512xf32>
    %346 = arith.addf %344, %345 : vector<32x512xf32>
    %347 = arith.negf %346 : vector<32x512xf32>
    %348 = math.exp %347 : vector<32x512xf32>
    %cst_114 = arith.constant 1.000000e+00 : f32
    %349 = vector.broadcast %cst_114 : f32 to vector<32x512xf32>
    %350 = arith.addf %349, %348 : vector<32x512xf32>
    %351 = arith.divf %349, %350 : vector<32x512xf32>
    %352 = arith.mulf %346, %351 : vector<32x512xf32>
    %c0_115 = arith.constant 0 : index
    %c0_116 = arith.constant 0 : index
    %353 = vector.load %arg14[%c0_115, %c0_116] : memref<16x32xbf16, #tpu.memory_space<vmem>>, vector<16x32xbf16>
    %354 = arith.truncf %352 : vector<32x512xf32> to vector<32x512xbf16>
    %cst_117 = arith.constant dense<0.000000e+00> : vector<16x512xf32>
    %355 = tpu.matmul %353, %354, %cst_117 {dimension_numbers = #tpu.dot_dimension_numbers<[1], [0], [0], [1], [0, 0, 1, 1], [], []>} : vector<16x32xbf16>, vector<32x512xbf16>, vector<16x512xf32> -> vector<16x512xf32>
    %356 = arith.addf %299, %355 : vector<16x512xf32>
    %357 = vector.broadcast %222 : vector<16x1xf32> to vector<16x512xf32>
    %358 = arith.addf %356, %357 : vector<16x512xf32>
    %359 = vector.extract_strided_slice %358 {offsets = [0, 0], sizes = [16, 256], strides = [1, 1]} : vector<16x512xf32> to vector<16x256xf32>
    %360 = vector.shape_cast %359 : vector<16x256xf32> to vector<1x16x256xf32>
    %cst_118 = arith.constant dense<0.000000e+00> : vector<1xf32>
    %361 = vector.multi_reduction <add>, %360, %cst_118 [1, 2] : vector<1x16x256xf32> to vector<1xf32>
    %362 = vector.shape_cast %361 : vector<1xf32> to vector<1x1x1xf32>
    %363 = vector.extract %362[0, 0, 0] : f32 from vector<1x1x1xf32>
    %364 = arith.mulf %359, %359 : vector<16x256xf32>
    %365 = vector.shape_cast %364 : vector<16x256xf32> to vector<1x16x256xf32>
    %cst_119 = arith.constant dense<0.000000e+00> : vector<1xf32>
    %366 = vector.multi_reduction <add>, %365, %cst_119 [1, 2] : vector<1x16x256xf32> to vector<1xf32>
    %367 = vector.shape_cast %366 : vector<1xf32> to vector<1x1x1xf32>
    %368 = vector.extract %367[0, 0, 0] : f32 from vector<1x1x1xf32>
    %cst_120 = arith.constant 4.096000e+03 : f32
    %369 = arith.divf %363, %cst_120 : f32
    %cst_121 = arith.constant 4.096000e+03 : f32
    %370 = arith.divf %368, %cst_121 : f32
    %371 = arith.mulf %369, %369 : f32
    %372 = arith.subf %370, %371 : f32
    %373 = vector.broadcast %369 : f32 to vector<1x256xf32>
    %cst_122 = arith.constant 9.99999974E-6 : f32
    %374 = arith.addf %372, %cst_122 : f32
    %375 = math.rsqrt %374 : f32
    %376 = vector.broadcast %375 : f32 to vector<1x256xf32>
    %377 = vector.extract_strided_slice %358 {offsets = [0, 256], sizes = [16, 256], strides = [1, 1]} : vector<16x512xf32> to vector<16x256xf32>
    %378 = vector.shape_cast %377 : vector<16x256xf32> to vector<1x16x256xf32>
    %cst_123 = arith.constant dense<0.000000e+00> : vector<1xf32>
    %379 = vector.multi_reduction <add>, %378, %cst_123 [1, 2] : vector<1x16x256xf32> to vector<1xf32>
    %380 = vector.shape_cast %379 : vector<1xf32> to vector<1x1x1xf32>
    %381 = vector.extract %380[0, 0, 0] : f32 from vector<1x1x1xf32>
    %382 = arith.mulf %377, %377 : vector<16x256xf32>
    %383 = vector.shape_cast %382 : vector<16x256xf32> to vector<1x16x256xf32>
    %cst_124 = arith.constant dense<0.000000e+00> : vector<1xf32>
    %384 = vector.multi_reduction <add>, %383, %cst_124 [1, 2] : vector<1x16x256xf32> to vector<1xf32>
    %385 = vector.shape_cast %384 : vector<1xf32> to vector<1x1x1xf32>
    %386 = vector.extract %385[0, 0, 0] : f32 from vector<1x1x1xf32>
    %cst_125 = arith.constant 4.096000e+03 : f32
    %387 = arith.divf %381, %cst_125 : f32
    %cst_126 = arith.constant 4.096000e+03 : f32
    %388 = arith.divf %386, %cst_126 : f32
    %389 = arith.mulf %387, %387 : f32
    %390 = arith.subf %388, %389 : f32
    %391 = vector.broadcast %387 : f32 to vector<1x256xf32>
    %cst_127 = arith.constant 9.99999974E-6 : f32
    %392 = arith.addf %390, %cst_127 : f32
    %393 = math.rsqrt %392 : f32
    %394 = vector.broadcast %393 : f32 to vector<1x256xf32>
    %395 = tpu.concatenate %373, %391 in 1 : vector<1x256xf32>, vector<1x256xf32> -> vector<1x512xf32>
    %396 = tpu.concatenate %376, %394 in 1 : vector<1x256xf32>, vector<1x256xf32> -> vector<1x512xf32>
    %397 = vector.broadcast %395 : vector<1x512xf32> to vector<16x512xf32>
    %398 = arith.subf %358, %397 : vector<16x512xf32>
    %399 = vector.broadcast %396 : vector<1x512xf32> to vector<16x512xf32>
    %400 = arith.mulf %398, %399 : vector<16x512xf32>
    %401 = arith.truncf %400 : vector<16x512xf32> to vector<16x512xbf16>
    %c0_128 = arith.constant 0 : index
    %c0_129 = arith.constant 0 : index
    %402 = vector.load %arg15[%c0_128, %c0_129] : memref<16x16xbf16, #tpu.memory_space<vmem>>, vector<16x16xbf16>
    %cst_130 = arith.constant dense<0.000000e+00> : vector<16x512xf32>
    %403 = tpu.matmul %402, %401, %cst_130 {dimension_numbers = #tpu.dot_dimension_numbers<[1], [0], [0], [1], [0, 0, 1, 1], [], []>} : vector<16x16xbf16>, vector<16x512xbf16>, vector<16x512xf32> -> vector<16x512xf32>
    %c0_131 = arith.constant 0 : index
    %c10 = arith.constant 10 : index
    %404 = vector.load %arg5[%c0_131, %c10] : memref<34x19xf32, #tpu.memory_space<vmem>>, vector<16x1xf32>
    %405 = vector.broadcast %404 : vector<16x1xf32> to vector<16x512xf32>
    %406 = arith.addf %403, %405 : vector<16x512xf32>
    %c0_132 = arith.constant 0 : index
    %c0_133 = arith.constant 0 : index
    %c0_134 = arith.constant 0 : index
    %407 = vector.load %arg16[%c0_132, %c0_133, %c0_134] : memref<1x16x512xf32, #tpu.memory_space<vmem>>, vector<1x16x512xf32>
    %408 = vector.shape_cast %407 : vector<1x16x512xf32> to vector<16x512xf32>
    %409 = vector.shape_cast %406 : vector<16x512xf32> to vector<1x16x512xf32>
    tpu.vector_store %arg16[%c0_132, %c0_133, %c0_134], %409 {strides = array<i32>} : memref<1x16x512xf32, #tpu.memory_space<vmem>>, vector<1x16x512xf32>,
    return
  }
  func.func @transform_0(%arg0: i32) -> (i32, i32, i32) {
    %c0_i32 = arith.constant 0 : i32
    %c0_i32_0 = arith.constant 0 : i32
    %c0_i32_1 = arith.constant 0 : i32
    return %arg0, %c0_i32, %c0_i32_0 : i32, i32, i32
  }
  func.func @transform_1(%arg0: i32) -> (i32, i32) {
    %c0_i32 = arith.constant 0 : i32
    %c0_i32_0 = arith.constant 0 : i32
    %c0_i32_1 = arith.constant 0 : i32
    return %c0_i32, %c0_i32_0 : i32, i32
  }
  func.func @transform_2(%arg0: i32) -> (i32, i32) {
    %c0_i32 = arith.constant 0 : i32
    %c0_i32_0 = arith.constant 0 : i32
    %c0_i32_1 = arith.constant 0 : i32
    return %c0_i32, %c0_i32_0 : i32, i32
  }
  func.func @transform_3(%arg0: i32) -> (i32, i32) {
    %c0_i32 = arith.constant 0 : i32
    %c0_i32_0 = arith.constant 0 : i32
    %c0_i32_1 = arith.constant 0 : i32
    return %c0_i32, %c0_i32_0 : i32, i32
  }
  func.func @transform_4(%arg0: i32) -> (i32, i32) {
    %c0_i32 = arith.constant 0 : i32
    %c0_i32_0 = arith.constant 0 : i32
    %c0_i32_1 = arith.constant 0 : i32
    return %c0_i32, %c0_i32_0 : i32, i32
  }
  func.func @transform_5(%arg0: i32) -> (i32, i32) {
    %c0_i32 = arith.constant 0 : i32
    %c0_i32_0 = arith.constant 0 : i32
    %c0_i32_1 = arith.constant 0 : i32
    return %c0_i32, %c0_i32_0 : i32, i32
  }
  func.func @transform_6(%arg0: i32) -> (i32, i32) {
    %c0_i32 = arith.constant 0 : i32
    %c0_i32_0 = arith.constant 0 : i32
    %c0_i32_1 = arith.constant 0 : i32
    return %c0_i32, %c0_i32_0 : i32, i32
  }
  func.func @transform_7(%arg0: i32) -> (i32, i32) {
    %c0_i32 = arith.constant 0 : i32
    %c0_i32_0 = arith.constant 0 : i32
    %c0_i32_1 = arith.constant 0 : i32
    return %c0_i32, %c0_i32_0 : i32, i32
  }
  func.func @transform_8(%arg0: i32) -> (i32, i32) {
    %c0_i32 = arith.constant 0 : i32
    %c0_i32_0 = arith.constant 0 : i32
    %c0_i32_1 = arith.constant 0 : i32
    return %c0_i32, %c0_i32_0 : i32, i32
  }
  func.func @transform_9(%arg0: i32) -> (i32, i32) {
    %c0_i32 = arith.constant 0 : i32
    %c0_i32_0 = arith.constant 0 : i32
    %c0_i32_1 = arith.constant 0 : i32
    return %c0_i32, %c0_i32_0 : i32, i32
  }
  func.func @transform_10(%arg0: i32) -> (i32, i32) {
    %c0_i32 = arith.constant 0 : i32
    %c0_i32_0 = arith.constant 0 : i32
    %c0_i32_1 = arith.constant 0 : i32
    return %c0_i32, %c0_i32_0 : i32, i32
  }
  func.func @transform_11(%arg0: i32) -> (i32, i32) {
    %c0_i32 = arith.constant 0 : i32
    %c0_i32_0 = arith.constant 0 : i32
    %c0_i32_1 = arith.constant 0 : i32
    return %c0_i32, %c0_i32_0 : i32, i32
  }
  func.func @transform_12(%arg0: i32) -> (i32, i32) {
    %c0_i32 = arith.constant 0 : i32
    %c0_i32_0 = arith.constant 0 : i32
    %c0_i32_1 = arith.constant 0 : i32
    return %c0_i32, %c0_i32_0 : i32, i32
  }
  func.func @transform_13(%arg0: i32) -> (i32, i32) {
    %c0_i32 = arith.constant 0 : i32
    %c0_i32_0 = arith.constant 0 : i32
    %c0_i32_1 = arith.constant 0 : i32
    return %c0_i32, %c0_i32_0 : i32, i32
  }
  func.func @transform_14(%arg0: i32) -> (i32, i32) {
    %c0_i32 = arith.constant 0 : i32
    %c0_i32_0 = arith.constant 0 : i32
    %c0_i32_1 = arith.constant 0 : i32
    return %c0_i32, %c0_i32_0 : i32, i32
  }
  func.func @transform_15(%arg0: i32) -> (i32, i32, i32) {
    %c0_i32 = arith.constant 0 : i32
    %c0_i32_0 = arith.constant 0 : i32
    %c0_i32_1 = arith.constant 0 : i32
    return %arg0, %c0_i32, %c0_i32_0 : i32, i32, i32
  }
}

</mosaic_0001>

<llo_original>
// kernel: mobilevit_v2_block.1
$region0: #{mobilevit_v2_block.1}
  #allocation0 [shape = 'u32[]', space=smem, size = 0x4, offset = 0x4, fixed_abs, tag = 'smem constant byte address 0x4 - core index']
  #allocation1 [shape = 'u32[144,128]{1,0:T(1,128)}', space=vmem, size = 0x12000, scoped, tag = 'internal scratch']
  %s0 = inlined_call_operand.vmem [shape: f32[1,16,512], index: 0, kind: input, shape index: {}]
  %s1 = inlined_call_operand.vmem [shape: f32[9,512], index: 1, kind: input, shape index: {}]
  %s2 = inlined_call_operand.vmem [shape: bf16[512,8], index: 2, kind: input, shape index: {}]
  %s3 = inlined_call_operand.vmem [shape: bf16[8,512], index: 3, kind: input, shape index: {}]
  %s4 = inlined_call_operand.vmem [shape: f32[34,19], index: 4, kind: input, shape index: {}]
  %s5 = inlined_call_operand.vmem [shape: bf16[16,16], index: 5, kind: input, shape index: {}]
  %s6 = inlined_call_operand.vmem [shape: bf16[34,16], index: 6, kind: input, shape index: {}]
  %s7 = inlined_call_operand.vmem [shape: bf16[16,16], index: 7, kind: input, shape index: {}]
  %s8 = inlined_call_operand.vmem [shape: bf16[32,16], index: 8, kind: input, shape index: {}]
  %s9 = inlined_call_operand.vmem [shape: bf16[16,32], index: 9, kind: input, shape index: {}]
  %s10 = inlined_call_operand.vmem [shape: bf16[34,16], index: 10, kind: input, shape index: {}]
  %s11 = inlined_call_operand.vmem [shape: bf16[16,16], index: 11, kind: input, shape index: {}]
  %s12 = inlined_call_operand.vmem [shape: bf16[32,16], index: 12, kind: input, shape index: {}]
  %s13 = inlined_call_operand.vmem [shape: bf16[16,32], index: 13, kind: input, shape index: {}]
  %s14 = inlined_call_operand.vmem [shape: bf16[16,16], index: 14, kind: input, shape index: {}]
  %s15 = inlined_call_operand.vmem [shape: f32[1,16,512], index: 15, kind: output, shape index: {}]
  %s16 = sld [smem:[#allocation0]]
  $region70: #{mobilevit_v2_block.1} parent=0
    _
  %s18 = ssub.s32 1, %s16
  %s19 = scalar_select 0, %s18, %s16
  // Predicated region
  $region2: #{mobilevit_v2_block.1} parent=0 // pred_check
    _
  $region3: #{mobilevit_v2_block.1} parent=0 // pred_check_branch
    %21 = sbr.rel (0) target = $region5
  $region4: #{mobilevit_v2_block.1} parent=0 // pred_region
    _
  $region5: #{mobilevit_v2_block.1} parent=0 // pred_fallthru
    _
  // Predicated region
  $region6: #{mobilevit_v2_block.1} parent=0 // pred_check
    _
  $region7: #{mobilevit_v2_block.1} parent=0 // pred_check_branch
    %23 = sbr.rel (0) target = $region9
  $region8: #{mobilevit_v2_block.1} parent=0 // pred_region
    _
  $region9: #{mobilevit_v2_block.1} parent=0 // pred_fallthru
    _
  // Predicated region
  $region10: #{mobilevit_v2_block.1} parent=0 // pred_check
    _
  $region11: #{mobilevit_v2_block.1} parent=0 // pred_check_branch
    %25 = sbr.rel (0) target = $region13
  $region12: #{mobilevit_v2_block.1} parent=0 // pred_region
    _
  $region13: #{mobilevit_v2_block.1} parent=0 // pred_fallthru
    _
  // Predicated region
  $region14: #{mobilevit_v2_block.1} parent=0 // pred_check
    _
  $region15: #{mobilevit_v2_block.1} parent=0 // pred_check_branch
    %27 = sbr.rel (0) target = $region17
  $region16: #{mobilevit_v2_block.1} parent=0 // pred_region
    _
  $region17: #{mobilevit_v2_block.1} parent=0 // pred_fallthru
    _
  // Predicated region
  $region18: #{mobilevit_v2_block.1} parent=0 // pred_check
    _
  $region19: #{mobilevit_v2_block.1} parent=0 // pred_check_branch
    %29 = sbr.rel (0) target = $region21
  $region20: #{mobilevit_v2_block.1} parent=0 // pred_region
    _
  $region21: #{mobilevit_v2_block.1} parent=0 // pred_fallthru
    _
  // Predicated region
  $region22: #{mobilevit_v2_block.1} parent=0 // pred_check
    _
  $region23: #{mobilevit_v2_block.1} parent=0 // pred_check_branch
    %31 = sbr.rel (0) target = $region25
  $region24: #{mobilevit_v2_block.1} parent=0 // pred_region
    _
  $region25: #{mobilevit_v2_block.1} parent=0 // pred_fallthru
    _
  // Predicated region
  $region26: #{mobilevit_v2_block.1} parent=0 // pred_check
    _
  $region27: #{mobilevit_v2_block.1} parent=0 // pred_check_branch
    %33 = sbr.rel (0) target = $region29
  $region28: #{mobilevit_v2_block.1} parent=0 // pred_region
    _
  $region29: #{mobilevit_v2_block.1} parent=0 // pred_fallthru
    _
  // Predicated region
  $region30: #{mobilevit_v2_block.1} parent=0 // pred_check
    _
  $region31: #{mobilevit_v2_block.1} parent=0 // pred_check_branch
    %35 = sbr.rel (0) target = $region33
  $region32: #{mobilevit_v2_block.1} parent=0 // pred_region
    _
  $region33: #{mobilevit_v2_block.1} parent=0 // pred_fallthru
    _
  // Predicated region
  $region34: #{mobilevit_v2_block.1} parent=0 // pred_check
    _
  $region35: #{mobilevit_v2_block.1} parent=0 // pred_check_branch
    %37 = sbr.rel (0) target = $region37
  $region36: #{mobilevit_v2_block.1} parent=0 // pred_region
    _
  $region37: #{mobilevit_v2_block.1} parent=0 // pred_fallthru
    _
  // Predicated region
  $region38: #{mobilevit_v2_block.1} parent=0 // pred_check
    _
  $region39: #{mobilevit_v2_block.1} parent=0 // pred_check_branch
    %39 = sbr.rel (0) target = $region41
  $region40: #{mobilevit_v2_block.1} parent=0 // pred_region
    _
  $region41: #{mobilevit_v2_block.1} parent=0 // pred_fallthru
    _
  // Predicated region
  $region42: #{mobilevit_v2_block.1} parent=0 // pred_check
    _
  $region43: #{mobilevit_v2_block.1} parent=0 // pred_check_branch
    %41 = sbr.rel (0) target = $region45
  $region44: #{mobilevit_v2_block.1} parent=0 // pred_region
    _
  $region45: #{mobilevit_v2_block.1} parent=0 // pred_fallthru
    _
  // Predicated region
  $region46: #{mobilevit_v2_block.1} parent=0 // pred_check
    _
  $region47: #{mobilevit_v2_block.1} parent=0 // pred_check_branch
    %43 = sbr.rel (0) target = $region49
  $region48: #{mobilevit_v2_block.1} parent=0 // pred_region
    _
  $region49: #{mobilevit_v2_block.1} parent=0 // pred_fallthru
    _
  // Predicated region
  $region50: #{mobilevit_v2_block.1} parent=0 // pred_check
    _
  $region51: #{mobilevit_v2_block.1} parent=0 // pred_check_branch
    %45 = sbr.rel (0) target = $region53
  $region52: #{mobilevit_v2_block.1} parent=0 // pred_region
    _
  $region53: #{mobilevit_v2_block.1} parent=0 // pred_fallthru
    _
  // Predicated region
  $region54: #{mobilevit_v2_block.1} parent=0 // pred_check
    _
  $region55: #{mobilevit_v2_block.1} parent=0 // pred_check_branch
    %47 = sbr.rel (0) target = $region57
  $region56: #{mobilevit_v2_block.1} parent=0 // pred_region
    _
  $region57: #{mobilevit_v2_block.1} parent=0 // pred_fallthru
    _
  // Predicated region
  $region58: #{mobilevit_v2_block.1} parent=0 // pred_check
    _
  $region59: #{mobilevit_v2_block.1} parent=0 // pred_check_branch
    %49 = sbr.rel (0) target = $region61
  $region60: #{mobilevit_v2_block.1} parent=0 // pred_region
    _
  $region61: #{mobilevit_v2_block.1} parent=0 // pred_fallthru
    _
  %v51 = vld [vmem:[%s0] sm:$0xff]
  %v52 = vld [vmem:[%s0 + $0x8] sm:$0xff]
  %v53 = vld [vmem:[%s0 + $0x10] sm:$0xff]
  %v54 = vld [vmem:[%s0 + $0x18] sm:$0xff]
  %v55 = vld [vmem:[%s0 + $0x20] sm:$0xff]
  %v56 = vld [vmem:[%s0 + $0x28] sm:$0xff]
  %v57 = vld [vmem:[%s0 + $0x30] sm:$0xff]
  %v58 = vld [vmem:[%s0 + $0x38] sm:$0xff]
  %v59 = vld [vmem:[%s4] sm:$0xff]
  %v60 = vld [vmem:[%s4 + $0x8] sm:$0xff]
  %62 = vset.pattern.permute.xlu0 4
  %63 = vperm.xlu0 %62, %v59
  %v64 = vpop.permute.xlu0 %63
  %67 = vset.pattern.permute.xlu0 4
  %68 = vperm.xlu0 %67, %v60
  %v69 = vpop.permute.xlu0 %68
  %v71 = vmul.f32 %v51, %v64
  %v72 = vmul.f32 %v52, %v64
  %v73 = vmul.f32 %v53, %v64
  %v74 = vmul.f32 %v54, %v64
  %v75 = vmul.f32 %v55, %v69
  %v76 = vmul.f32 %v56, %v69
  %v77 = vmul.f32 %v57, %v69
  %v78 = vmul.f32 %v58, %v69
  %79 = vrot.lane.b32.xlu0 %v51, 17
  %v80 = vpop.permute.xlu0 %79
  %81 = vrot.lane.b32.xlu0 %v55, 17
  %v82 = vpop.permute.xlu0 %81
  %83 = vrot.lane.b32.xlu0 %v52, 17
  %v84 = vpop.permute.xlu0 %83
  %85 = vrot.lane.b32.xlu0 %v56, 17
  %v86 = vpop.permute.xlu0 %85
  %87 = vrot.lane.b32.xlu0 %v53, 17
  %v88 = vpop.permute.xlu0 %87
  %89 = vrot.lane.b32.xlu0 %v57, 17
  %v90 = vpop.permute.xlu0 %89
  %91 = vrot.lane.b32.xlu0 %v54, 17
  %v92 = vpop.permute.xlu0 %91
  %93 = vrot.lane.b32.xlu0 %v58, 17
  %v94 = vpop.permute.xlu0 %93
  %v95 = vlaneseq
  %v96 = vand.u32 %v95, 127
  %vm97 = vcmp.lt.s32.totalorder %v96, 17
  %v98 = vsel %vm97, %v88, %v92
  %v99 = vsel %vm97, %v90, %v94
  %v100 = vsel %vm97, %v84, %v88
  %v101 = vsel %vm97, %v86, %v90
  %v102 = vsel %vm97, %v80, %v84
  %v103 = vsel %vm97, %v82, %v86
  %v104 = vsel %vm97, %v92, %v80
  %v105 = vsel %vm97, %v94, %v82
  %v106 = vld [vmem:[%s1] ss:$8 sm:$0xf]
  %v108 = vlaneseq
  %v109 = vshrl.u32 %v108, 7
  %v110 = vsub.s32 0, %v109
  %v111 = vrot.slane %v106, %v110
  %v112 = vlaneseq
  %v113 = vshrl.u32 %v112, 7
  %v114 = vsub.s32 1, %v113
  %v115 = vrot.slane %v106, %v114
  %v116 = vlaneseq
  %v117 = vshrl.u32 %v116, 7
  %v118 = vsub.s32 2, %v117
  %v119 = vrot.slane %v106, %v118
  %v120 = vlaneseq
  %v121 = vshrl.u32 %v120, 7
  %v122 = vsub.s32 3, %v121
  %v123 = vrot.slane %v106, %v122
  %v128 = vmul.f32 %v104, %v111
  %v129 = vmul.f32 %v102, %v115
  %v130 = vmul.f32 %v100, %v119
  %v131 = vmul.f32 %v98, %v123
  %v132 = vmul.f32 %v105, %v111
  %v133 = vmul.f32 %v103, %v115
  %v134 = vmul.f32 %v101, %v119
  %v135 = vmul.f32 %v99, %v123
  %136 = vset.pattern.permute.xlu0 0
  %137 = vperm.xlu0 %136, %v59
  %v138 = vpop.permute.xlu0 %137
  %140 = vset.pattern.permute.xlu0 0
  %141 = vperm.xlu0 %140, %v60
  %v142 = vpop.permute.xlu0 %141
  %v144 = vmul.f32 %v128, %v138
  %v145 = vmul.f32 %v129, %v138
  %v146 = vmul.f32 %v130, %v138
  %v147 = vmul.f32 %v131, %v138
  %v148 = vmul.f32 %v132, %v142
  %v149 = vmul.f32 %v133, %v142
  %v150 = vmul.f32 %v134, %v142
  %v151 = vmul.f32 %v135, %v142
  %v152 = vadd.f32 %v71, %v144
  %v153 = vadd.f32 %v72, %v145
  %v154 = vadd.f32 %v73, %v146
  %v155 = vadd.f32 %v74, %v147
  %v156 = vadd.f32 %v75, %v148
  %v157 = vadd.f32 %v76, %v149
  %v158 = vadd.f32 %v77, %v150
  %v159 = vadd.f32 %v78, %v151
  %160 = vrot.lane.b32.xlu0 %v51, 16
  %v161 = vpop.permute.xlu0 %160
  %162 = vrot.lane.b32.xlu0 %v55, 16
  %v163 = vpop.permute.xlu0 %162
  %164 = vrot.lane.b32.xlu0 %v52, 16
  %v165 = vpop.permute.xlu0 %164
  %166 = vrot.lane.b32.xlu0 %v56, 16
  %v167 = vpop.permute.xlu0 %166
  %168 = vrot.lane.b32.xlu0 %v53, 16
  %v169 = vpop.permute.xlu0 %168
  %170 = vrot.lane.b32.xlu0 %v57, 16
  %v171 = vpop.permute.xlu0 %170
  %172 = vrot.lane.b32.xlu0 %v54, 16
  %v173 = vpop.permute.xlu0 %172
  %174 = vrot.lane.b32.xlu0 %v58, 16
  %v175 = vpop.permute.xlu0 %174
  %vm176 = vcmp.lt.s32.totalorder %v96, 16
  %v177 = vsel %vm176, %v169, %v173
  %v178 = vsel %vm176, %v171, %v175
  %v179 = vsel %vm176, %v165, %v169
  %v180 = vsel %vm176, %v167, %v171
  %v181 = vsel %vm176, %v161, %v165
  %v182 = vsel %vm176, %v163, %v167
  %v183 = vsel %vm176, %v173, %v161
  %v184 = vsel %vm176, %v175, %v163
  %s185 = scalar_lea.vmem %s1, 1
  %v186 = vld [vmem:[%s185] ss:$8 sm:$0xf]
  %v188 = vlaneseq
  %v189 = vshrl.u32 %v188, 7
  %v190 = vsub.s32 0, %v189
  %v191 = vrot.slane %v186, %v190
  %v192 = vlaneseq
  %v193 = vshrl.u32 %v192, 7
  %v194 = vsub.s32 1, %v193
  %v195 = vrot.slane %v186, %v194
  %v196 = vlaneseq
  %v197 = vshrl.u32 %v196, 7
  %v198 = vsub.s32 2, %v197
  %v199 = vrot.slane %v186, %v198
  %v200 = vlaneseq
  %v201 = vshrl.u32 %v200, 7
  %v202 = vsub.s32 3, %v201
  %v203 = vrot.slane %v186, %v202
  %v208 = vmul.f32 %v183, %v191
  %v209 = vmul.f32 %v181, %v195
  %v210 = vmul.f32 %v179, %v199
  %v211 = vmul.f32 %v177, %v203
  %v212 = vmul.f32 %v184, %v191
  %v213 = vmul.f32 %v182, %v195
  %v214 = vmul.f32 %v180, %v199
  %v215 = vmul.f32 %v178, %v203
  %216 = vset.pattern.permute.xlu0 1
  %217 = vperm.xlu0 %216, %v59
  %v218 = vpop.permute.xlu0 %217
  %220 = vset.pattern.permute.xlu0 1
  %221 = vperm.xlu0 %220, %v60
  %v222 = vpop.permute.xlu0 %221
  %v224 = vmul.f32 %v208, %v218
  %v225 = vmul.f32 %v209, %v218
  %v226 = vmul.f32 %v210, %v218
  %v227 = vmul.f32 %v211, %v218
  %v228 = vmul.f32 %v212, %v222
  %v229 = vmul.f32 %v213, %v222
  %v230 = vmul.f32 %v214, %v222
  %v231 = vmul.f32 %v215, %v222
  %v232 = vadd.f32 %v152, %v224
  %v233 = vadd.f32 %v153, %v225
  %v234 = vadd.f32 %v154, %v226
  %v235 = vadd.f32 %v155, %v227
  %v236 = vadd.f32 %v156, %v228
  %v237 = vadd.f32 %v157, %v229
  %v238 = vadd.f32 %v158, %v230
  %v239 = vadd.f32 %v159, %v231
  %240 = vrot.lane.b32.xlu0 %v51, 15
  %v241 = vpop.permute.xlu0 %240
  %242 = vrot.lane.b32.xlu0 %v55, 15
  %v243 = vpop.permute.xlu0 %242
  %244 = vrot.lane.b32.xlu0 %v52, 15
  %v245 = vpop.permute.xlu0 %244
  %246 = vrot.lane.b32.xlu0 %v56, 15
  %v247 = vpop.permute.xlu0 %246
  %248 = vrot.lane.b32.xlu0 %v53, 15
  %v249 = vpop.permute.xlu0 %248
  %250 = vrot.lane.b32.xlu0 %v57, 15
  %v251 = vpop.permute.xlu0 %250
  %252 = vrot.lane.b32.xlu0 %v54, 15
  %v253 = vpop.permute.xlu0 %252
  %254 = vrot.lane.b32.xlu0 %v58, 15
  %v255 = vpop.permute.xlu0 %254
  %vm256 = vcmp.lt.s32.totalorder %v96, 15
  %v257 = vsel %vm256, %v249, %v253
  %v258 = vsel %vm256, %v251, %v255
  %v259 = vsel %vm256, %v245, %v249
  %v260 = vsel %vm256, %v247, %v251
  %v261 = vsel %vm256, %v241, %v245
  %v262 = vsel %vm256, %v243, %v247
  %v263 = vsel %vm256, %v253, %v241
  %v264 = vsel %vm256, %v255, %v243
  %s265 = scalar_lea.vmem %s1, 2
  %v266 = vld [vmem:[%s265] ss:$8 sm:$0xf]
  %v268 = vlaneseq
  %v269 = vshrl.u32 %v268, 7
  %v270 = vsub.s32 0, %v269
  %v271 = vrot.slane %v266, %v270
  %v272 = vlaneseq
  %v273 = vshrl.u32 %v272, 7
  %v274 = vsub.s32 1, %v273
  %v275 = vrot.slane %v266, %v274
  %v276 = vlaneseq
  %v277 = vshrl.u32 %v276, 7
  %v278 = vsub.s32 2, %v277
  %v279 = vrot.slane %v266, %v278
  %v280 = vlaneseq
  %v281 = vshrl.u32 %v280, 7
  %v282 = vsub.s32 3, %v281
  %v283 = vrot.slane %v266, %v282
  %v288 = vmul.f32 %v263, %v271
  %v289 = vmul.f32 %v261, %v275
  %v290 = vmul.f32 %v259, %v279
  %v291 = vmul.f32 %v257, %v283
  %v292 = vmul.f32 %v264, %v271
  %v293 = vmul.f32 %v262, %v275
  %v294 = vmul.f32 %v260, %v279
  %v295 = vmul.f32 %v258, %v283
  %296 = vset.pattern.permute.xlu0 2
  %297 = vperm.xlu0 %296, %v59
  %v298 = vpop.permute.xlu0 %297
  %300 = vset.pattern.permute.xlu0 2
  %301 = vperm.xlu0 %300, %v60
  %v302 = vpop.permute.xlu0 %301
  %v304 = vmul.f32 %v288, %v298
  %v305 = vmul.f32 %v289, %v298
  %v306 = vmul.f32 %v290, %v298
  %v307 = vmul.f32 %v291, %v298
  %v308 = vmul.f32 %v292, %v302
  %v309 = vmul.f32 %v293, %v302
  %v310 = vmul.f32 %v294, %v302
  %v311 = vmul.f32 %v295, %v302
  %v312 = vadd.f32 %v232, %v304
  %v313 = vadd.f32 %v233, %v305
  %v314 = vadd.f32 %v234, %v306
  %v315 = vadd.f32 %v235, %v307
  %v316 = vadd.f32 %v236, %v308
  %v317 = vadd.f32 %v237, %v309
  %v318 = vadd.f32 %v238, %v310
  %v319 = vadd.f32 %v239, %v311
  %320 = vrot.lane.b32.xlu0 %v51, 1
  %v321 = vpop.permute.xlu0 %320
  %322 = vrot.lane.b32.xlu0 %v55, 1
  %v323 = vpop.permute.xlu0 %322
  %324 = vrot.lane.b32.xlu0 %v52, 1
  %v325 = vpop.permute.xlu0 %324
  %326 = vrot.lane.b32.xlu0 %v56, 1
  %v327 = vpop.permute.xlu0 %326
  %328 = vrot.lane.b32.xlu0 %v53, 1
  %v329 = vpop.permute.xlu0 %328
  %330 = vrot.lane.b32.xlu0 %v57, 1
  %v331 = vpop.permute.xlu0 %330
  %332 = vrot.lane.b32.xlu0 %v54, 1
  %v333 = vpop.permute.xlu0 %332
  %334 = vrot.lane.b32.xlu0 %v58, 1
  %v335 = vpop.permute.xlu0 %334
  %vm336 = vcmp.lt.s32.totalorder %v96, 1
  %v337 = vsel %vm336, %v329, %v333
  %v338 = vsel %vm336, %v331, %v335
  %v339 = vsel %vm336, %v325, %v329
  %v340 = vsel %vm336, %v327, %v331
  %v341 = vsel %vm336, %v321, %v325
  %v342 = vsel %vm336, %v323, %v327
  %v343 = vsel %vm336, %v333, %v321
  %v344 = vsel %vm336, %v335, %v323
  %s345 = scalar_lea.vmem %s1, 3
  %v346 = vld [vmem:[%s345] ss:$8 sm:$0xf]
  %v348 = vlaneseq
  %v349 = vshrl.u32 %v348, 7
  %v350 = vsub.s32 0, %v349
  %v351 = vrot.slane %v346, %v350
  %v352 = vlaneseq
  %v353 = vshrl.u32 %v352, 7
  %v354 = vsub.s32 1, %v353
  %v355 = vrot.slane %v346, %v354
  %v356 = vlaneseq
  %v357 = vshrl.u32 %v356, 7
  %v358 = vsub.s32 2, %v357
  %v359 = vrot.slane %v346, %v358
  %v360 = vlaneseq
  %v361 = vshrl.u32 %v360, 7
  %v362 = vsub.s32 3, %v361
  %v363 = vrot.slane %v346, %v362
  %v368 = vmul.f32 %v343, %v351
  %v369 = vmul.f32 %v341, %v355
  %v370 = vmul.f32 %v339, %v359
  %v371 = vmul.f32 %v337, %v363
  %v372 = vmul.f32 %v344, %v351
  %v373 = vmul.f32 %v342, %v355
  %v374 = vmul.f32 %v340, %v359
  %v375 = vmul.f32 %v338, %v363
  %376 = vset.pattern.permute.xlu0 3
  %377 = vperm.xlu0 %376, %v59
  %v378 = vpop.permute.xlu0 %377
  %380 = vset.pattern.permute.xlu0 3
  %381 = vperm.xlu0 %380, %v60
  %v382 = vpop.permute.xlu0 %381
  %v384 = vmul.f32 %v368, %v378
  %v385 = vmul.f32 %v369, %v378
  %v386 = vmul.f32 %v370, %v378
  %v387 = vmul.f32 %v371, %v378
  %v388 = vmul.f32 %v372, %v382
  %v389 = vmul.f32 %v373, %v382
  %v390 = vmul.f32 %v374, %v382
  %v391 = vmul.f32 %v375, %v382
  %v392 = vadd.f32 %v312, %v384
  %v393 = vadd.f32 %v313, %v385
  %v394 = vadd.f32 %v314, %v386
  %v395 = vadd.f32 %v315, %v387
  %v396 = vadd.f32 %v316, %v388
  %v397 = vadd.f32 %v317, %v389
  %v398 = vadd.f32 %v318, %v390
  %v399 = vadd.f32 %v319, %v391
  %400 = vrot.lane.b32.xlu0 %v51, 127
  %v401 = vpop.permute.xlu0 %400
  %402 = vrot.lane.b32.xlu0 %v55, 127
  %v403 = vpop.permute.xlu0 %402
  %404 = vrot.lane.b32.xlu0 %v52, 127
  %v405 = vpop.permute.xlu0 %404
  %406 = vrot.lane.b32.xlu0 %v56, 127
  %v407 = vpop.permute.xlu0 %406
  %408 = vrot.lane.b32.xlu0 %v53, 127
  %v409 = vpop.permute.xlu0 %408
  %410 = vrot.lane.b32.xlu0 %v57, 127
  %v411 = vpop.permute.xlu0 %410
  %412 = vrot.lane.b32.xlu0 %v54, 127
  %v413 = vpop.permute.xlu0 %412
  %414 = vrot.lane.b32.xlu0 %v58, 127
  %v415 = vpop.permute.xlu0 %414
  %vm416 = vcmp.lt.s32.totalorder %v96, 127
  %v417 = vsel %vm416, %v409, %v413
  %v418 = vsel %vm416, %v411, %v415
  %v419 = vsel %vm416, %v405, %v409
  %v420 = vsel %vm416, %v407, %v411
  %v421 = vsel %vm416, %v401, %v405
  %v422 = vsel %vm416, %v403, %v407
  %v423 = vsel %vm416, %v413, %v401
  %v424 = vsel %vm416, %v415, %v403
  %s425 = scalar_lea.vmem %s1, 5
  %v426 = vld [vmem:[%s425] ss:$8 sm:$0xf]
  %v428 = vlaneseq
  %v429 = vshrl.u32 %v428, 7
  %v430 = vsub.s32 0, %v429
  %v431 = vrot.slane %v426, %v430
  %v432 = vlaneseq
  %v433 = vshrl.u32 %v432, 7
  %v434 = vsub.s32 1, %v433
  %v435 = vrot.slane %v426, %v434
  %v436 = vlaneseq
  %v437 = vshrl.u32 %v436, 7
  %v438 = vsub.s32 2, %v437
  %v439 = vrot.slane %v426, %v438
  %v440 = vlaneseq
  %v441 = vshrl.u32 %v440, 7
  %v442 = vsub.s32 3, %v441
  %v443 = vrot.slane %v426, %v442
  %v448 = vmul.f32 %v421, %v431
  %v449 = vmul.f32 %v419, %v435
  %v450 = vmul.f32 %v417, %v439
  %v451 = vmul.f32 %v423, %v443
  %v452 = vmul.f32 %v422, %v431
  %v453 = vmul.f32 %v420, %v435
  %v454 = vmul.f32 %v418, %v439
  %v455 = vmul.f32 %v424, %v443
  %456 = vset.pattern.permute.xlu0 5
  %457 = vperm.xlu0 %456, %v59
  %v458 = vpop.permute.xlu0 %457
  %460 = vset.pattern.permute.xlu0 5
  %461 = vperm.xlu0 %460, %v60
  %v462 = vpop.permute.xlu0 %461
  %v464 = vmul.f32 %v448, %v458
  %v465 = vmul.f32 %v449, %v458
  %v466 = vmul.f32 %v450, %v458
  %v467 = vmul.f32 %v451, %v458
  %v468 = vmul.f32 %v452, %v462
  %v469 = vmul.f32 %v453, %v462
  %v470 = vmul.f32 %v454, %v462
  %v471 = vmul.f32 %v455, %v462
  %v472 = vadd.f32 %v392, %v464
  %v473 = vadd.f32 %v393, %v465
  %v474 = vadd.f32 %v394, %v466
  %v475 = vadd.f32 %v395, %v467
  %v476 = vadd.f32 %v396, %v468
  %v477 = vadd.f32 %v397, %v469
  %v478 = vadd.f32 %v398, %v470
  %v479 = vadd.f32 %v399, %v471
  %480 = vrot.lane.b32.xlu0 %v51, 113
  %v481 = vpop.permute.xlu0 %480
  %482 = vrot.lane.b32.xlu0 %v55, 113
  %v483 = vpop.permute.xlu0 %482
  %484 = vrot.lane.b32.xlu0 %v52, 113
  %v485 = vpop.permute.xlu0 %484
  %486 = vrot.lane.b32.xlu0 %v56, 113
  %v487 = vpop.permute.xlu0 %486
  %488 = vrot.lane.b32.xlu0 %v53, 113
  %v489 = vpop.permute.xlu0 %488
  %490 = vrot.lane.b32.xlu0 %v57, 113
  %v491 = vpop.permute.xlu0 %490
  %492 = vrot.lane.b32.xlu0 %v54, 113
  %v493 = vpop.permute.xlu0 %492
  %494 = vrot.lane.b32.xlu0 %v58, 113
  %v495 = vpop.permute.xlu0 %494
  %vm496 = vcmp.lt.s32.totalorder %v96, 113
  %v497 = vsel %vm496, %v489, %v493
  %v498 = vsel %vm496, %v491, %v495
  %v499 = vsel %vm496, %v485, %v489
  %v500 = vsel %vm496, %v487, %v491
  %v501 = vsel %vm496, %v481, %v485
  %v502 = vsel %vm496, %v483, %v487
  %v503 = vsel %vm496, %v493, %v481
  %v504 = vsel %vm496, %v495, %v483
  %s505 = scalar_lea.vmem %s1, 6
  %v506 = vld [vmem:[%s505] ss:$8 sm:$0xf]
  %v508 = vlaneseq
  %v509 = vshrl.u32 %v508, 7
  %v510 = vsub.s32 0, %v509
  %v511 = vrot.slane %v506, %v510
  %v512 = vlaneseq
  %v513 = vshrl.u32 %v512, 7
  %v514 = vsub.s32 1, %v513
  %v515 = vrot.slane %v506, %v514
  %v516 = vlaneseq
  %v517 = vshrl.u32 %v516, 7
  %v518 = vsub.s32 2, %v517
  %v519 = vrot.slane %v506, %v518
  %v520 = vlaneseq
  %v521 = vshrl.u32 %v520, 7
  %v522 = vsub.s32 3, %v521
  %v523 = vrot.slane %v506, %v522
  %v528 = vmul.f32 %v501, %v511
  %v529 = vmul.f32 %v499, %v515
  %v530 = vmul.f32 %v497, %v519
  %v531 = vmul.f32 %v503, %v523
  %v532 = vmul.f32 %v502, %v511
  %v533 = vmul.f32 %v500, %v515
  %v534 = vmul.f32 %v498, %v519
  %v535 = vmul.f32 %v504, %v523
  %536 = vset.pattern.permute.xlu0 6
  %537 = vperm.xlu0 %536, %v59
  %v538 = vpop.permute.xlu0 %537
  %540 = vset.pattern.permute.xlu0 6
  %541 = vperm.xlu0 %540, %v60
  %v542 = vpop.permute.xlu0 %541
  %v544 = vmul.f32 %v528, %v538
  %v545 = vmul.f32 %v529, %v538
  %v546 = vmul.f32 %v530, %v538
  %v547 = vmul.f32 %v531, %v538
  %v548 = vmul.f32 %v532, %v542
  %v549 = vmul.f32 %v533, %v542
  %v550 = vmul.f32 %v534, %v542
  %v551 = vmul.f32 %v535, %v542
  %v552 = vadd.f32 %v472, %v544
  %v553 = vadd.f32 %v473, %v545
  %v554 = vadd.f32 %v474, %v546
  %v555 = vadd.f32 %v475, %v547
  %v556 = vadd.f32 %v476, %v548
  %v557 = vadd.f32 %v477, %v549
  %v558 = vadd.f32 %v478, %v550
  %v559 = vadd.f32 %v479, %v551
  %560 = vrot.lane.b32.xlu0 %v51, 112
  %v561 = vpop.permute.xlu0 %560
  %562 = vrot.lane.b32.xlu0 %v55, 112
  %v563 = vpop.permute.xlu0 %562
  %564 = vrot.lane.b32.xlu0 %v52, 112
  %v565 = vpop.permute.xlu0 %564
  %566 = vrot.lane.b32.xlu0 %v56, 112
  %v567 = vpop.permute.xlu0 %566
  %568 = vrot.lane.b32.xlu0 %v53, 112
  %v569 = vpop.permute.xlu0 %568
  %570 = vrot.lane.b32.xlu0 %v57, 112
  %v571 = vpop.permute.xlu0 %570
  %572 = vrot.lane.b32.xlu0 %v54, 112
  %v573 = vpop.permute.xlu0 %572
  %574 = vrot.lane.b32.xlu0 %v58, 112
  %v575 = vpop.permute.xlu0 %574
  %vm576 = vcmp.lt.s32.totalorder %v96, 112
  %v577 = vsel %vm576, %v569, %v573
  %v578 = vsel %vm576, %v571, %v575
  %v579 = vsel %vm576, %v565, %v569
  %v580 = vsel %vm576, %v567, %v571
  %v581 = vsel %vm576, %v561, %v565
  %v582 = vsel %vm576, %v563, %v567
  %v583 = vsel %vm576, %v573, %v561
  %v584 = vsel %vm576, %v575, %v563
  %s585 = scalar_lea.vmem %s1, 7
  %v586 = vld [vmem:[%s585] ss:$8 sm:$0xf]
  %v588 = vlaneseq
  %v589 = vshrl.u32 %v588, 7
  %v590 = vsub.s32 0, %v589
  %v591 = vrot.slane %v586, %v590
  %v592 = vlaneseq
  %v593 = vshrl.u32 %v592, 7
  %v594 = vsub.s32 1, %v593
  %v595 = vrot.slane %v586, %v594
  %v596 = vlaneseq
  %v597 = vshrl.u32 %v596, 7
  %v598 = vsub.s32 2, %v597
  %v599 = vrot.slane %v586, %v598
  %v600 = vlaneseq
  %v601 = vshrl.u32 %v600, 7
  %v602 = vsub.s32 3, %v601
  %v603 = vrot.slane %v586, %v602
  %v608 = vmul.f32 %v581, %v591
  %v609 = vmul.f32 %v579, %v595
  %v610 = vmul.f32 %v577, %v599
  %v611 = vmul.f32 %v583, %v603
  %v612 = vmul.f32 %v582, %v591
  %v613 = vmul.f32 %v580, %v595
  %v614 = vmul.f32 %v578, %v599
  %v615 = vmul.f32 %v584, %v603
  %616 = vset.pattern.permute.xlu0 7
  %617 = vperm.xlu0 %616, %v59
  %v618 = vpop.permute.xlu0 %617
  %620 = vset.pattern.permute.xlu0 7
  %621 = vperm.xlu0 %620, %v60
  %v622 = vpop.permute.xlu0 %621
  %v624 = vmul.f32 %v608, %v618
  %v625 = vmul.f32 %v609, %v618
  %v626 = vmul.f32 %v610, %v618
  %v627 = vmul.f32 %v611, %v618
  %v628 = vmul.f32 %v612, %v622
  %v629 = vmul.f32 %v613, %v622
  %v630 = vmul.f32 %v614, %v622
  %v631 = vmul.f32 %v615, %v622
  %v632 = vadd.f32 %v552, %v624
  %v633 = vadd.f32 %v553, %v625
  %v634 = vadd.f32 %v554, %v626
  %v635 = vadd.f32 %v555, %v627
  %v636 = vadd.f32 %v556, %v628
  %v637 = vadd.f32 %v557, %v629
  %v638 = vadd.f32 %v558, %v630
  %v639 = vadd.f32 %v559, %v631
  %640 = vrot.lane.b32.xlu0 %v51, 111
  %v641 = vpop.permute.xlu0 %640
  %642 = vrot.lane.b32.xlu0 %v55, 111
  %v643 = vpop.permute.xlu0 %642
  %644 = vrot.lane.b32.xlu0 %v52, 111
  %v645 = vpop.permute.xlu0 %644
  %646 = vrot.lane.b32.xlu0 %v56, 111
  %v647 = vpop.permute.xlu0 %646
  %648 = vrot.lane.b32.xlu0 %v53, 111
  %v649 = vpop.permute.xlu0 %648
  %650 = vrot.lane.b32.xlu0 %v57, 111
  %v651 = vpop.permute.xlu0 %650
  %652 = vrot.lane.b32.xlu0 %v54, 111
  %v653 = vpop.permute.xlu0 %652
  %654 = vrot.lane.b32.xlu0 %v58, 111
  %v655 = vpop.permute.xlu0 %654
  %vm656 = vcmp.lt.s32.totalorder %v96, 111
  %v657 = vsel %vm656, %v649, %v653
  %v658 = vsel %vm656, %v651, %v655
  %v659 = vsel %vm656, %v645, %v649
  %v660 = vsel %vm656, %v647, %v651
  %v661 = vsel %vm656, %v641, %v645
  %v662 = vsel %vm656, %v643, %v647
  %v663 = vsel %vm656, %v653, %v641
  %v664 = vsel %vm656, %v655, %v643
  %s665 = scalar_lea.vmem %s1, 32
  %v666 = vld [vmem:[%s665] ss:$8 sm:$0xf]
  %v668 = vlaneseq
  %v669 = vshrl.u32 %v668, 7
  %v670 = vsub.s32 0, %v669
  %v671 = vrot.slane %v666, %v670
  %v672 = vlaneseq
  %v673 = vshrl.u32 %v672, 7
  %v674 = vsub.s32 1, %v673
  %v675 = vrot.slane %v666, %v674
  %v676 = vlaneseq
  %v677 = vshrl.u32 %v676, 7
  %v678 = vsub.s32 2, %v677
  %v679 = vrot.slane %v666, %v678
  %v680 = vlaneseq
  %v681 = vshrl.u32 %v680, 7
  %v682 = vsub.s32 3, %v681
  %v683 = vrot.slane %v666, %v682
  %v688 = vmul.f32 %v661, %v671
  %v689 = vmul.f32 %v659, %v675
  %v690 = vmul.f32 %v657, %v679
  %v691 = vmul.f32 %v663, %v683
  %v692 = vmul.f32 %v662, %v671
  %v693 = vmul.f32 %v660, %v675
  %v694 = vmul.f32 %v658, %v679
  %v695 = vmul.f32 %v664, %v683
  %696 = vset.pattern.permute.xlu0 8
  %697 = vperm.xlu0 %696, %v59
  %v698 = vpop.permute.xlu0 %697
  %700 = vset.pattern.permute.xlu0 8
  %701 = vperm.xlu0 %700, %v60
  %v702 = vpop.permute.xlu0 %701
  %v704 = vmul.f32 %v688, %v698
  %v705 = vmul.f32 %v689, %v698
  %v706 = vmul.f32 %v690, %v698
  %v707 = vmul.f32 %v691, %v698
  %v708 = vmul.f32 %v692, %v702
  %v709 = vmul.f32 %v693, %v702
  %v710 = vmul.f32 %v694, %v702
  %v711 = vmul.f32 %v695, %v702
  %v712 = vadd.f32 %v632, %v704
  %v713 = vadd.f32 %v633, %v705
  %v714 = vadd.f32 %v634, %v706
  %v715 = vadd.f32 %v635, %v707
  %v716 = vadd.f32 %v636, %v708
  %v717 = vadd.f32 %v637, %v709
  %v718 = vadd.f32 %v638, %v710
  %v719 = vadd.f32 %v639, %v711
  %720 = vset.pattern.permute.xlu0 9
  %721 = vperm.xlu0 %720, %v59
  %v722 = vpop.permute.xlu0 %721
  %724 = vset.pattern.permute.xlu0 9
  %725 = vperm.xlu0 %724, %v60
  %v726 = vpop.permute.xlu0 %725
  %v728 = vadd.f32 %v712, %v722
  %v729 = vadd.f32 %v713, %v722
  %v730 = vadd.f32 %v714, %v722
  %v731 = vadd.f32 %v715, %v722
  %v732 = vadd.f32 %v716, %v726
  %v733 = vadd.f32 %v717, %v726
  %v734 = vadd.f32 %v718, %v726
  %v735 = vadd.f32 %v719, %v726
  %v736 = vmax.f32 %v728, 0.0
  %v737 = vmax.f32 %v729, 0.0
  %v738 = vmax.f32 %v730, 0.0
  %v739 = vmax.f32 %v731, 0.0
  %v740 = vmax.f32 %v732, 0.0
  %v741 = vmax.f32 %v733, 0.0
  %v742 = vmax.f32 %v734, 0.0
  %v743 = vmax.f32 %v735, 0.0
  %v744 = vld [vmem:[%s5] sm:$0xf]
  %v745 = vld [vmem:[%s5 + $0x4] sm:$0xf]
  %v746 = vpack.c.bf16 %v740, %v736
  %v747 = vpack.c.bf16 %v741, %v737
  %v748 = vpack.c.bf16 %v742, %v738
  %v749 = vpack.c.bf16 %v743, %v739
  %v752 = vunpack.c.l.b16 %v744
  %v753 = vunpack.c.l.b16 %v745
  %v754 = vpack.c.b16 %v753, %v752
  %vm755 = vcmask 130048
  %v757 = vsel %vm755, %v754, 0
  %759 = vmatprep.subr.bf16.mxu0 %v747
  %760 = vmatpush1.bf16.msra.mxu0 %v746
  %761 = vmatprep.subr.bf16.mxu0 0
  %762 = vmatpush1.bf16.msra.mxu0 0
  %763 = vmatprep.subr.bf16.mxu0 0
  %764 = vmatpush1.bf16.msra.mxu0 0
  %765 = vmatprep.subr.bf16.mxu0 0
  %766 = vmatpush1.bf16.msra.mxu0 0
  %767 = vmatprep.subr.bf16.mxu0 0
  %768 = vmatpush1.bf16.msra.mxu0 0
  %769 = vmatprep.subr.bf16.mxu0 0
  %770 = vmatpush1.bf16.msra.mxu0 0
  %771 = vmatprep.subr.bf16.mxu0 0
  %772 = vmatpush1.bf16.msra.mxu0 0
  %773 = vmatprep.subr.bf16.mxu0 0
  %774 = vmatpush1.bf16.msra.mxu0 0
  %775 = vmatprep.subr.bf16.mxu0 0
  %776 = vmatpush1.bf16.msra.mxu0 0
  %777 = vmatprep.subr.bf16.mxu0 0
  %778 = vmatpush1.bf16.msra.mxu0 0
  %779 = vmatprep.subr.bf16.mxu0 0
  %780 = vmatpush1.bf16.msra.mxu0 0
  %781 = vmatprep.subr.bf16.mxu0 0
  %782 = vmatpush1.bf16.msra.mxu0 0
  %783 = vmatprep.subr.bf16.mxu0 0
  %784 = vmatpush1.bf16.msra.mxu0 0
  %785 = vmatprep.subr.bf16.mxu0 0
  %786 = vmatpush1.bf16.msra.mxu0 0
  %787 = vmatprep.subr.bf16.mxu0 0
  %788 = vmatpush1.bf16.msra.mxu0 0
  %789 = vmatprep.subr.bf16.mxu0 0
  %790 = vmatpush1.bf16.msra.mxu0 0
  %791 = vmatprep.mubr.bf16.mxu0 0
  %792 = vmatmul.mubr.bf16.gmra.mrb[0].mxu0 %v757
  %v793 = vpop.f32.mrb[0].mxu0
  %v794 = vadd.f32 0.0, %v793
  %v795 = vpop.f32.mrb[0].mxu0
  %v796 = vadd.f32 0.0, %v795
  %v797 = vpop.f32.mrb[0].mxu0
  %v798 = vadd.f32 0.0, %v797
  %v799 = vpop.f32.mrb[0].mxu0
  %v800 = vadd.f32 0.0, %v799
  %801 = vdwg.mxu0
  %802 = vmatprep.subr.bf16.mxu0 %v749
  %803 = vmatpush1.bf16.msra.mxu0 %v748
  %804 = vmatprep.subr.bf16.mxu0 0
  %805 = vmatpush1.bf16.msra.mxu0 0
  %806 = vmatprep.subr.bf16.mxu0 0
  %807 = vmatpush1.bf16.msra.mxu0 0
  %808 = vmatprep.subr.bf16.mxu0 0
  %809 = vmatpush1.bf16.msra.mxu0 0
  %810 = vmatprep.subr.bf16.mxu0 0
  %811 = vmatpush1.bf16.msra.mxu0 0
  %812 = vmatprep.subr.bf16.mxu0 0
  %813 = vmatpush1.bf16.msra.mxu0 0
  %814 = vmatprep.subr.bf16.mxu0 0
  %815 = vmatpush1.bf16.msra.mxu0 0
  %816 = vmatprep.subr.bf16.mxu0 0
  %817 = vmatpush1.bf16.msra.mxu0 0
  %818 = vmatprep.subr.bf16.mxu0 0
  %819 = vmatpush1.bf16.msra.mxu0 0
  %820 = vmatprep.subr.bf16.mxu0 0
  %821 = vmatpush1.bf16.msra.mxu0 0
  %822 = vmatprep.subr.bf16.mxu0 0
  %823 = vmatpush1.bf16.msra.mxu0 0
  %824 = vmatprep.subr.bf16.mxu0 0
  %825 = vmatpush1.bf16.msra.mxu0 0
  %826 = vmatprep.subr.bf16.mxu0 0
  %827 = vmatpush1.bf16.msra.mxu0 0
  %828 = vmatprep.subr.bf16.mxu0 0
  %829 = vmatpush1.bf16.msra.mxu0 0
  %830 = vmatprep.subr.bf16.mxu0 0
  %831 = vmatpush1.bf16.msra.mxu0 0
  %832 = vmatprep.subr.bf16.mxu0 0
  %833 = vmatpush1.bf16.msra.mxu0 0
  %834 = vmatprep.mubr.bf16.mxu0 0
  %835 = vmatmul.mubr.bf16.gmra.mrb[0].mxu0 %v757
  %v836 = vpop.f32.mrb[0].mxu0
  %v837 = vadd.f32 0.0, %v836
  %v838 = vpop.f32.mrb[0].mxu0
  %v839 = vadd.f32 0.0, %v838
  %v840 = vpop.f32.mrb[0].mxu0
  %v841 = vadd.f32 0.0, %v840
  %v842 = vpop.f32.mrb[0].mxu0
  %v843 = vadd.f32 0.0, %v842
  %844 = vdwg.mxu0
  %v845 = vld [vmem:[%s2] sm:$0xf]
  %v846 = vld [vmem:[%s2 + $0x4] sm:$0xf]
  %v847 = vld [vmem:[%s2 + $0x8] sm:$0xf]
  %v848 = vld [vmem:[%s2 + $0xc] sm:$0xf]
  %v849 = vld [vmem:[%s2 + $0x10] sm:$0xf]
  %v850 = vld [vmem:[%s2 + $0x14] sm:$0xf]
  %v851 = vld [vmem:[%s2 + $0x18] sm:$0xf]
  %v852 = vld [vmem:[%s2 + $0x1c] sm:$0xf]
  %v853 = vld [vmem:[%s2 + $0x20] sm:$0xf]
  %v854 = vld [vmem:[%s2 + $0x24] sm:$0xf]
  %v855 = vld [vmem:[%s2 + $0x28] sm:$0xf]
  %v856 = vld [vmem:[%s2 + $0x2c] sm:$0xf]
  %v857 = vld [vmem:[%s2 + $0x30] sm:$0xf]
  %v858 = vld [vmem:[%s2 + $0x34] sm:$0xf]
  %v859 = vld [vmem:[%s2 + $0x38] sm:$0xf]
  %v860 = vld [vmem:[%s2 + $0x3c] sm:$0xf]
  %v861 = vld [vmem:[%s2 + $0x40] sm:$0xf]
  %v862 = vld [vmem:[%s2 + $0x44] sm:$0xf]
  %v863 = vld [vmem:[%s2 + $0x48] sm:$0xf]
  %v864 = vld [vmem:[%s2 + $0x4c] sm:$0xf]
  %v865 = vld [vmem:[%s2 + $0x50] sm:$0xf]
  %v866 = vld [vmem:[%s2 + $0x54] sm:$0xf]
  %v867 = vld [vmem:[%s2 + $0x58] sm:$0xf]
  %v868 = vld [vmem:[%s2 + $0x5c] sm:$0xf]
  %v869 = vld [vmem:[%s2 + $0x60] sm:$0xf]
  %v870 = vld [vmem:[%s2 + $0x64] sm:$0xf]
  %v871 = vld [vmem:[%s2 + $0x68] sm:$0xf]
  %v872 = vld [vmem:[%s2 + $0x6c] sm:$0xf]
  %v873 = vld [vmem:[%s2 + $0x70] sm:$0xf]
  %v874 = vld [vmem:[%s2 + $0x74] sm:$0xf]
  %v875 = vld [vmem:[%s2 + $0x78] sm:$0xf]
  %v876 = vld [vmem:[%s2 + $0x7c] sm:$0xf]
  %v877 = vld [vmem:[%s2 + $0x80] sm:$0xf]
  %v878 = vld [vmem:[%s2 + $0x84] sm:$0xf]
  %v879 = vld [vmem:[%s2 + $0x88] sm:$0xf]
  %v880 = vld [vmem:[%s2 + $0x8c] sm:$0xf]
  %v881 = vld [vmem:[%s2 + $0x90] sm:$0xf]
  %v882 = vld [vmem:[%s2 + $0x94] sm:$0xf]
  %v883 = vld [vmem:[%s2 + $0x98] sm:$0xf]
  %v884 = vld [vmem:[%s2 + $0x9c] sm:$0xf]
  %v885 = vld [vmem:[%s2 + $0xa0] sm:$0xf]
  %v886 = vld [vmem:[%s2 + $0xa4] sm:$0xf]
  %v887 = vld [vmem:[%s2 + $0xa8] sm:$0xf]
  %v888 = vld [vmem:[%s2 + $0xac] sm:$0xf]
  %v889 = vld [vmem:[%s2 + $0xb0] sm:$0xf]
  %v890 = vld [vmem:[%s2 + $0xb4] sm:$0xf]
  %v891 = vld [vmem:[%s2 + $0xb8] sm:$0xf]
  %v892 = vld [vmem:[%s2 + $0xbc] sm:$0xf]
  %v893 = vld [vmem:[%s2 + $0xc0] sm:$0xf]
  %v894 = vld [vmem:[%s2 + $0xc4] sm:$0xf]
  %v895 = vld [vmem:[%s2 + $0xc8] sm:$0xf]
  %v896 = vld [vmem:[%s2 + $0xcc] sm:$0xf]
  %v897 = vld [vmem:[%s2 + $0xd0] sm:$0xf]
  %v898 = vld [vmem:[%s2 + $0xd4] sm:$0xf]
  %v899 = vld [vmem:[%s2 + $0xd8] sm:$0xf]
  %v900 = vld [vmem:[%s2 + $0xdc] sm:$0xf]
  %v901 = vld [vmem:[%s2 + $0xe0] sm:$0xf]
  %v902 = vld [vmem:[%s2 + $0xe4] sm:$0xf]
  %v903 = vld [vmem:[%s2 + $0xe8] sm:$0xf]
  %v904 = vld [vmem:[%s2 + $0xec] sm:$0xf]
  %v905 = vld [vmem:[%s2 + $0xf0] sm:$0xf]
  %v906 = vld [vmem:[%s2 + $0xf4] sm:$0xf]
  %v907 = vld [vmem:[%s2 + $0xf8] sm:$0xf]
  %v908 = vld [vmem:[%s2 + $0xfc] sm:$0xf]
  %v909 = vld [vmem:[%s3] sm:$0xff]
  %v910 = vld [vmem:[%s3 + $0x8] sm:$0xff]
  %v911 = vld [vmem:[%s4] sm:$0xff]
  %v912 = vld [vmem:[%s4 + $0x8] sm:$0xff]
  %v913 = vld [vmem:[%s4 + $0x10] sm:$0xff]
  %v914 = vld [vmem:[%s4 + $0x18] sm:$0xff]
  %v915 = vld [vmem:[%s4 + $0x20] sm:$0x3]
  %v916 = vadd.f32 %v794, %v796
  %v917 = vadd.f32 %v916, %v798
  %v918 = vadd.f32 %v917, %v800
  %919 = vadd.xlane.f32.xlu0 %v918
  %v920 = vpop.xlane.xlu0 %919
  %v921 = vrot.slane %v920, 4
  %v922 = vadd.f32 %v920, %v921
  %v923 = vrot.slane %v922, 2
  %v924 = vadd.f32 %v922, %v923
  %v925 = vrot.slane %v924, 1
  %v926 = vadd.f32 %v924, %v925
  %s927 = vtos %v926
  %v928 = vmul.f32 %v794, %v794
  %v929 = vmul.f32 %v796, %v796
  %v930 = vmul.f32 %v798, %v798
  %v931 = vmul.f32 %v800, %v800
  %v932 = vadd.f32 %v928, %v929
  %v933 = vadd.f32 %v932, %v930
  %v934 = vadd.f32 %v933, %v931
  %935 = vadd.xlane.f32.xlu0 %v934
  %v936 = vpop.xlane.xlu0 %935
  %v937 = vrot.slane %v936, 4
  %v938 = vadd.f32 %v936, %v937
  %v939 = vrot.slane %v938, 2
  %v940 = vadd.f32 %v938, %v939
  %v941 = vrot.slane %v940, 1
  %v942 = vadd.f32 %v940, %v941
  %s943 = vtos %v942
  %v944 = vrcp.pop 4096.0
  %s945 = vtos %v944
  %s946 = smul.f32 %s927, %s945
  %v947 = vrcp.pop 4096.0
  %s948 = vtos %v947
  %s949 = smul.f32 %s943, %s948
  %s950 = smul.f32 %s946, %s946
  %s951 = ssub.f32 %s949, %s950
  %v952 = vstv %s946
  %s953 = sadd.f32 %s951, 1e-05
  %v954 = vstv %s953
  %v955 = vrsqrt.pop %v954
  %s956 = vtos %v955
  %v957 = vstv %s956
  %v958 = vadd.f32 %v837, %v839
  %v959 = vadd.f32 %v958, %v841
  %v960 = vadd.f32 %v959, %v843
  %961 = vadd.xlane.f32.xlu0 %v960
  %v962 = vpop.xlane.xlu0 %961
  %v963 = vrot.slane %v962, 4
  %v964 = vadd.f32 %v962, %v963
  %v965 = vrot.slane %v964, 2
  %v966 = vadd.f32 %v964, %v965
  %v967 = vrot.slane %v966, 1
  %v968 = vadd.f32 %v966, %v967
  %s969 = vtos %v968
  %v970 = vmul.f32 %v837, %v837
  %v971 = vmul.f32 %v839, %v839
  %v972 = vmul.f32 %v841, %v841
  %v973 = vmul.f32 %v843, %v843
  %v974 = vadd.f32 %v970, %v971
  %v975 = vadd.f32 %v974, %v972
  %v976 = vadd.f32 %v975, %v973
  %977 = vadd.xlane.f32.xlu0 %v976
  %v978 = vpop.xlane.xlu0 %977
  %v979 = vrot.slane %v978, 4
  %v980 = vadd.f32 %v978, %v979
  %v981 = vrot.slane %v980, 2
  %v982 = vadd.f32 %v980, %v981
  %v983 = vrot.slane %v982, 1
  %v984 = vadd.f32 %v982, %v983
  %s985 = vtos %v984
  %v986 = vrcp.pop 4096.0
  %s987 = vtos %v986
  %s988 = smul.f32 %s969, %s987
  %v989 = vrcp.pop 4096.0
  %s990 = vtos %v989
  %s991 = smul.f32 %s985, %s990
  %s992 = smul.f32 %s988, %s988
  %s993 = ssub.f32 %s991, %s992
  %v994 = vstv %s988
  %s995 = sadd.f32 %s993, 1e-05
  %v996 = vstv %s995
  %v997 = vrsqrt.pop %v996
  %s998 = vtos %v997
  %v999 = vstv %s998
  %v1000 = vlaneseq
  %v1001 = vshrl.u32 %v1000, 7
  %v1002 = vsub.s32 0, %v1001
  %v1003 = vlaneseq
  %v1004 = vshrl.u32 %v1003, 7
  %v1005 = vsub.s32 0, %v1004
  %v1006 = vsub.f32 %v794, %v952
  %v1007 = vsub.f32 %v796, %v952
  %v1008 = vsub.f32 %v837, %v994
  %v1009 = vsub.f32 %v839, %v994
  %v1010 = vsub.f32 %v798, %v952
  %v1011 = vsub.f32 %v800, %v952
  %v1012 = vsub.f32 %v841, %v994
  %v1013 = vsub.f32 %v843, %v994
  %v1014 = vlaneseq
  %v1015 = vshrl.u32 %v1014, 7
  %v1016 = vsub.s32 0, %v1015
  %v1017 = vlaneseq
  %v1018 = vshrl.u32 %v1017, 7
  %v1019 = vsub.s32 0, %v1018
  %v1020 = vmul.f32 %v1006, %v957
  %v1021 = vmul.f32 %v1007, %v957
  %v1022 = vmul.f32 %v1008, %v999
  %v1023 = vmul.f32 %v1009, %v999
  %v1024 = vmul.f32 %v1010, %v957
  %v1025 = vmul.f32 %v1011, %v957
  %v1026 = vmul.f32 %v1012, %v999
  %v1027 = vmul.f32 %v1013, %v999
  %v1028 = vpack.c.bf16 %v1024, %v1020
  %v1029 = vpack.c.bf16 %v1025, %v1021
  %v1030 = vpack.c.bf16 %v1026, %v1022
  %v1031 = vpack.c.bf16 %v1027, %v1023
  %v1032 = vld [vmem:[%s6] sm:$0xf]
  %v1033 = vld [vmem:[%s6 + $0x4] sm:$0xf]
  %v1034 = vld [vmem:[%s6 + $0x8] sm:$0xf]
  %v1035 = vld [vmem:[%s6 + $0xc] sm:$0xf]
  %v1036 = vld [vmem:[%s6 + $0x10] sm:$0x1]
  %1038 = vset.pattern.permute.xlu0 11
  %1039 = vperm.xlu0 %1038, %v911
  %v1040 = vpop.permute.xlu0 %1039
  %1043 = vset.pattern.permute.xlu0 11
  %1044 = vperm.xlu0 %1043, %v912
  %v1045 = vpop.permute.xlu0 %1044
  %1048 = vset.pattern.permute.xlu0 11
  %1049 = vperm.xlu0 %1048, %v913
  %v1050 = vpop.permute.xlu0 %1049
  %1053 = vset.pattern.permute.xlu0 11
  %1054 = vperm.xlu0 %1053, %v914
  %v1055 = vpop.permute.xlu0 %1054
  %1058 = vset.pattern.permute.xlu0 11
  %1059 = vperm.xlu0 %1058, %v915
  %v1060 = vpop.permute.xlu0 %1059
  %v1067 = vunpack.c.l.b16 %v1032
  %v1068 = vunpack.c.l.b16 %v1033
  %v1069 = vunpack.c.l.b16 %v1034
  %v1070 = vunpack.c.l.b16 %v1035
  %v1071 = vunpack.c.l.b16 %v1036
  %v1072 = vpack.c.b16 %v1068, %v1067
  %v1073 = vpack.c.b16 %v1070, %v1069
  %v1074 = vpack.c.b16 %v1071, %v1071
  %v1076 = vsel %vm755, %v1072, 0
  %v1079 = vsel %vm755, %v1073, 0
  %v1082 = vsel %vm755, %v1074, 0
  %1084 = vmatprep.subr.bf16.mxu0 %v1029
  %1085 = vmatpush1.bf16.msra.mxu0 %v1028
  %1086 = vmatprep.subr.bf16.mxu0 0
  %1087 = vmatpush1.bf16.msra.mxu0 0
  %1088 = vmatprep.subr.bf16.mxu0 0
  %1089 = vmatpush1.bf16.msra.mxu0 0
  %1090 = vmatprep.subr.bf16.mxu0 0
  %1091 = vmatpush1.bf16.msra.mxu0 0
  %1092 = vmatprep.subr.bf16.mxu0 0
  %1093 = vmatpush1.bf16.msra.mxu0 0
  %1094 = vmatprep.subr.bf16.mxu0 0
  %1095 = vmatpush1.bf16.msra.mxu0 0
  %1096 = vmatprep.subr.bf16.mxu0 0
  %1097 = vmatpush1.bf16.msra.mxu0 0
  %1098 = vmatprep.subr.bf16.mxu0 0
  %1099 = vmatpush1.bf16.msra.mxu0 0
  %1100 = vmatprep.subr.bf16.mxu0 0
  %1101 = vmatpush1.bf16.msra.mxu0 0
  %1102 = vmatprep.subr.bf16.mxu0 0
  %1103 = vmatpush1.bf16.msra.mxu0 0
  %1104 = vmatprep.subr.bf16.mxu0 0
  %1105 = vmatpush1.bf16.msra.mxu0 0
  %1106 = vmatprep.subr.bf16.mxu0 0
  %1107 = vmatpush1.bf16.msra.mxu0 0
  %1108 = vmatprep.subr.bf16.mxu0 0
  %1109 = vmatpush1.bf16.msra.mxu0 0
  %1110 = vmatprep.subr.bf16.mxu0 0
  %1111 = vmatpush1.bf16.msra.mxu0 0
  %1112 = vmatprep.subr.bf16.mxu0 0
  %1113 = vmatpush1.bf16.msra.mxu0 0
  %1114 = vmatprep.subr.bf16.mxu0 0
  %1115 = vmatpush1.bf16.msra.mxu0 0
  %1116 = vmatprep.mubr.bf16.mxu0 0
  %1117 = vmatmul.mubr.bf16.gmra.mrb[0].mxu0 %v1076
  %v1118 = vpop.f32.mrb[0].mxu0
  %v1119 = vadd.f32 %v1040, %v1118
  %v1120 = vpop.f32.mrb[0].mxu0
  %v1121 = vadd.f32 %v1040, %v1120
  %v1122 = vpop.f32.mrb[0].mxu0
  %v1123 = vadd.f32 %v1045, %v1122
  %v1124 = vpop.f32.mrb[0].mxu0
  %v1125 = vadd.f32 %v1045, %v1124
  %1126 = vmatprep.mubr.bf16.mxu0 0
  %1127 = vmatmul.mubr.bf16.gmra.mrb[0].mxu0 %v1079
  %v1128 = vpop.f32.mrb[0].mxu0
  %v1129 = vadd.f32 %v1050, %v1128
  %v1130 = vpop.f32.mrb[0].mxu0
  %v1131 = vadd.f32 %v1050, %v1130
  %v1132 = vpop.f32.mrb[0].mxu0
  %v1133 = vadd.f32 %v1055, %v1132
  %v1134 = vpop.f32.mrb[0].mxu0
  %v1135 = vadd.f32 %v1055, %v1134
  %1136 = vmatprep.mubr.bf16.mxu0 0
  %1137 = vmatmul.mubr.bf16.gmra.mrb[0].mxu0 %v1082
  %v1138 = vpop.f32.mrb[0].mxu0
  %v1139 = vadd.f32 %v1060, %v1138
  %v1140 = vpop.f32.mrb[0].mxu0
  %v1141 = vadd.f32 %v1060, %v1140
  %v1142 = vpop.f32.mrb[0].mxu0
  %v1143 = vpop.f32.mrb[0].mxu0
  %1144 = vdwg.mxu0
  %1145 = vmatprep.subr.bf16.mxu0 %v1031
  %1146 = vmatpush1.bf16.msra.mxu0 %v1030
  %1147 = vmatprep.subr.bf16.mxu0 0
  %1148 = vmatpush1.bf16.msra.mxu0 0
  %1149 = vmatprep.subr.bf16.mxu0 0
  %1150 = vmatpush1.bf16.msra.mxu0 0
  %1151 = vmatprep.subr.bf16.mxu0 0
  %1152 = vmatpush1.bf16.msra.mxu0 0
  %1153 = vmatprep.subr.bf16.mxu0 0
  %1154 = vmatpush1.bf16.msra.mxu0 0
  %1155 = vmatprep.subr.bf16.mxu0 0
  %1156 = vmatpush1.bf16.msra.mxu0 0
  %1157 = vmatprep.subr.bf16.mxu0 0
  %1158 = vmatpush1.bf16.msra.mxu0 0
  %1159 = vmatprep.subr.bf16.mxu0 0
  %1160 = vmatpush1.bf16.msra.mxu0 0
  %1161 = vmatprep.subr.bf16.mxu0 0
  %1162 = vmatpush1.bf16.msra.mxu0 0
  %1163 = vmatprep.subr.bf16.mxu0 0
  %1164 = vmatpush1.bf16.msra.mxu0 0
  %1165 = vmatprep.subr.bf16.mxu0 0
  %1166 = vmatpush1.bf16.msra.mxu0 0
  %1167 = vmatprep.subr.bf16.mxu0 0
  %1168 = vmatpush1.bf16.msra.mxu0 0
  %1169 = vmatprep.subr.bf16.mxu0 0
  %1170 = vmatpush1.bf16.msra.mxu0 0
  %1171 = vmatprep.subr.bf16.mxu0 0
  %1172 = vmatpush1.bf16.msra.mxu0 0
  %1173 = vmatprep.subr.bf16.mxu0 0
  %1174 = vmatpush1.bf16.msra.mxu0 0
  %1175 = vmatprep.subr.bf16.mxu0 0
  %1176 = vmatpush1.bf16.msra.mxu0 0
  %1177 = vmatprep.mubr.bf16.mxu0 0
  %1178 = vmatmul.mubr.bf16.gmra.mrb[0].mxu0 %v1076
  %v1179 = vpop.f32.mrb[0].mxu0
  %v1180 = vadd.f32 %v1040, %v1179
  %v1181 = vpop.f32.mrb[0].mxu0
  %v1182 = vadd.f32 %v1040, %v1181
  %v1183 = vpop.f32.mrb[0].mxu0
  %v1184 = vadd.f32 %v1045, %v1183
  %v1185 = vpop.f32.mrb[0].mxu0
  %v1186 = vadd.f32 %v1045, %v1185
  %1187 = vmatprep.mubr.bf16.mxu0 0
  %1188 = vmatmul.mubr.bf16.gmra.mrb[0].mxu0 %v1079
  %v1189 = vpop.f32.mrb[0].mxu0
  %v1190 = vadd.f32 %v1050, %v1189
  %v1191 = vpop.f32.mrb[0].mxu0
  %v1192 = vadd.f32 %v1050, %v1191
  %v1193 = vpop.f32.mrb[0].mxu0
  %v1194 = vadd.f32 %v1055, %v1193
  %v1195 = vpop.f32.mrb[0].mxu0
  %v1196 = vadd.f32 %v1055, %v1195
  %1197 = vmatprep.mubr.bf16.mxu0 0
  %1198 = vmatmul.mubr.bf16.gmra.mrb[0].mxu0 %v1082
  %v1199 = vpop.f32.mrb[0].mxu0
  %v1200 = vadd.f32 %v1060, %v1199
  %v1201 = vpop.f32.mrb[0].mxu0
  %v1202 = vadd.f32 %v1060, %v1201
  %v1203 = vpop.f32.mrb[0].mxu0
  %v1204 = vpop.f32.mrb[0].mxu0
  %1205 = vdwg.mxu0
  %vm1206 = vcmask 1041409
  %v1207 = vsel %vm1206, %v1139, -inf
  %v1208 = vsel %vm1206, %v1141, -inf
  %v1209 = vsel %vm1206, %v1200, -inf
  %v1210 = vsel %vm1206, %v1202, -inf
  %v1211 = vmax.f32 %v1207, %v1208
  %v1212 = vmax.f32 %v1209, %v1210
  %v1213 = vmax.f32 %v1211, %v1212
  %1214 = vmax.xlane.f32.xlu0 %v1213
  %v1215 = vpop.xlane.xlu0 %1214
  %v1216 = vrot.slane %v1215, 4
  %v1217 = vmax.f32 %v1215, %v1216
  %v1218 = vrot.slane %v1217, 2
  %v1219 = vmax.f32 %v1217, %v1218
  %v1220 = vrot.slane %v1219, 1
  %v1221 = vmax.f32 %v1219, %v1220
  %s1222 = vtos %v1221
  %v1223 = vstv %s1222
  %v1224 = vsub.f32 %v1139, %v1223
  %v1225 = vsub.f32 %v1141, %v1223
  %v1226 = vsub.f32 %v1200, %v1223
  %v1227 = vsub.f32 %v1202, %v1223
  %v1228 = vmul.f32 %v1224, 1.442695
  %v1229 = vpow.pop %v1228
  %v1230 = vmul.f32 %v1225, 1.442695
  %v1231 = vpow.pop %v1230
  %v1232 = vmul.f32 %v1226, 1.442695
  %v1233 = vpow.pop %v1232
  %v1234 = vmul.f32 %v1227, 1.442695
  %v1235 = vpow.pop %v1234
  %v1236 = vlaneseq
  %v1237 = vshrl.u32 %v1236, 7
  %v1238 = vsub.s32 1, %v1237
  %v1239 = vrot.slane %v1229, %v1238
  %v1240 = vlaneseq
  %v1241 = vshrl.u32 %v1240, 7
  %v1242 = vsub.s32 1, %v1241
  %v1243 = vrot.slane %v1231, %v1242
  %v1244 = vlaneseq
  %v1245 = vshrl.u32 %v1244, 7
  %v1246 = vsub.s32 1, %v1245
  %v1247 = vrot.slane %v1233, %v1246
  %v1248 = vlaneseq
  %v1249 = vshrl.u32 %v1248, 7
  %v1250 = vsub.s32 1, %v1249
  %v1251 = vrot.slane %v1235, %v1250
  %v1252 = vmul.f32 %v1129, %v1239
  %v1253 = vmul.f32 %v1131, %v1243
  %v1254 = vmul.f32 %v1190, %v1247
  %v1255 = vmul.f32 %v1192, %v1251
  %v1256 = vmul.f32 %v1133, %v1239
  %v1257 = vmul.f32 %v1135, %v1243
  %v1258 = vmul.f32 %v1194, %v1247
  %v1259 = vmul.f32 %v1196, %v1251
  %v1260 = vmul.f32 %v1139, %v1239
  %v1261 = vmul.f32 %v1141, %v1243
  %v1262 = vmul.f32 %v1200, %v1247
  %v1263 = vmul.f32 %v1202, %v1251
  %v1264 = vpack.c.bf16 %v1256, %v1252
  %v1265 = vpack.c.bf16 %v1257, %v1253
  %v1266 = vpack.c.bf16 %v1258, %v1254
  %v1267 = vpack.c.bf16 %v1259, %v1255
  %v1268 = vpack.c.bf16 %v1260, %v1260
  %v1269 = vpack.c.bf16 %v1261, %v1261
  %v1270 = vpack.c.bf16 %v1262, %v1262
  %v1271 = vpack.c.bf16 %v1263, %v1263
  %v1336 = vunpack.c.l.b16 %v845
  %v1337 = vunpack.c.l.b16 %v846
  %v1338 = vunpack.c.l.b16 %v847
  %v1339 = vunpack.c.l.b16 %v848
  %v1340 = vunpack.c.l.b16 %v849
  %v1341 = vunpack.c.l.b16 %v850
  %v1342 = vunpack.c.l.b16 %v851
  %v1343 = vunpack.c.l.b16 %v852
  %v1344 = vunpack.c.l.b16 %v853
  %v1345 = vunpack.c.l.b16 %v854
  %v1346 = vunpack.c.l.b16 %v855
  %v1347 = vunpack.c.l.b16 %v856
  %v1348 = vunpack.c.l.b16 %v857
  %v1349 = vunpack.c.l.b16 %v858
  %v1350 = vunpack.c.l.b16 %v859
  %v1351 = vunpack.c.l.b16 %v860
  %v1352 = vunpack.c.l.b16 %v861
  %v1353 = vunpack.c.l.b16 %v862
  %v1354 = vunpack.c.l.b16 %v863
  %v1355 = vunpack.c.l.b16 %v864
  %v1356 = vunpack.c.l.b16 %v865
  %v1357 = vunpack.c.l.b16 %v866
  %v1358 = vunpack.c.l.b16 %v867
  %v1359 = vunpack.c.l.b16 %v868
  %v1360 = vunpack.c.l.b16 %v869
  %v1361 = vunpack.c.l.b16 %v870
  %v1362 = vunpack.c.l.b16 %v871
  %v1363 = vunpack.c.l.b16 %v872
  %v1364 = vunpack.c.l.b16 %v873
  %v1365 = vunpack.c.l.b16 %v874
  %v1366 = vunpack.c.l.b16 %v875
  %v1367 = vunpack.c.l.b16 %v876
  %v1368 = vunpack.c.l.b16 %v877
  %v1369 = vunpack.c.l.b16 %v878
  %v1370 = vunpack.c.l.b16 %v879
  %v1371 = vunpack.c.l.b16 %v880
  %v1372 = vunpack.c.l.b16 %v881
  %v1373 = vunpack.c.l.b16 %v882
  %v1374 = vunpack.c.l.b16 %v883
  %v1375 = vunpack.c.l.b16 %v884
  %v1376 = vunpack.c.l.b16 %v885
  %v1377 = vunpack.c.l.b16 %v886
  %v1378 = vunpack.c.l.b16 %v887
  %v1379 = vunpack.c.l.b16 %v888
  %v1380 = vunpack.c.l.b16 %v889
  %v1381 = vunpack.c.l.b16 %v890
  %v1382 = vunpack.c.l.b16 %v891
  %v1383 = vunpack.c.l.b16 %v892
  %v1384 = vunpack.c.l.b16 %v893
  %v1385 = vunpack.c.l.b16 %v894
  %v1386 = vunpack.c.l.b16 %v895
  %v1387 = vunpack.c.l.b16 %v896
  %v1388 = vunpack.c.l.b16 %v897
  %v1389 = vunpack.c.l.b16 %v898
  %v1390 = vunpack.c.l.b16 %v899
  %v1391 = vunpack.c.l.b16 %v900
  %v1392 = vunpack.c.l.b16 %v901
  %v1393 = vunpack.c.l.b16 %v902
  %v1394 = vunpack.c.l.b16 %v903
  %v1395 = vunpack.c.l.b16 %v904
  %v1396 = vunpack.c.l.b16 %v905
  %v1397 = vunpack.c.l.b16 %v906
  %v1398 = vunpack.c.l.b16 %v907
  %v1399 = vunpack.c.l.b16 %v908
  %v1400 = vpack.c.b16 %v1337, %v1336
  %v1401 = vpack.c.b16 %v1339, %v1338
  %v1402 = vpack.c.b16 %v1341, %v1340
  %v1403 = vpack.c.b16 %v1343, %v1342
  %v1404 = vpack.c.b16 %v1345, %v1344
  %v1405 = vpack.c.b16 %v1347, %v1346
  %v1406 = vpack.c.b16 %v1349, %v1348
  %v1407 = vpack.c.b16 %v1351, %v1350
  %v1408 = vpack.c.b16 %v1353, %v1352
  %v1409 = vpack.c.b16 %v1355, %v1354
  %v1410 = vpack.c.b16 %v1357, %v1356
  %v1411 = vpack.c.b16 %v1359, %v1358
  %v1412 = vpack.c.b16 %v1361, %v1360
  %v1413 = vpack.c.b16 %v1363, %v1362
  %v1414 = vpack.c.b16 %v1365, %v1364
  %v1415 = vpack.c.b16 %v1367, %v1366
  %v1416 = vpack.c.b16 %v1369, %v1368
  %v1417 = vpack.c.b16 %v1371, %v1370
  %v1418 = vpack.c.b16 %v1373, %v1372
  %v1419 = vpack.c.b16 %v1375, %v1374
  %v1420 = vpack.c.b16 %v1377, %v1376
  %v1421 = vpack.c.b16 %v1379, %v1378
  %v1422 = vpack.c.b16 %v1381, %v1380
  %v1423 = vpack.c.b16 %v1383, %v1382
  %v1424 = vpack.c.b16 %v1385, %v1384
  %v1425 = vpack.c.b16 %v1387, %v1386
  %v1426 = vpack.c.b16 %v1389, %v1388
  %v1427 = vpack.c.b16 %v1391, %v1390
  %v1428 = vpack.c.b16 %v1393, %v1392
  %v1429 = vpack.c.b16 %v1395, %v1394
  %v1430 = vpack.c.b16 %v1397, %v1396
  %v1431 = vpack.c.b16 %v1399, %v1398
  %1464 = vmatprep.subr.bf16.mxu0 0
  %1465 = vmatpush1.bf16.msra.mxu0 %v1400
  %1466 = vmatprep.subr.bf16.mxu0 0
  %1467 = vmatpush1.bf16.msra.mxu0 %v1401
  %1468 = vmatprep.subr.bf16.mxu0 0
  %1469 = vmatpush1.bf16.msra.mxu0 %v1402
  %1470 = vmatprep.subr.bf16.mxu0 0
  %1471 = vmatpush1.bf16.msra.mxu0 %v1403
  %1472 = vmatprep.subr.bf16.mxu0 0
  %1473 = vmatpush1.bf16.msra.mxu0 %v1404
  %1474 = vmatprep.subr.bf16.mxu0 0
  %1475 = vmatpush1.bf16.msra.mxu0 %v1405
  %1476 = vmatprep.subr.bf16.mxu0 0
  %1477 = vmatpush1.bf16.msra.mxu0 %v1406
  %1478 = vmatprep.subr.bf16.mxu0 0
  %1479 = vmatpush1.bf16.msra.mxu0 %v1407
  %1480 = vmatprep.subr.bf16.mxu0 0
  %1481 = vmatpush1.bf16.msra.mxu0 %v1408
  %1482 = vmatprep.subr.bf16.mxu0 0
  %1483 = vmatpush1.bf16.msra.mxu0 %v1409
  %1484 = vmatprep.subr.bf16.mxu0 0
  %1485 = vmatpush1.bf16.msra.mxu0 %v1410
  %1486 = vmatprep.subr.bf16.mxu0 0
  %1487 = vmatpush1.bf16.msra.mxu0 %v1411
  %1488 = vmatprep.subr.bf16.mxu0 0
  %1489 = vmatpush1.bf16.msra.mxu0 %v1412
  %1490 = vmatprep.subr.bf16.mxu0 0
  %1491 = vmatpush1.bf16.msra.mxu0 %v1413
  %1492 = vmatprep.subr.bf16.mxu0 0
  %1493 = vmatpush1.bf16.msra.mxu0 %v1414
  %1494 = vmatprep.subr.bf16.mxu0 0
  %1495 = vmatpush1.bf16.msra.mxu0 %v1415
  %1496 = vmatprep.mubr.bf16.mxu0 %v1265
  %1497 = vmatmul.mubr.bf16.gmra.mrb[0].mxu0 %v1264
  %v1498 = vpop.f32.mrb[0].mxu0
  %v1499 = vadd.f32 0.0, %v1498
  %v1500 = vpop.f32.mrb[0].mxu0
  %v1501 = vpop.f32.mrb[0].mxu0
  %v1502 = vadd.f32 0.0, %v1501
  %v1503 = vpop.f32.mrb[0].mxu0
  %1504 = vmatprep.mubr.bf16.mxu0 %v1269
  %1505 = vmatmul.mubr.bf16.gmra.mrb[0].mxu0 %v1268
  %v1506 = vpop.f32.mrb[0].mxu0
  %v1507 = vadd.f32 0.0, %v1506
  %v1508 = vpop.f32.mrb[0].mxu0
  %v1509 = vpop.f32.mrb[0].mxu0
  %v1510 = vpop.f32.mrb[0].mxu0
  %1511 = vdwg.mxu0
  %1512 = vmatprep.subr.bf16.mxu0 0
  %1513 = vmatpush1.bf16.msra.mxu0 %v1416
  %1514 = vmatprep.subr.bf16.mxu0 0
  %1515 = vmatpush1.bf16.msra.mxu0 %v1417
  %1516 = vmatprep.subr.bf16.mxu0 0
  %1517 = vmatpush1.bf16.msra.mxu0 %v1418
  %1518 = vmatprep.subr.bf16.mxu0 0
  %1519 = vmatpush1.bf16.msra.mxu0 %v1419
  %1520 = vmatprep.subr.bf16.mxu0 0
  %1521 = vmatpush1.bf16.msra.mxu0 %v1420
  %1522 = vmatprep.subr.bf16.mxu0 0
  %1523 = vmatpush1.bf16.msra.mxu0 %v1421
  %1524 = vmatprep.subr.bf16.mxu0 0
  %1525 = vmatpush1.bf16.msra.mxu0 %v1422
  %1526 = vmatprep.subr.bf16.mxu0 0
  %1527 = vmatpush1.bf16.msra.mxu0 %v1423
  %1528 = vmatprep.subr.bf16.mxu0 0
  %1529 = vmatpush1.bf16.msra.mxu0 %v1424
  %1530 = vmatprep.subr.bf16.mxu0 0
  %1531 = vmatpush1.bf16.msra.mxu0 %v1425
  %1532 = vmatprep.subr.bf16.mxu0 0
  %1533 = vmatpush1.bf16.msra.mxu0 %v1426
  %1534 = vmatprep.subr.bf16.mxu0 0
  %1535 = vmatpush1.bf16.msra.mxu0 %v1427
  %1536 = vmatprep.subr.bf16.mxu0 0
  %1537 = vmatpush1.bf16.msra.mxu0 %v1428
  %1538 = vmatprep.subr.bf16.mxu0 0
  %1539 = vmatpush1.bf16.msra.mxu0 %v1429
  %1540 = vmatprep.subr.bf16.mxu0 0
  %1541 = vmatpush1.bf16.msra.mxu0 %v1430
  %1542 = vmatprep.subr.bf16.mxu0 0
  %1543 = vmatpush1.bf16.msra.mxu0 %v1431
  %1544 = vmatprep.mubr.bf16.mxu0 %v1267
  %1545 = vmatmul.mubr.bf16.gmra.mrb[0].mxu0 %v1266
  %v1546 = vpop.f32.mrb[0].mxu0
  %v1547 = vadd.f32 %v1499, %v1546
  %v1548 = vpop.f32.mrb[0].mxu0
  %v1549 = vpop.f32.mrb[0].mxu0
  %v1550 = vadd.f32 %v1502, %v1549
  %v1551 = vpop.f32.mrb[0].mxu0
  %1552 = vmatprep.mubr.bf16.mxu0 %v1271
  %1553 = vmatmul.mubr.bf16.gmra.mrb[0].mxu0 %v1270
  %v1554 = vpop.f32.mrb[0].mxu0
  %v1555 = vadd.f32 %v1507, %v1554
  %v1556 = vpop.f32.mrb[0].mxu0
  %v1557 = vpop.f32.mrb[0].mxu0
  %v1558 = vpop.f32.mrb[0].mxu0
  %1559 = vdwg.mxu0
  %v1560 = vrcp.pop %v1555
  %v1561 = vlaneseq
  %v1562 = vshrl.u32 %v1561, 7
  %v1563 = vsub.s32 0, %v1562
  %v1564 = vrot.slane %v1560, %v1563
  %v1565 = vmul.f32 %v1547, %v1564
  %v1566 = vmul.f32 %v1550, %v1564
  %v1567 = vpack.c.bf16 %v1566, %v1565
  %v1570 = vunpack.c.l.b16 %v909
  %v1571 = vunpack.c.h.b16 %v909
  %v1572 = vunpack.c.l.b16 %v910
  %v1573 = vunpack.c.h.b16 %v910
  %v1574 = vpack.c.b16 %v1570, %v1570
  %v1575 = vpack.c.b16 %v1571, %v1571
  %v1576 = vpack.c.b16 %v1572, %v1572
  %v1577 = vpack.c.b16 %v1573, %v1573
  %vm1578 = vcmask 64512
  %v1580 = vsel %vm1578, %v1567, 0
  %vm1582 = vcmask 1043456
  %v1584 = vsel %vm1582, %v1574, 0
  %v1587 = vsel %vm1582, %v1575, 0
  %v1590 = vsel %vm1582, %v1576, 0
  %v1593 = vsel %vm1582, %v1577, 0
  %1595 = vmatprep.subr.bf16.mxu0 %v1587
  %1596 = vmatpush1.bf16.msra.mxu0 %v1584
  %1597 = vmatprep.subr.bf16.mxu0 0
  %1598 = vmatpush1.bf16.msra.mxu0 0
  %1599 = vmatprep.subr.bf16.mxu0 0
  %1600 = vmatpush1.bf16.msra.mxu0 0
  %1601 = vmatprep.subr.bf16.mxu0 0
  %1602 = vmatpush1.bf16.msra.mxu0 0
  %1603 = vmatprep.subr.bf16.mxu0 0
  %1604 = vmatpush1.bf16.msra.mxu0 0
  %1605 = vmatprep.subr.bf16.mxu0 0
  %1606 = vmatpush1.bf16.msra.mxu0 0
  %1607 = vmatprep.subr.bf16.mxu0 0
  %1608 = vmatpush1.bf16.msra.mxu0 0
  %1609 = vmatprep.subr.bf16.mxu0 0
  %1610 = vmatpush1.bf16.msra.mxu0 0
  %1611 = vmatprep.subr.bf16.mxu0 0
  %1612 = vmatpush1.bf16.msra.mxu0 0
  %1613 = vmatprep.subr.bf16.mxu0 0
  %1614 = vmatpush1.bf16.msra.mxu0 0
  %1615 = vmatprep.subr.bf16.mxu0 0
  %1616 = vmatpush1.bf16.msra.mxu0 0
  %1617 = vmatprep.subr.bf16.mxu0 0
  %1618 = vmatpush1.bf16.msra.mxu0 0
  %1619 = vmatprep.subr.bf16.mxu0 0
  %1620 = vmatpush1.bf16.msra.mxu0 0
  %1621 = vmatprep.subr.bf16.mxu0 0
  %1622 = vmatpush1.bf16.msra.mxu0 0
  %1623 = vmatprep.subr.bf16.mxu0 0
  %1624 = vmatpush1.bf16.msra.mxu0 0
  %1625 = vmatprep.subr.bf16.mxu0 0
  %1626 = vmatpush1.bf16.msra.mxu0 0
  %1627 = vmatprep.mubr.bf16.mxu0 0
  %1628 = vmatmul.mubr.bf16.gmra.mrb[0].mxu0 %v1580
  %v1629 = vpop.f32.mrb[0].mxu0
  %v1630 = vadd.f32 0.0, %v1629
  %v1631 = vpop.f32.mrb[0].mxu0
  %v1632 = vadd.f32 0.0, %v1631
  %v1633 = vpop.f32.mrb[0].mxu0
  %v1634 = vadd.f32 0.0, %v1633
  %v1635 = vpop.f32.mrb[0].mxu0
  %v1636 = vadd.f32 0.0, %v1635
  %1637 = vdwg.mxu0
  %1638 = vmatprep.subr.bf16.mxu0 %v1593
  %1639 = vmatpush1.bf16.msra.mxu0 %v1590
  %1640 = vmatprep.subr.bf16.mxu0 0
  %1641 = vmatpush1.bf16.msra.mxu0 0
  %1642 = vmatprep.subr.bf16.mxu0 0
  %1643 = vmatpush1.bf16.msra.mxu0 0
  %1644 = vmatprep.subr.bf16.mxu0 0
  %1645 = vmatpush1.bf16.msra.mxu0 0
  %1646 = vmatprep.subr.bf16.mxu0 0
  %1647 = vmatpush1.bf16.msra.mxu0 0
  %1648 = vmatprep.subr.bf16.mxu0 0
  %1649 = vmatpush1.bf16.msra.mxu0 0
  %1650 = vmatprep.subr.bf16.mxu0 0
  %1651 = vmatpush1.bf16.msra.mxu0 0
  %1652 = vmatprep.subr.bf16.mxu0 0
  %1653 = vmatpush1.bf16.msra.mxu0 0
  %1654 = vmatprep.subr.bf16.mxu0 0
  %1655 = vmatpush1.bf16.msra.mxu0 0
  %1656 = vmatprep.subr.bf16.mxu0 0
  %1657 = vmatpush1.bf16.msra.mxu0 0
  %1658 = vmatprep.subr.bf16.mxu0 0
  %1659 = vmatpush1.bf16.msra.mxu0 0
  %1660 = vmatprep.subr.bf16.mxu0 0
  %1661 = vmatpush1.bf16.msra.mxu0 0
  %1662 = vmatprep.subr.bf16.mxu0 0
  %1663 = vmatpush1.bf16.msra.mxu0 0
  %1664 = vmatprep.subr.bf16.mxu0 0
  %1665 = vmatpush1.bf16.msra.mxu0 0
  %1666 = vmatprep.subr.bf16.mxu0 0
  %1667 = vmatpush1.bf16.msra.mxu0 0
  %1668 = vmatprep.subr.bf16.mxu0 0
  %1669 = vmatpush1.bf16.msra.mxu0 0
  %1670 = vmatprep.mubr.bf16.mxu0 0
  %1671 = vmatmul.mubr.bf16.gmra.mrb[0].mxu0 %v1580
  %v1672 = vpop.f32.mrb[0].mxu0
  %v1673 = vadd.f32 0.0, %v1672
  %v1674 = vpop.f32.mrb[0].mxu0
  %v1675 = vadd.f32 0.0, %v1674
  %v1676 = vpop.f32.mrb[0].mxu0
  %v1677 = vadd.f32 0.0, %v1676
  %v1678 = vpop.f32.mrb[0].mxu0
  %v1679 = vadd.f32 0.0, %v1678
  %1680 = vdwg.mxu0
  %v1681 = vmax.f32 %v1119, 0.0
  %v1682 = vmax.f32 %v1121, 0.0
  %v1683 = vmax.f32 %v1180, 0.0
  %v1684 = vmax.f32 %v1182, 0.0
  %v1685 = vmax.f32 %v1123, 0.0
  %v1686 = vmax.f32 %v1125, 0.0
  %v1687 = vmax.f32 %v1184, 0.0
  %v1688 = vmax.f32 %v1186, 0.0
  %v1689 = vmul.f32 %v1681, %v1630
  %v1690 = vmul.f32 %v1682, %v1632
  %v1691 = vmul.f32 %v1683, %v1673
  %v1692 = vmul.f32 %v1684, %v1675
  %v1693 = vmul.f32 %v1685, %v1634
  %v1694 = vmul.f32 %v1686, %v1636
  %v1695 = vmul.f32 %v1687, %v1677
  %v1696 = vmul.f32 %v1688, %v1679
  %v1697 = vld [vmem:[%s7] sm:$0xf]
  %v1698 = vld [vmem:[%s7 + $0x4] sm:$0xf]
  %v1699 = vpack.c.bf16 %v1693, %v1689
  %v1700 = vpack.c.bf16 %v1694, %v1690
  %v1701 = vpack.c.bf16 %v1695, %v1691
  %v1702 = vpack.c.bf16 %v1696, %v1692
  %v1705 = vunpack.c.l.b16 %v1697
  %v1706 = vunpack.c.l.b16 %v1698
  %v1707 = vpack.c.b16 %v1706, %v1705
  %v1709 = vsel %vm755, %v1707, 0
  %1711 = vmatprep.subr.bf16.mxu0 %v1700
  %1712 = vmatpush1.bf16.msra.mxu0 %v1699
  %1713 = vmatprep.subr.bf16.mxu0 0
  %1714 = vmatpush1.bf16.msra.mxu0 0
  %1715 = vmatprep.subr.bf16.mxu0 0
  %1716 = vmatpush1.bf16.msra.mxu0 0
  %1717 = vmatprep.subr.bf16.mxu0 0
  %1718 = vmatpush1.bf16.msra.mxu0 0
  %1719 = vmatprep.subr.bf16.mxu0 0
  %1720 = vmatpush1.bf16.msra.mxu0 0
  %1721 = vmatprep.subr.bf16.mxu0 0
  %1722 = vmatpush1.bf16.msra.mxu0 0
  %1723 = vmatprep.subr.bf16.mxu0 0
  %1724 = vmatpush1.bf16.msra.mxu0 0
  %1725 = vmatprep.subr.bf16.mxu0 0
  %1726 = vmatpush1.bf16.msra.mxu0 0
  %1727 = vmatprep.subr.bf16.mxu0 0
  %1728 = vmatpush1.bf16.msra.mxu0 0
  %1729 = vmatprep.subr.bf16.mxu0 0
  %1730 = vmatpush1.bf16.msra.mxu0 0
  %1731 = vmatprep.subr.bf16.mxu0 0
  %1732 = vmatpush1.bf16.msra.mxu0 0
  %1733 = vmatprep.subr.bf16.mxu0 0
  %1734 = vmatpush1.bf16.msra.mxu0 0
  %1735 = vmatprep.subr.bf16.mxu0 0
  %1736 = vmatpush1.bf16.msra.mxu0 0
  %1737 = vmatprep.subr.bf16.mxu0 0
  %1738 = vmatpush1.bf16.msra.mxu0 0
  %1739 = vmatprep.subr.bf16.mxu0 0
  %1740 = vmatpush1.bf16.msra.mxu0 0
  %1741 = vmatprep.subr.bf16.mxu0 0
  %1742 = vmatpush1.bf16.msra.mxu0 0
  %1743 = vmatprep.mubr.bf16.mxu0 0
  %1744 = vmatmul.mubr.bf16.gmra.mrb[0].mxu0 %v1709
  %v1745 = vpop.f32.mrb[0].mxu0
  %v1746 = vadd.f32 0.0, %v1745
  %v1747 = vpop.f32.mrb[0].mxu0
  %v1748 = vadd.f32 0.0, %v1747
  %v1749 = vpop.f32.mrb[0].mxu0
  %v1750 = vadd.f32 0.0, %v1749
  %v1751 = vpop.f32.mrb[0].mxu0
  %v1752 = vadd.f32 0.0, %v1751
  %1753 = vdwg.mxu0
  %1754 = vmatprep.subr.bf16.mxu0 %v1702
  %1755 = vmatpush1.bf16.msra.mxu0 %v1701
  %1756 = vmatprep.subr.bf16.mxu0 0
  %1757 = vmatpush1.bf16.msra.mxu0 0
  %1758 = vmatprep.subr.bf16.mxu0 0
  %1759 = vmatpush1.bf16.msra.mxu0 0
  %1760 = vmatprep.subr.bf16.mxu0 0
  %1761 = vmatpush1.bf16.msra.mxu0 0
  %1762 = vmatprep.subr.bf16.mxu0 0
  %1763 = vmatpush1.bf16.msra.mxu0 0
  %1764 = vmatprep.subr.bf16.mxu0 0
  %1765 = vmatpush1.bf16.msra.mxu0 0
  %1766 = vmatprep.subr.bf16.mxu0 0
  %1767 = vmatpush1.bf16.msra.mxu0 0
  %1768 = vmatprep.subr.bf16.mxu0 0
  %1769 = vmatpush1.bf16.msra.mxu0 0
  %1770 = vmatprep.subr.bf16.mxu0 0
  %1771 = vmatpush1.bf16.msra.mxu0 0
  %1772 = vmatprep.subr.bf16.mxu0 0
  %1773 = vmatpush1.bf16.msra.mxu0 0
  %1774 = vmatprep.subr.bf16.mxu0 0
  %1775 = vmatpush1.bf16.msra.mxu0 0
  %1776 = vmatprep.subr.bf16.mxu0 0
  %1777 = vmatpush1.bf16.msra.mxu0 0
  %1778 = vmatprep.subr.bf16.mxu0 0
  %1779 = vmatpush1.bf16.msra.mxu0 0
  %1780 = vmatprep.subr.bf16.mxu0 0
  %1781 = vmatpush1.bf16.msra.mxu0 0
  %1782 = vmatprep.subr.bf16.mxu0 0
  %1783 = vmatpush1.bf16.msra.mxu0 0
  %1784 = vmatprep.subr.bf16.mxu0 0
  %1785 = vmatpush1.bf16.msra.mxu0 0
  %1786 = vmatprep.mubr.bf16.mxu0 0
  %1787 = vmatmul.mubr.bf16.gmra.mrb[0].mxu0 %v1709
  %v1788 = vpop.f32.mrb[0].mxu0
  %v1789 = vadd.f32 0.0, %v1788
  %v1790 = vpop.f32.mrb[0].mxu0
  %v1791 = vadd.f32 0.0, %v1790
  %v1792 = vpop.f32.mrb[0].mxu0
  %v1793 = vadd.f32 0.0, %v1792
  %v1794 = vpop.f32.mrb[0].mxu0
  %v1795 = vadd.f32 0.0, %v1794
  %1796 = vdwg.mxu0
  %v1797 = vadd.f32 %v794, %v1746
  %v1798 = vadd.f32 %v796, %v1748
  %v1799 = vadd.f32 %v837, %v1789
  %v1800 = vadd.f32 %v839, %v1791
  %v1801 = vadd.f32 %v798, %v1750
  %v1802 = vadd.f32 %v800, %v1752
  %v1803 = vadd.f32 %v841, %v1793
  %v1804 = vadd.f32 %v843, %v1795
  %1805 = vset.pattern.permute.xlu0 12
  %1806 = vperm.xlu0 %1805, %v59
  %v1807 = vpop.permute.xlu0 %1806
  %1809 = vset.pattern.permute.xlu0 12
  %1810 = vperm.xlu0 %1809, %v60
  %v1811 = vpop.permute.xlu0 %1810
  %v1813 = vadd.f32 %v1797, %v1807
  %v1814 = vadd.f32 %v1798, %v1807
  %v1815 = vadd.f32 %v1799, %v1807
  %v1816 = vadd.f32 %v1800, %v1807
  %v1817 = vadd.f32 %v1801, %v1811
  %v1818 = vadd.f32 %v1802, %v1811
  %v1819 = vadd.f32 %v1803, %v1811
  %v1820 = vadd.f32 %v1804, %v1811
  %v1821 = vadd.f32 %v1813, %v1814
  %v1822 = vadd.f32 %v1821, %v1817
  %v1823 = vadd.f32 %v1822, %v1818
  %1824 = vadd.xlane.f32.xlu0 %v1823
  %v1825 = vpop.xlane.xlu0 %1824
  %v1826 = vrot.slane %v1825, 4
  %v1827 = vadd.f32 %v1825, %v1826
  %v1828 = vrot.slane %v1827, 2
  %v1829 = vadd.f32 %v1827, %v1828
  %v1830 = vrot.slane %v1829, 1
  %v1831 = vadd.f32 %v1829, %v1830
  %s1832 = vtos %v1831
  %v1833 = vmul.f32 %v1813, %v1813
  %v1834 = vmul.f32 %v1814, %v1814
  %v1835 = vmul.f32 %v1817, %v1817
  %v1836 = vmul.f32 %v1818, %v1818
  %v1837 = vadd.f32 %v1833, %v1834
  %v1838 = vadd.f32 %v1837, %v1835
  %v1839 = vadd.f32 %v1838, %v1836
  %1840 = vadd.xlane.f32.xlu0 %v1839
  %v1841 = vpop.xlane.xlu0 %1840
  %v1842 = vrot.slane %v1841, 4
  %v1843 = vadd.f32 %v1841, %v1842
  %v1844 = vrot.slane %v1843, 2
  %v1845 = vadd.f32 %v1843, %v1844
  %v1846 = vrot.slane %v1845, 1
  %v1847 = vadd.f32 %v1845, %v1846
  %s1848 = vtos %v1847
  %v1849 = vrcp.pop 4096.0
  %s1850 = vtos %v1849
  %s1851 = smul.f32 %s1832, %s1850
  %v1852 = vrcp.pop 4096.0
  %s1853 = vtos %v1852
  %s1854 = smul.f32 %s1848, %s1853
  %s1855 = smul.f32 %s1851, %s1851
  %s1856 = ssub.f32 %s1854, %s1855
  %v1857 = vstv %s1851
  %s1858 = sadd.f32 %s1856, 1e-05
  %v1859 = vstv %s1858
  %v1860 = vrsqrt.pop %v1859
  %s1861 = vtos %v1860
  %v1862 = vstv %s1861
  %v1863 = vadd.f32 %v1815, %v1816
  %v1864 = vadd.f32 %v1863, %v1819
  %v1865 = vadd.f32 %v1864, %v1820
  %1866 = vadd.xlane.f32.xlu0 %v1865
  %v1867 = vpop.xlane.xlu0 %1866
  %v1868 = vrot.slane %v1867, 4
  %v1869 = vadd.f32 %v1867, %v1868
  %v1870 = vrot.slane %v1869, 2
  %v1871 = vadd.f32 %v1869, %v1870
  %v1872 = vrot.slane %v1871, 1
  %v1873 = vadd.f32 %v1871, %v1872
  %s1874 = vtos %v1873
  %v1875 = vmul.f32 %v1815, %v1815
  %v1876 = vmul.f32 %v1816, %v1816
  %v1877 = vmul.f32 %v1819, %v1819
  %v1878 = vmul.f32 %v1820, %v1820
  %v1879 = vadd.f32 %v1875, %v1876
  %v1880 = vadd.f32 %v1879, %v1877
  %v1881 = vadd.f32 %v1880, %v1878
  %1882 = vadd.xlane.f32.xlu0 %v1881
  %v1883 = vpop.xlane.xlu0 %1882
  %v1884 = vrot.slane %v1883, 4
  %v1885 = vadd.f32 %v1883, %v1884
  %v1886 = vrot.slane %v1885, 2
  %v1887 = vadd.f32 %v1885, %v1886
  %v1888 = vrot.slane %v1887, 1
  %v1889 = vadd.f32 %v1887, %v1888
  %s1890 = vtos %v1889
  %v1891 = vrcp.pop 4096.0
  %s1892 = vtos %v1891
  %s1893 = smul.f32 %s1874, %s1892
  %v1894 = vrcp.pop 4096.0
  %s1895 = vtos %v1894
  %s1896 = smul.f32 %s1890, %s1895
  %s1897 = smul.f32 %s1893, %s1893
  %s1898 = ssub.f32 %s1896, %s1897
  %v1899 = vstv %s1893
  %s1900 = sadd.f32 %s1898, 1e-05
  %v1901 = vstv %s1900
  %v1902 = vrsqrt.pop %v1901
  %s1903 = vtos %v1902
  %v1904 = vstv %s1903
  %v1905 = vlaneseq
  %v1906 = vshrl.u32 %v1905, 7
  %v1907 = vsub.s32 0, %v1906
  %v1908 = vlaneseq
  %v1909 = vshrl.u32 %v1908, 7
  %v1910 = vsub.s32 0, %v1909
  %v1911 = vsub.f32 %v1813, %v1857
  %v1912 = vsub.f32 %v1814, %v1857
  %v1913 = vsub.f32 %v1815, %v1899
  %v1914 = vsub.f32 %v1816, %v1899
  %v1915 = vsub.f32 %v1817, %v1857
  %v1916 = vsub.f32 %v1818, %v1857
  %v1917 = vsub.f32 %v1819, %v1899
  %v1918 = vsub.f32 %v1820, %v1899
  %v1919 = vlaneseq
  %v1920 = vshrl.u32 %v1919, 7
  %v1921 = vsub.s32 0, %v1920
  %v1922 = vlaneseq
  %v1923 = vshrl.u32 %v1922, 7
  %v1924 = vsub.s32 0, %v1923
  %v1925 = vmul.f32 %v1911, %v1862
  %v1926 = vmul.f32 %v1912, %v1862
  %v1927 = vmul.f32 %v1913, %v1904
  %v1928 = vmul.f32 %v1914, %v1904
  %v1929 = vmul.f32 %v1915, %v1862
  %v1930 = vmul.f32 %v1916, %v1862
  %v1931 = vmul.f32 %v1917, %v1904
  %v1932 = vmul.f32 %v1918, %v1904
  %v1933 = vpack.c.bf16 %v1929, %v1925
  %v1934 = vpack.c.bf16 %v1930, %v1926
  %v1935 = vpack.c.bf16 %v1931, %v1927
  %v1936 = vpack.c.bf16 %v1932, %v1928
  %v1937 = vld [vmem:[%s8] sm:$0xf]
  %v1938 = vld [vmem:[%s8 + $0x4] sm:$0xf]
  %v1939 = vld [vmem:[%s8 + $0x8] sm:$0xf]
  %v1940 = vld [vmem:[%s8 + $0xc] sm:$0xf]
  %1941 = vset.pattern.permute.xlu0 13
  %1942 = vperm.xlu0 %1941, %v911
  %v1943 = vpop.permute.xlu0 %1942
  %1945 = vset.pattern.permute.xlu0 13
  %1946 = vperm.xlu0 %1945, %v912
  %v1947 = vpop.permute.xlu0 %1946
  %1949 = vset.pattern.permute.xlu0 13
  %1950 = vperm.xlu0 %1949, %v913
  %v1951 = vpop.permute.xlu0 %1950
  %1953 = vset.pattern.permute.xlu0 13
  %1954 = vperm.xlu0 %1953, %v914
  %v1955 = vpop.permute.xlu0 %1954
  %v1961 = vunpack.c.l.b16 %v1937
  %v1962 = vunpack.c.l.b16 %v1938
  %v1963 = vunpack.c.l.b16 %v1939
  %v1964 = vunpack.c.l.b16 %v1940
  %v1965 = vpack.c.b16 %v1962, %v1961
  %v1966 = vpack.c.b16 %v1964, %v1963
  %v1968 = vsel %vm755, %v1965, 0
  %v1971 = vsel %vm755, %v1966, 0
  %1973 = vmatprep.subr.bf16.mxu0 %v1934
  %1974 = vmatpush1.bf16.msra.mxu0 %v1933
  %1975 = vmatprep.subr.bf16.mxu0 0
  %1976 = vmatpush1.bf16.msra.mxu0 0
  %1977 = vmatprep.subr.bf16.mxu0 0
  %1978 = vmatpush1.bf16.msra.mxu0 0
  %1979 = vmatprep.subr.bf16.mxu0 0
  %1980 = vmatpush1.bf16.msra.mxu0 0
  %1981 = vmatprep.subr.bf16.mxu0 0
  %1982 = vmatpush1.bf16.msra.mxu0 0
  %1983 = vmatprep.subr.bf16.mxu0 0
  %1984 = vmatpush1.bf16.msra.mxu0 0
  %1985 = vmatprep.subr.bf16.mxu0 0
  %1986 = vmatpush1.bf16.msra.mxu0 0
  %1987 = vmatprep.subr.bf16.mxu0 0
  %1988 = vmatpush1.bf16.msra.mxu0 0
  %1989 = vmatprep.subr.bf16.mxu0 0
  %1990 = vmatpush1.bf16.msra.mxu0 0
  %1991 = vmatprep.subr.bf16.mxu0 0
  %1992 = vmatpush1.bf16.msra.mxu0 0
  %1993 = vmatprep.subr.bf16.mxu0 0
  %1994 = vmatpush1.bf16.msra.mxu0 0
  %1995 = vmatprep.subr.bf16.mxu0 0
  %1996 = vmatpush1.bf16.msra.mxu0 0
  %1997 = vmatprep.subr.bf16.mxu0 0
  %1998 = vmatpush1.bf16.msra.mxu0 0
  %1999 = vmatprep.subr.bf16.mxu0 0
  %2000 = vmatpush1.bf16.msra.mxu0 0
  %2001 = vmatprep.subr.bf16.mxu0 0
  %2002 = vmatpush1.bf16.msra.mxu0 0
  %2003 = vmatprep.subr.bf16.mxu0 0
  %2004 = vmatpush1.bf16.msra.mxu0 0
  %2005 = vmatprep.mubr.bf16.mxu0 0
  %2006 = vmatmul.mubr.bf16.gmra.mrb[0].mxu0 %v1968
  %v2007 = vpop.f32.mrb[0].mxu0
  %v2008 = vadd.f32 %v1943, %v2007
  %v2009 = vpop.f32.mrb[0].mxu0
  %v2010 = vadd.f32 %v1943, %v2009
  %v2011 = vpop.f32.mrb[0].mxu0
  %v2012 = vadd.f32 %v1947, %v2011
  %v2013 = vpop.f32.mrb[0].mxu0
  %v2014 = vadd.f32 %v1947, %v2013
  %2015 = vmatprep.mubr.bf16.mxu0 0
  %2016 = vmatmul.mubr.bf16.gmra.mrb[0].mxu0 %v1971
  %v2017 = vpop.f32.mrb[0].mxu0
  %v2018 = vadd.f32 %v1951, %v2017
  %v2019 = vpop.f32.mrb[0].mxu0
  %v2020 = vadd.f32 %v1951, %v2019
  %v2021 = vpop.f32.mrb[0].mxu0
  %v2022 = vadd.f32 %v1955, %v2021
  %v2023 = vpop.f32.mrb[0].mxu0
  %v2024 = vadd.f32 %v1955, %v2023
  %2025 = vdwg.mxu0
  %2026 = vmatprep.subr.bf16.mxu0 %v1936
  %2027 = vmatpush1.bf16.msra.mxu0 %v1935
  %2028 = vmatprep.subr.bf16.mxu0 0
  %2029 = vmatpush1.bf16.msra.mxu0 0
  %2030 = vmatprep.subr.bf16.mxu0 0
  %2031 = vmatpush1.bf16.msra.mxu0 0
  %2032 = vmatprep.subr.bf16.mxu0 0
  %2033 = vmatpush1.bf16.msra.mxu0 0
  %2034 = vmatprep.subr.bf16.mxu0 0
  %2035 = vmatpush1.bf16.msra.mxu0 0
  %2036 = vmatprep.subr.bf16.mxu0 0
  %2037 = vmatpush1.bf16.msra.mxu0 0
  %2038 = vmatprep.subr.bf16.mxu0 0
  %2039 = vmatpush1.bf16.msra.mxu0 0
  %2040 = vmatprep.subr.bf16.mxu0 0
  %2041 = vmatpush1.bf16.msra.mxu0 0
  %2042 = vmatprep.subr.bf16.mxu0 0
  %2043 = vmatpush1.bf16.msra.mxu0 0
  %2044 = vmatprep.subr.bf16.mxu0 0
  %2045 = vmatpush1.bf16.msra.mxu0 0
  %2046 = vmatprep.subr.bf16.mxu0 0
  %2047 = vmatpush1.bf16.msra.mxu0 0
  %2048 = vmatprep.subr.bf16.mxu0 0
  %2049 = vmatpush1.bf16.msra.mxu0 0
  %2050 = vmatprep.subr.bf16.mxu0 0
  %2051 = vmatpush1.bf16.msra.mxu0 0
  %2052 = vmatprep.subr.bf16.mxu0 0
  %2053 = vmatpush1.bf16.msra.mxu0 0
  %2054 = vmatprep.subr.bf16.mxu0 0
  %2055 = vmatpush1.bf16.msra.mxu0 0
  %2056 = vmatprep.subr.bf16.mxu0 0
  %2057 = vmatpush1.bf16.msra.mxu0 0
  %2058 = vmatprep.mubr.bf16.mxu0 0
  %2059 = vmatmul.mubr.bf16.gmra.mrb[0].mxu0 %v1968
  %v2060 = vpop.f32.mrb[0].mxu0
  %v2061 = vadd.f32 %v1943, %v2060
  %v2062 = vpop.f32.mrb[0].mxu0
  %v2063 = vadd.f32 %v1943, %v2062
  %v2064 = vpop.f32.mrb[0].mxu0
  %v2065 = vadd.f32 %v1947, %v2064
  %v2066 = vpop.f32.mrb[0].mxu0
  %v2067 = vadd.f32 %v1947, %v2066
  %2068 = vmatprep.mubr.bf16.mxu0 0
  %2069 = vmatmul.mubr.bf16.gmra.mrb[0].mxu0 %v1971
  %v2070 = vpop.f32.mrb[0].mxu0
  %v2071 = vadd.f32 %v1951, %v2070
  %v2072 = vpop.f32.mrb[0].mxu0
  %v2073 = vadd.f32 %v1951, %v2072
  %v2074 = vpop.f32.mrb[0].mxu0
  %v2075 = vadd.f32 %v1955, %v2074
  %v2076 = vpop.f32.mrb[0].mxu0
  %v2077 = vadd.f32 %v1955, %v2076
  %2078 = vdwg.mxu0
  %v2079 = vxor.u32 %v2008, 2147483648
  %v2080 = vxor.u32 %v2010, 2147483648
  %v2081 = vxor.u32 %v2061, 2147483648
  %v2082 = vxor.u32 %v2063, 2147483648
  %v2083 = vxor.u32 %v2012, 2147483648
  %v2084 = vxor.u32 %v2014, 2147483648
  %v2085 = vxor.u32 %v2065, 2147483648
  %v2086 = vxor.u32 %v2067, 2147483648
  %v2087 = vxor.u32 %v2018, 2147483648
  %v2088 = vxor.u32 %v2020, 2147483648
  %v2089 = vxor.u32 %v2071, 2147483648
  %v2090 = vxor.u32 %v2073, 2147483648
  %v2091 = vxor.u32 %v2022, 2147483648
  %v2092 = vxor.u32 %v2024, 2147483648
  %v2093 = vxor.u32 %v2075, 2147483648
  %v2094 = vxor.u32 %v2077, 2147483648
  %v2095 = vmul.f32 %v2079, 1.442695
  %v2096 = vpow.pop %v2095
  %v2097 = vmul.f32 %v2080, 1.442695
  %v2098 = vpow.pop %v2097
  %v2099 = vmul.f32 %v2081, 1.442695
  %v2100 = vpow.pop %v2099
  %v2101 = vmul.f32 %v2082, 1.442695
  %v2102 = vpow.pop %v2101
  %v2103 = vmul.f32 %v2083, 1.442695
  %v2104 = vpow.pop %v2103
  %v2105 = vmul.f32 %v2084, 1.442695
  %v2106 = vpow.pop %v2105
  %v2107 = vmul.f32 %v2085, 1.442695
  %v2108 = vpow.pop %v2107
  %v2109 = vmul.f32 %v2086, 1.442695
  %v2110 = vpow.pop %v2109
  %v2111 = vmul.f32 %v2087, 1.442695
  %v2112 = vpow.pop %v2111
  %v2113 = vmul.f32 %v2088, 1.442695
  %v2114 = vpow.pop %v2113
  %v2115 = vmul.f32 %v2089, 1.442695
  %v2116 = vpow.pop %v2115
  %v2117 = vmul.f32 %v2090, 1.442695
  %v2118 = vpow.pop %v2117
  %v2119 = vmul.f32 %v2091, 1.442695
  %v2120 = vpow.pop %v2119
  %v2121 = vmul.f32 %v2092, 1.442695
  %v2122 = vpow.pop %v2121
  %v2123 = vmul.f32 %v2093, 1.442695
  %v2124 = vpow.pop %v2123
  %v2125 = vmul.f32 %v2094, 1.442695
  %v2126 = vpow.pop %v2125
  %v2127 = vadd.f32 %v2096, 1.0
  %v2128 = vadd.f32 %v2098, 1.0
  %v2129 = vadd.f32 %v2100, 1.0
  %v2130 = vadd.f32 %v2102, 1.0
  %v2131 = vadd.f32 %v2104, 1.0
  %v2132 = vadd.f32 %v2106, 1.0
  %v2133 = vadd.f32 %v2108, 1.0
  %v2134 = vadd.f32 %v2110, 1.0
  %v2135 = vadd.f32 %v2112, 1.0
  %v2136 = vadd.f32 %v2114, 1.0
  %v2137 = vadd.f32 %v2116, 1.0
  %v2138 = vadd.f32 %v2118, 1.0
  %v2139 = vadd.f32 %v2120, 1.0
  %v2140 = vadd.f32 %v2122, 1.0
  %v2141 = vadd.f32 %v2124, 1.0
  %v2142 = vadd.f32 %v2126, 1.0
  %v2143 = vrcp.pop %v2127
  %v2144 = vmul.f32 1.0, %v2143
  %v2145 = vrcp.pop %v2128
  %v2146 = vmul.f32 1.0, %v2145
  %v2147 = vrcp.pop %v2129
  %v2148 = vmul.f32 1.0, %v2147
  %v2149 = vrcp.pop %v2130
  %v2150 = vmul.f32 1.0, %v2149
  %v2151 = vrcp.pop %v2131
  %v2152 = vmul.f32 1.0, %v2151
  %v2153 = vrcp.pop %v2132
  %v2154 = vmul.f32 1.0, %v2153
  %v2155 = vrcp.pop %v2133
  %v2156 = vmul.f32 1.0, %v2155
  %v2157 = vrcp.pop %v2134
  %v2158 = vmul.f32 1.0, %v2157
  %v2159 = vrcp.pop %v2135
  %v2160 = vmul.f32 1.0, %v2159
  %v2161 = vrcp.pop %v2136
  %v2162 = vmul.f32 1.0, %v2161
  %v2163 = vrcp.pop %v2137
  %v2164 = vmul.f32 1.0, %v2163
  %v2165 = vrcp.pop %v2138
  %v2166 = vmul.f32 1.0, %v2165
  %v2167 = vrcp.pop %v2139
  %v2168 = vmul.f32 1.0, %v2167
  %v2169 = vrcp.pop %v2140
  %v2170 = vmul.f32 1.0, %v2169
  %v2171 = vrcp.pop %v2141
  %v2172 = vmul.f32 1.0, %v2171
  %v2173 = vrcp.pop %v2142
  %v2174 = vmul.f32 1.0, %v2173
  %v2175 = vmul.f32 %v2008, %v2144
  %v2176 = vmul.f32 %v2010, %v2146
  %v2177 = vmul.f32 %v2061, %v2148
  %v2178 = vmul.f32 %v2063, %v2150
  %v2179 = vmul.f32 %v2012, %v2152
  %v2180 = vmul.f32 %v2014, %v2154
  %v2181 = vmul.f32 %v2065, %v2156
  %v2182 = vmul.f32 %v2067, %v2158
  %v2183 = vmul.f32 %v2018, %v2160
  %v2184 = vmul.f32 %v2020, %v2162
  %v2185 = vmul.f32 %v2071, %v2164
  %v2186 = vmul.f32 %v2073, %v2166
  %v2187 = vmul.f32 %v2022, %v2168
  %v2188 = vmul.f32 %v2024, %v2170
  %v2189 = vmul.f32 %v2075, %v2172
  %v2190 = vmul.f32 %v2077, %v2174
  %v2191 = vld [vmem:[%s9] sm:$0xf]
  %v2192 = vld [vmem:[%s9 + $0x4] sm:$0xf]
  %v2193 = vpack.c.bf16 %v2179, %v2175
  %v2194 = vpack.c.bf16 %v2180, %v2176
  %v2195 = vpack.c.bf16 %v2181, %v2177
  %v2196 = vpack.c.bf16 %v2182, %v2178
  %v2197 = vpack.c.bf16 %v2187, %v2183
  %v2198 = vpack.c.bf16 %v2188, %v2184
  %v2199 = vpack.c.bf16 %v2189, %v2185
  %v2200 = vpack.c.bf16 %v2190, %v2186
  %v2203 = vunpack.c.l.b16 %v2191
  %v2204 = vunpack.c.l.b16 %v2192
  %v2205 = vpack.c.b16 %v2204, %v2203
  %vm2206 = vcmask 261120
  %v2208 = vsel %vm2206, %v2205, 0
  %2210 = vmatprep.subr.bf16.mxu0 %v2194
  %2211 = vmatpush1.bf16.msra.mxu0 %v2193
  %2212 = vmatprep.subr.bf16.mxu0 %v2198
  %2213 = vmatpush1.bf16.msra.mxu0 %v2197
  %2214 = vmatprep.subr.bf16.mxu0 0
  %2215 = vmatpush1.bf16.msra.mxu0 0
  %2216 = vmatprep.subr.bf16.mxu0 0
  %2217 = vmatpush1.bf16.msra.mxu0 0
  %2218 = vmatprep.subr.bf16.mxu0 0
  %2219 = vmatpush1.bf16.msra.mxu0 0
  %2220 = vmatprep.subr.bf16.mxu0 0
  %2221 = vmatpush1.bf16.msra.mxu0 0
  %2222 = vmatprep.subr.bf16.mxu0 0
  %2223 = vmatpush1.bf16.msra.mxu0 0
  %2224 = vmatprep.subr.bf16.mxu0 0
  %2225 = vmatpush1.bf16.msra.mxu0 0
  %2226 = vmatprep.subr.bf16.mxu0 0
  %2227 = vmatpush1.bf16.msra.mxu0 0
  %2228 = vmatprep.subr.bf16.mxu0 0
  %2229 = vmatpush1.bf16.msra.mxu0 0
  %2230 = vmatprep.subr.bf16.mxu0 0
  %2231 = vmatpush1.bf16.msra.mxu0 0
  %2232 = vmatprep.subr.bf16.mxu0 0
  %2233 = vmatpush1.bf16.msra.mxu0 0
  %2234 = vmatprep.subr.bf16.mxu0 0
  %2235 = vmatpush1.bf16.msra.mxu0 0
  %2236 = vmatprep.subr.bf16.mxu0 0
  %2237 = vmatpush1.bf16.msra.mxu0 0
  %2238 = vmatprep.subr.bf16.mxu0 0
  %2239 = vmatpush1.bf16.msra.mxu0 0
  %2240 = vmatprep.subr.bf16.mxu0 0
  %2241 = vmatpush1.bf16.msra.mxu0 0
  %2242 = vmatprep.mubr.bf16.mxu0 0
  %2243 = vmatmul.mubr.bf16.gmra.mrb[0].mxu0 %v2208
  %v2244 = vpop.f32.mrb[0].mxu0
  %v2245 = vadd.f32 0.0, %v2244
  %v2246 = vpop.f32.mrb[0].mxu0
  %v2247 = vadd.f32 0.0, %v2246
  %v2248 = vpop.f32.mrb[0].mxu0
  %v2249 = vadd.f32 0.0, %v2248
  %v2250 = vpop.f32.mrb[0].mxu0
  %v2251 = vadd.f32 0.0, %v2250
  %2252 = vdwg.mxu0
  %2253 = vmatprep.subr.bf16.mxu0 %v2196
  %2254 = vmatpush1.bf16.msra.mxu0 %v2195
  %2255 = vmatprep.subr.bf16.mxu0 %v2200
  %2256 = vmatpush1.bf16.msra.mxu0 %v2199
  %2257 = vmatprep.subr.bf16.mxu0 0
  %2258 = vmatpush1.bf16.msra.mxu0 0
  %2259 = vmatprep.subr.bf16.mxu0 0
  %2260 = vmatpush1.bf16.msra.mxu0 0
  %2261 = vmatprep.subr.bf16.mxu0 0
  %2262 = vmatpush1.bf16.msra.mxu0 0
  %2263 = vmatprep.subr.bf16.mxu0 0
  %2264 = vmatpush1.bf16.msra.mxu0 0
  %2265 = vmatprep.subr.bf16.mxu0 0
  %2266 = vmatpush1.bf16.msra.mxu0 0
  %2267 = vmatprep.subr.bf16.mxu0 0
  %2268 = vmatpush1.bf16.msra.mxu0 0
  %2269 = vmatprep.subr.bf16.mxu0 0
  %2270 = vmatpush1.bf16.msra.mxu0 0
  %2271 = vmatprep.subr.bf16.mxu0 0
  %2272 = vmatpush1.bf16.msra.mxu0 0
  %2273 = vmatprep.subr.bf16.mxu0 0
  %2274 = vmatpush1.bf16.msra.mxu0 0
  %2275 = vmatprep.subr.bf16.mxu0 0
  %2276 = vmatpush1.bf16.msra.mxu0 0
  %2277 = vmatprep.subr.bf16.mxu0 0
  %2278 = vmatpush1.bf16.msra.mxu0 0
  %2279 = vmatprep.subr.bf16.mxu0 0
  %2280 = vmatpush1.bf16.msra.mxu0 0
  %2281 = vmatprep.subr.bf16.mxu0 0
  %2282 = vmatpush1.bf16.msra.mxu0 0
  %2283 = vmatprep.subr.bf16.mxu0 0
  %2284 = vmatpush1.bf16.msra.mxu0 0
  %2285 = vmatprep.mubr.bf16.mxu0 0
  %2286 = vmatmul.mubr.bf16.gmra.mrb[0].mxu0 %v2208
  %v2287 = vpop.f32.mrb[0].mxu0
  %v2288 = vadd.f32 0.0, %v2287
  %v2289 = vpop.f32.mrb[0].mxu0
  %v2290 = vadd.f32 0.0, %v2289
  %v2291 = vpop.f32.mrb[0].mxu0
  %v2292 = vadd.f32 0.0, %v2291
  %v2293 = vpop.f32.mrb[0].mxu0
  %v2294 = vadd.f32 0.0, %v2293
  %2295 = vdwg.mxu0
  %v2296 = vadd.f32 %v1813, %v2245
  %v2297 = vadd.f32 %v1814, %v2247
  %v2298 = vadd.f32 %v1815, %v2288
  %v2299 = vadd.f32 %v1816, %v2290
  %v2300 = vadd.f32 %v1817, %v2249
  %v2301 = vadd.f32 %v1818, %v2251
  %v2302 = vadd.f32 %v1819, %v2292
  %v2303 = vadd.f32 %v1820, %v2294
  %2304 = vset.pattern.permute.xlu0 14
  %2305 = vperm.xlu0 %2304, %v59
  %v2306 = vpop.permute.xlu0 %2305
  %2308 = vset.pattern.permute.xlu0 14
  %2309 = vperm.xlu0 %2308, %v60
  %v2310 = vpop.permute.xlu0 %2309
  %v2312 = vadd.f32 %v2296, %v2306
  %v2313 = vadd.f32 %v2297, %v2306
  %v2314 = vadd.f32 %v2298, %v2306
  %v2315 = vadd.f32 %v2299, %v2306
  %v2316 = vadd.f32 %v2300, %v2310
  %v2317 = vadd.f32 %v2301, %v2310
  %v2318 = vadd.f32 %v2302, %v2310
  %v2319 = vadd.f32 %v2303, %v2310
  %v2320 = vadd.f32 %v2312, %v2313
  %v2321 = vadd.f32 %v2320, %v2316
  %v2322 = vadd.f32 %v2321, %v2317
  %2323 = vadd.xlane.f32.xlu0 %v2322
  %v2324 = vpop.xlane.xlu0 %2323
  %v2325 = vrot.slane %v2324, 4
  %v2326 = vadd.f32 %v2324, %v2325
  %v2327 = vrot.slane %v2326, 2
  %v2328 = vadd.f32 %v2326, %v2327
  %v2329 = vrot.slane %v2328, 1
  %v2330 = vadd.f32 %v2328, %v2329
  %s2331 = vtos %v2330
  %v2332 = vmul.f32 %v2312, %v2312
  %v2333 = vmul.f32 %v2313, %v2313
  %v2334 = vmul.f32 %v2316, %v2316
  %v2335 = vmul.f32 %v2317, %v2317
  %v2336 = vadd.f32 %v2332, %v2333
  %v2337 = vadd.f32 %v2336, %v2334
  %v2338 = vadd.f32 %v2337, %v2335
  %2339 = vadd.xlane.f32.xlu0 %v2338
  %v2340 = vpop.xlane.xlu0 %2339
  %v2341 = vrot.slane %v2340, 4
  %v2342 = vadd.f32 %v2340, %v2341
  %v2343 = vrot.slane %v2342, 2
  %v2344 = vadd.f32 %v2342, %v2343
  %v2345 = vrot.slane %v2344, 1
  %v2346 = vadd.f32 %v2344, %v2345
  %s2347 = vtos %v2346
  %v2348 = vrcp.pop 4096.0
  %s2349 = vtos %v2348
  %s2350 = smul.f32 %s2331, %s2349
  %v2351 = vrcp.pop 4096.0
  %s2352 = vtos %v2351
  %s2353 = smul.f32 %s2347, %s2352
  %s2354 = smul.f32 %s2350, %s2350
  %s2355 = ssub.f32 %s2353, %s2354
  %v2356 = vstv %s2350
  %s2357 = sadd.f32 %s2355, 1e-05
  %v2358 = vstv %s2357
  %v2359 = vrsqrt.pop %v2358
  %s2360 = vtos %v2359
  %v2361 = vstv %s2360
  %v2362 = vadd.f32 %v2314, %v2315
  %v2363 = vadd.f32 %v2362, %v2318
  %v2364 = vadd.f32 %v2363, %v2319
  %2365 = vadd.xlane.f32.xlu0 %v2364
  %v2366 = vpop.xlane.xlu0 %2365
  %v2367 = vrot.slane %v2366, 4
  %v2368 = vadd.f32 %v2366, %v2367
  %v2369 = vrot.slane %v2368, 2
  %v2370 = vadd.f32 %v2368, %v2369
  %v2371 = vrot.slane %v2370, 1
  %v2372 = vadd.f32 %v2370, %v2371
  %s2373 = vtos %v2372
  %v2374 = vmul.f32 %v2314, %v2314
  %v2375 = vmul.f32 %v2315, %v2315
  %v2376 = vmul.f32 %v2318, %v2318
  %v2377 = vmul.f32 %v2319, %v2319
  %v2378 = vadd.f32 %v2374, %v2375
  %v2379 = vadd.f32 %v2378, %v2376
  %v2380 = vadd.f32 %v2379, %v2377
  %2381 = vadd.xlane.f32.xlu0 %v2380
  %v2382 = vpop.xlane.xlu0 %2381
  %v2383 = vrot.slane %v2382, 4
  %v2384 = vadd.f32 %v2382, %v2383
  %v2385 = vrot.slane %v2384, 2
  %v2386 = vadd.f32 %v2384, %v2385
  %v2387 = vrot.slane %v2386, 1
  %v2388 = vadd.f32 %v2386, %v2387
  %s2389 = vtos %v2388
  %v2390 = vrcp.pop 4096.0
  %s2391 = vtos %v2390
  %s2392 = smul.f32 %s2373, %s2391
  %v2393 = vrcp.pop 4096.0
  %s2394 = vtos %v2393
  %s2395 = smul.f32 %s2389, %s2394
  %s2396 = smul.f32 %s2392, %s2392
  %s2397 = ssub.f32 %s2395, %s2396
  %v2398 = vstv %s2392
  %s2399 = sadd.f32 %s2397, 1e-05
  %v2400 = vstv %s2399
  %v2401 = vrsqrt.pop %v2400
  %s2402 = vtos %v2401
  %v2403 = vstv %s2402
  %v2404 = vlaneseq
  %v2405 = vshrl.u32 %v2404, 7
  %v2406 = vsub.s32 0, %v2405
  %v2407 = vlaneseq
  %v2408 = vshrl.u32 %v2407, 7
  %v2409 = vsub.s32 0, %v2408
  %v2410 = vsub.f32 %v2312, %v2356
  %v2411 = vsub.f32 %v2313, %v2356
  %v2412 = vsub.f32 %v2314, %v2398
  %v2413 = vsub.f32 %v2315, %v2398
  %v2414 = vsub.f32 %v2316, %v2356
  %v2415 = vsub.f32 %v2317, %v2356
  %v2416 = vsub.f32 %v2318, %v2398
  %v2417 = vsub.f32 %v2319, %v2398
  %v2418 = vlaneseq
  %v2419 = vshrl.u32 %v2418, 7
  %v2420 = vsub.s32 0, %v2419
  %v2421 = vlaneseq
  %v2422 = vshrl.u32 %v2421, 7
  %v2423 = vsub.s32 0, %v2422
  %v2424 = vmul.f32 %v2410, %v2361
  %v2425 = vmul.f32 %v2411, %v2361
  %v2426 = vmul.f32 %v2412, %v2403
  %v2427 = vmul.f32 %v2413, %v2403
  %v2428 = vmul.f32 %v2414, %v2361
  %v2429 = vmul.f32 %v2415, %v2361
  %v2430 = vmul.f32 %v2416, %v2403
  %v2431 = vmul.f32 %v2417, %v2403
  %v2432 = vpack.c.bf16 %v2428, %v2424
  %v2433 = vpack.c.bf16 %v2429, %v2425
  %v2434 = vpack.c.bf16 %v2430, %v2426
  %v2435 = vpack.c.bf16 %v2431, %v2427
  %v2436 = vld [vmem:[%s10] sm:$0xf]
  %v2437 = vld [vmem:[%s10 + $0x4] sm:$0xf]
  %v2438 = vld [vmem:[%s10 + $0x8] sm:$0xf]
  %v2439 = vld [vmem:[%s10 + $0xc] sm:$0xf]
  %v2440 = vld [vmem:[%s10 + $0x10] sm:$0x1]
  %2441 = vset.pattern.permute.xlu0 15
  %2442 = vperm.xlu0 %2441, %v911
  %v2443 = vpop.permute.xlu0 %2442
  %2445 = vset.pattern.permute.xlu0 15
  %2446 = vperm.xlu0 %2445, %v912
  %v2447 = vpop.permute.xlu0 %2446
  %2449 = vset.pattern.permute.xlu0 15
  %2450 = vperm.xlu0 %2449, %v913
  %v2451 = vpop.permute.xlu0 %2450
  %2453 = vset.pattern.permute.xlu0 15
  %2454 = vperm.xlu0 %2453, %v914
  %v2455 = vpop.permute.xlu0 %2454
  %2457 = vset.pattern.permute.xlu0 15
  %2458 = vperm.xlu0 %2457, %v915
  %v2459 = vpop.permute.xlu0 %2458
  %v2466 = vunpack.c.l.b16 %v2436
  %v2467 = vunpack.c.l.b16 %v2437
  %v2468 = vunpack.c.l.b16 %v2438
  %v2469 = vunpack.c.l.b16 %v2439
  %v2470 = vunpack.c.l.b16 %v2440
  %v2471 = vpack.c.b16 %v2467, %v2466
  %v2472 = vpack.c.b16 %v2469, %v2468
  %v2473 = vpack.c.b16 %v2470, %v2470
  %v2475 = vsel %vm755, %v2471, 0
  %v2478 = vsel %vm755, %v2472, 0
  %v2481 = vsel %vm755, %v2473, 0
  %2483 = vmatprep.subr.bf16.mxu0 %v2433
  %2484 = vmatpush1.bf16.msra.mxu0 %v2432
  %2485 = vmatprep.subr.bf16.mxu0 0
  %2486 = vmatpush1.bf16.msra.mxu0 0
  %2487 = vmatprep.subr.bf16.mxu0 0
  %2488 = vmatpush1.bf16.msra.mxu0 0
  %2489 = vmatprep.subr.bf16.mxu0 0
  %2490 = vmatpush1.bf16.msra.mxu0 0
  %2491 = vmatprep.subr.bf16.mxu0 0
  %2492 = vmatpush1.bf16.msra.mxu0 0
  %2493 = vmatprep.subr.bf16.mxu0 0
  %2494 = vmatpush1.bf16.msra.mxu0 0
  %2495 = vmatprep.subr.bf16.mxu0 0
  %2496 = vmatpush1.bf16.msra.mxu0 0
  %2497 = vmatprep.subr.bf16.mxu0 0
  %2498 = vmatpush1.bf16.msra.mxu0 0
  %2499 = vmatprep.subr.bf16.mxu0 0
  %2500 = vmatpush1.bf16.msra.mxu0 0
  %2501 = vmatprep.subr.bf16.mxu0 0
  %2502 = vmatpush1.bf16.msra.mxu0 0
  %2503 = vmatprep.subr.bf16.mxu0 0
  %2504 = vmatpush1.bf16.msra.mxu0 0
  %2505 = vmatprep.subr.bf16.mxu0 0
  %2506 = vmatpush1.bf16.msra.mxu0 0
  %2507 = vmatprep.subr.bf16.mxu0 0
  %2508 = vmatpush1.bf16.msra.mxu0 0
  %2509 = vmatprep.subr.bf16.mxu0 0
  %2510 = vmatpush1.bf16.msra.mxu0 0
  %2511 = vmatprep.subr.bf16.mxu0 0
  %2512 = vmatpush1.bf16.msra.mxu0 0
  %2513 = vmatprep.subr.bf16.mxu0 0
  %2514 = vmatpush1.bf16.msra.mxu0 0
  %2515 = vmatprep.mubr.bf16.mxu0 0
  %2516 = vmatmul.mubr.bf16.gmra.mrb[0].mxu0 %v2475
  %v2517 = vpop.f32.mrb[0].mxu0
  %v2518 = vadd.f32 %v2443, %v2517
  %v2519 = vpop.f32.mrb[0].mxu0
  %v2520 = vadd.f32 %v2443, %v2519
  %v2521 = vpop.f32.mrb[0].mxu0
  %v2522 = vadd.f32 %v2447, %v2521
  %v2523 = vpop.f32.mrb[0].mxu0
  %v2524 = vadd.f32 %v2447, %v2523
  %2525 = vmatprep.mubr.bf16.mxu0 0
  %2526 = vmatmul.mubr.bf16.gmra.mrb[0].mxu0 %v2478
  %v2527 = vpop.f32.mrb[0].mxu0
  %v2528 = vadd.f32 %v2451, %v2527
  %v2529 = vpop.f32.mrb[0].mxu0
  %v2530 = vadd.f32 %v2451, %v2529
  %v2531 = vpop.f32.mrb[0].mxu0
  %v2532 = vadd.f32 %v2455, %v2531
  %v2533 = vpop.f32.mrb[0].mxu0
  %v2534 = vadd.f32 %v2455, %v2533
  %2535 = vmatprep.mubr.bf16.mxu0 0
  %2536 = vmatmul.mubr.bf16.gmra.mrb[0].mxu0 %v2481
  %v2537 = vpop.f32.mrb[0].mxu0
  %v2538 = vadd.f32 %v2459, %v2537
  %v2539 = vpop.f32.mrb[0].mxu0
  %v2540 = vadd.f32 %v2459, %v2539
  %v2541 = vpop.f32.mrb[0].mxu0
  %v2542 = vpop.f32.mrb[0].mxu0
  %2543 = vdwg.mxu0
  %2544 = vmatprep.subr.bf16.mxu0 %v2435
  %2545 = vmatpush1.bf16.msra.mxu0 %v2434
  %2546 = vmatprep.subr.bf16.mxu0 0
  %2547 = vmatpush1.bf16.msra.mxu0 0
  %2548 = vmatprep.subr.bf16.mxu0 0
  %2549 = vmatpush1.bf16.msra.mxu0 0
  %2550 = vmatprep.subr.bf16.mxu0 0
  %2551 = vmatpush1.bf16.msra.mxu0 0
  %2552 = vmatprep.subr.bf16.mxu0 0
  %2553 = vmatpush1.bf16.msra.mxu0 0
  %2554 = vmatprep.subr.bf16.mxu0 0
  %2555 = vmatpush1.bf16.msra.mxu0 0
  %2556 = vmatprep.subr.bf16.mxu0 0
  %2557 = vmatpush1.bf16.msra.mxu0 0
  %2558 = vmatprep.subr.bf16.mxu0 0
  %2559 = vmatpush1.bf16.msra.mxu0 0
  %2560 = vmatprep.subr.bf16.mxu0 0
  %2561 = vmatpush1.bf16.msra.mxu0 0
  %2562 = vmatprep.subr.bf16.mxu0 0
  %2563 = vmatpush1.bf16.msra.mxu0 0
  %2564 = vmatprep.subr.bf16.mxu0 0
  %2565 = vmatpush1.bf16.msra.mxu0 0
  %2566 = vmatprep.subr.bf16.mxu0 0
  %2567 = vmatpush1.bf16.msra.mxu0 0
  %2568 = vmatprep.subr.bf16.mxu0 0
  %2569 = vmatpush1.bf16.msra.mxu0 0
  %2570 = vmatprep.subr.bf16.mxu0 0
  %2571 = vmatpush1.bf16.msra.mxu0 0
  %2572 = vmatprep.subr.bf16.mxu0 0
  %2573 = vmatpush1.bf16.msra.mxu0 0
  %2574 = vmatprep.subr.bf16.mxu0 0
  %2575 = vmatpush1.bf16.msra.mxu0 0
  %2576 = vmatprep.mubr.bf16.mxu0 0
  %2577 = vmatmul.mubr.bf16.gmra.mrb[0].mxu0 %v2475
  %v2578 = vpop.f32.mrb[0].mxu0
  %v2579 = vadd.f32 %v2443, %v2578
  %v2580 = vpop.f32.mrb[0].mxu0
  %v2581 = vadd.f32 %v2443, %v2580
  %v2582 = vpop.f32.mrb[0].mxu0
  %v2583 = vadd.f32 %v2447, %v2582
  %v2584 = vpop.f32.mrb[0].mxu0
  %v2585 = vadd.f32 %v2447, %v2584
  %2586 = vmatprep.mubr.bf16.mxu0 0
  %2587 = vmatmul.mubr.bf16.gmra.mrb[0].mxu0 %v2478
  %v2588 = vpop.f32.mrb[0].mxu0
  %v2589 = vadd.f32 %v2451, %v2588
  %v2590 = vpop.f32.mrb[0].mxu0
  %v2591 = vadd.f32 %v2451, %v2590
  %v2592 = vpop.f32.mrb[0].mxu0
  %v2593 = vadd.f32 %v2455, %v2592
  %v2594 = vpop.f32.mrb[0].mxu0
  %v2595 = vadd.f32 %v2455, %v2594
  %2596 = vmatprep.mubr.bf16.mxu0 0
  %2597 = vmatmul.mubr.bf16.gmra.mrb[0].mxu0 %v2481
  %v2598 = vpop.f32.mrb[0].mxu0
  %v2599 = vadd.f32 %v2459, %v2598
  %v2600 = vpop.f32.mrb[0].mxu0
  %v2601 = vadd.f32 %v2459, %v2600
  %v2602 = vpop.f32.mrb[0].mxu0
  %v2603 = vpop.f32.mrb[0].mxu0
  %2604 = vdwg.mxu0
  %v2605 = vsel %vm1206, %v2538, -inf
  %v2606 = vsel %vm1206, %v2540, -inf
  %v2607 = vsel %vm1206, %v2599, -inf
  %v2608 = vsel %vm1206, %v2601, -inf
  %v2609 = vmax.f32 %v2605, %v2606
  %v2610 = vmax.f32 %v2607, %v2608
  %v2611 = vmax.f32 %v2609, %v2610
  %2612 = vmax.xlane.f32.xlu0 %v2611
  %v2613 = vpop.xlane.xlu0 %2612
  %v2614 = vrot.slane %v2613, 4
  %v2615 = vmax.f32 %v2613, %v2614
  %v2616 = vrot.slane %v2615, 2
  %v2617 = vmax.f32 %v2615, %v2616
  %v2618 = vrot.slane %v2617, 1
  %v2619 = vmax.f32 %v2617, %v2618
  %s2620 = vtos %v2619
  %v2621 = vstv %s2620
  %v2622 = vsub.f32 %v2538, %v2621
  %v2623 = vsub.f32 %v2540, %v2621
  %v2624 = vsub.f32 %v2599, %v2621
  %v2625 = vsub.f32 %v2601, %v2621
  %v2626 = vmul.f32 %v2622, 1.442695
  %v2627 = vpow.pop %v2626
  %v2628 = vmul.f32 %v2623, 1.442695
  %v2629 = vpow.pop %v2628
  %v2630 = vmul.f32 %v2624, 1.442695
  %v2631 = vpow.pop %v2630
  %v2632 = vmul.f32 %v2625, 1.442695
  %v2633 = vpow.pop %v2632
  %v2634 = vlaneseq
  %v2635 = vshrl.u32 %v2634, 7
  %v2636 = vsub.s32 1, %v2635
  %v2637 = vrot.slane %v2627, %v2636
  %v2638 = vlaneseq
  %v2639 = vshrl.u32 %v2638, 7
  %v2640 = vsub.s32 1, %v2639
  %v2641 = vrot.slane %v2629, %v2640
  %v2642 = vlaneseq
  %v2643 = vshrl.u32 %v2642, 7
  %v2644 = vsub.s32 1, %v2643
  %v2645 = vrot.slane %v2631, %v2644
  %v2646 = vlaneseq
  %v2647 = vshrl.u32 %v2646, 7
  %v2648 = vsub.s32 1, %v2647
  %v2649 = vrot.slane %v2633, %v2648
  %v2650 = vmul.f32 %v2528, %v2637
  %v2651 = vmul.f32 %v2530, %v2641
  %v2652 = vmul.f32 %v2589, %v2645
  %v2653 = vmul.f32 %v2591, %v2649
  %v2654 = vmul.f32 %v2532, %v2637
  %v2655 = vmul.f32 %v2534, %v2641
  %v2656 = vmul.f32 %v2593, %v2645
  %v2657 = vmul.f32 %v2595, %v2649
  %v2658 = vmul.f32 %v2538, %v2637
  %v2659 = vmul.f32 %v2540, %v2641
  %v2660 = vmul.f32 %v2599, %v2645
  %v2661 = vmul.f32 %v2601, %v2649
  %v2662 = vpack.c.bf16 %v2654, %v2650
  %v2663 = vpack.c.bf16 %v2655, %v2651
  %v2664 = vpack.c.bf16 %v2656, %v2652
  %v2665 = vpack.c.bf16 %v2657, %v2653
  %v2666 = vpack.c.bf16 %v2658, %v2658
  %v2667 = vpack.c.bf16 %v2659, %v2659
  %v2668 = vpack.c.bf16 %v2660, %v2660
  %v2669 = vpack.c.bf16 %v2661, %v2661
  %2670 = vmatprep.subr.bf16.mxu0 0
  %2671 = vmatpush1.bf16.msra.mxu0 %v1400
  %2672 = vmatprep.subr.bf16.mxu0 0
  %2673 = vmatpush1.bf16.msra.mxu0 %v1401
  %2674 = vmatprep.subr.bf16.mxu0 0
  %2675 = vmatpush1.bf16.msra.mxu0 %v1402
  %2676 = vmatprep.subr.bf16.mxu0 0
  %2677 = vmatpush1.bf16.msra.mxu0 %v1403
  %2678 = vmatprep.subr.bf16.mxu0 0
  %2679 = vmatpush1.bf16.msra.mxu0 %v1404
  %2680 = vmatprep.subr.bf16.mxu0 0
  %2681 = vmatpush1.bf16.msra.mxu0 %v1405
  %2682 = vmatprep.subr.bf16.mxu0 0
  %2683 = vmatpush1.bf16.msra.mxu0 %v1406
  %2684 = vmatprep.subr.bf16.mxu0 0
  %2685 = vmatpush1.bf16.msra.mxu0 %v1407
  %2686 = vmatprep.subr.bf16.mxu0 0
  %2687 = vmatpush1.bf16.msra.mxu0 %v1408
  %2688 = vmatprep.subr.bf16.mxu0 0
  %2689 = vmatpush1.bf16.msra.mxu0 %v1409
  %2690 = vmatprep.subr.bf16.mxu0 0
  %2691 = vmatpush1.bf16.msra.mxu0 %v1410
  %2692 = vmatprep.subr.bf16.mxu0 0
  %2693 = vmatpush1.bf16.msra.mxu0 %v1411
  %2694 = vmatprep.subr.bf16.mxu0 0
  %2695 = vmatpush1.bf16.msra.mxu0 %v1412
  %2696 = vmatprep.subr.bf16.mxu0 0
  %2697 = vmatpush1.bf16.msra.mxu0 %v1413
  %2698 = vmatprep.subr.bf16.mxu0 0
  %2699 = vmatpush1.bf16.msra.mxu0 %v1414
  %2700 = vmatprep.subr.bf16.mxu0 0
  %2701 = vmatpush1.bf16.msra.mxu0 %v1415
  %2702 = vmatprep.mubr.bf16.mxu0 %v2663
  %2703 = vmatmul.mubr.bf16.gmra.mrb[0].mxu0 %v2662
  %v2704 = vpop.f32.mrb[0].mxu0
  %v2705 = vadd.f32 0.0, %v2704
  %v2706 = vpop.f32.mrb[0].mxu0
  %v2707 = vpop.f32.mrb[0].mxu0
  %v2708 = vadd.f32 0.0, %v2707
  %v2709 = vpop.f32.mrb[0].mxu0
  %2710 = vmatprep.mubr.bf16.mxu0 %v2667
  %2711 = vmatmul.mubr.bf16.gmra.mrb[0].mxu0 %v2666
  %v2712 = vpop.f32.mrb[0].mxu0
  %v2713 = vadd.f32 0.0, %v2712
  %v2714 = vpop.f32.mrb[0].mxu0
  %v2715 = vpop.f32.mrb[0].mxu0
  %v2716 = vpop.f32.mrb[0].mxu0
  %2717 = vdwg.mxu0
  %2718 = vmatprep.subr.bf16.mxu0 0
  %2719 = vmatpush1.bf16.msra.mxu0 %v1416
  %2720 = vmatprep.subr.bf16.mxu0 0
  %2721 = vmatpush1.bf16.msra.mxu0 %v1417
  %2722 = vmatprep.subr.bf16.mxu0 0
  %2723 = vmatpush1.bf16.msra.mxu0 %v1418
  %2724 = vmatprep.subr.bf16.mxu0 0
  %2725 = vmatpush1.bf16.msra.mxu0 %v1419
  %2726 = vmatprep.subr.bf16.mxu0 0
  %2727 = vmatpush1.bf16.msra.mxu0 %v1420
  %2728 = vmatprep.subr.bf16.mxu0 0
  %2729 = vmatpush1.bf16.msra.mxu0 %v1421
  %2730 = vmatprep.subr.bf16.mxu0 0
  %2731 = vmatpush1.bf16.msra.mxu0 %v1422
  %2732 = vmatprep.subr.bf16.mxu0 0
  %2733 = vmatpush1.bf16.msra.mxu0 %v1423
  %2734 = vmatprep.subr.bf16.mxu0 0
  %2735 = vmatpush1.bf16.msra.mxu0 %v1424
  %2736 = vmatprep.subr.bf16.mxu0 0
  %2737 = vmatpush1.bf16.msra.mxu0 %v1425
  %2738 = vmatprep.subr.bf16.mxu0 0
  %2739 = vmatpush1.bf16.msra.mxu0 %v1426
  %2740 = vmatprep.subr.bf16.mxu0 0
  %2741 = vmatpush1.bf16.msra.mxu0 %v1427
  %2742 = vmatprep.subr.bf16.mxu0 0
  %2743 = vmatpush1.bf16.msra.mxu0 %v1428
  %2744 = vmatprep.subr.bf16.mxu0 0
  %2745 = vmatpush1.bf16.msra.mxu0 %v1429
  %2746 = vmatprep.subr.bf16.mxu0 0
  %2747 = vmatpush1.bf16.msra.mxu0 %v1430
  %2748 = vmatprep.subr.bf16.mxu0 0
  %2749 = vmatpush1.bf16.msra.mxu0 %v1431
  %2750 = vmatprep.mubr.bf16.mxu0 %v2665
  %2751 = vmatmul.mubr.bf16.gmra.mrb[0].mxu0 %v2664
  %v2752 = vpop.f32.mrb[0].mxu0
  %v2753 = vadd.f32 %v2705, %v2752
  %v2754 = vpop.f32.mrb[0].mxu0
  %v2755 = vpop.f32.mrb[0].mxu0
  %v2756 = vadd.f32 %v2708, %v2755
  %v2757 = vpop.f32.mrb[0].mxu0
  %2758 = vmatprep.mubr.bf16.mxu0 %v2669
  %2759 = vmatmul.mubr.bf16.gmra.mrb[0].mxu0 %v2668
  %v2760 = vpop.f32.mrb[0].mxu0
  %v2761 = vadd.f32 %v2713, %v2760
  %v2762 = vpop.f32.mrb[0].mxu0
  %v2763 = vpop.f32.mrb[0].mxu0
  %v2764 = vpop.f32.mrb[0].mxu0
  %2765 = vdwg.mxu0
  %v2766 = vrcp.pop %v2761
  %v2767 = vlaneseq
  %v2768 = vshrl.u32 %v2767, 7
  %v2769 = vsub.s32 0, %v2768
  %v2770 = vrot.slane %v2766, %v2769
  %v2771 = vmul.f32 %v2753, %v2770
  %v2772 = vmul.f32 %v2756, %v2770
  %v2773 = vpack.c.bf16 %v2772, %v2771
  %v2775 = vsel %vm1578, %v2773, 0
  %2777 = vmatprep.subr.bf16.mxu0 %v1587
  %2778 = vmatpush1.bf16.msra.mxu0 %v1584
  %2779 = vmatprep.subr.bf16.mxu0 0
  %2780 = vmatpush1.bf16.msra.mxu0 0
  %2781 = vmatprep.subr.bf16.mxu0 0
  %2782 = vmatpush1.bf16.msra.mxu0 0
  %2783 = vmatprep.subr.bf16.mxu0 0
  %2784 = vmatpush1.bf16.msra.mxu0 0
  %2785 = vmatprep.subr.bf16.mxu0 0
  %2786 = vmatpush1.bf16.msra.mxu0 0
  %2787 = vmatprep.subr.bf16.mxu0 0
  %2788 = vmatpush1.bf16.msra.mxu0 0
  %2789 = vmatprep.subr.bf16.mxu0 0
  %2790 = vmatpush1.bf16.msra.mxu0 0
  %2791 = vmatprep.subr.bf16.mxu0 0
  %2792 = vmatpush1.bf16.msra.mxu0 0
  %2793 = vmatprep.subr.bf16.mxu0 0
  %2794 = vmatpush1.bf16.msra.mxu0 0
  %2795 = vmatprep.subr.bf16.mxu0 0
  %2796 = vmatpush1.bf16.msra.mxu0 0
  %2797 = vmatprep.subr.bf16.mxu0 0
  %2798 = vmatpush1.bf16.msra.mxu0 0
  %2799 = vmatprep.subr.bf16.mxu0 0
  %2800 = vmatpush1.bf16.msra.mxu0 0
  %2801 = vmatprep.subr.bf16.mxu0 0
  %2802 = vmatpush1.bf16.msra.mxu0 0
  %2803 = vmatprep.subr.bf16.mxu0 0
  %2804 = vmatpush1.bf16.msra.mxu0 0
  %2805 = vmatprep.subr.bf16.mxu0 0
  %2806 = vmatpush1.bf16.msra.mxu0 0
  %2807 = vmatprep.subr.bf16.mxu0 0
  %2808 = vmatpush1.bf16.msra.mxu0 0
  %2809 = vmatprep.mubr.bf16.mxu0 0
  %2810 = vmatmul.mubr.bf16.gmra.mrb[0].mxu0 %v2775
  %v2811 = vpop.f32.mrb[0].mxu0
  %v2812 = vadd.f32 0.0, %v2811
  %v2813 = vpop.f32.mrb[0].mxu0
  %v2814 = vadd.f32 0.0, %v2813
  %v2815 = vpop.f32.mrb[0].mxu0
  %v2816 = vadd.f32 0.0, %v2815
  %v2817 = vpop.f32.mrb[0].mxu0
  %v2818 = vadd.f32 0.0, %v2817
  %2819 = vdwg.mxu0
  %2820 = vmatprep.subr.bf16.mxu0 %v1593
  %2821 = vmatpush1.bf16.msra.mxu0 %v1590
  %2822 = vmatprep.subr.bf16.mxu0 0
  %2823 = vmatpush1.bf16.msra.mxu0 0
  %2824 = vmatprep.subr.bf16.mxu0 0
  %2825 = vmatpush1.bf16.msra.mxu0 0
  %2826 = vmatprep.subr.bf16.mxu0 0
  %2827 = vmatpush1.bf16.msra.mxu0 0
  %2828 = vmatprep.subr.bf16.mxu0 0
  %2829 = vmatpush1.bf16.msra.mxu0 0
  %2830 = vmatprep.subr.bf16.mxu0 0
  %2831 = vmatpush1.bf16.msra.mxu0 0
  %2832 = vmatprep.subr.bf16.mxu0 0
  %2833 = vmatpush1.bf16.msra.mxu0 0
  %2834 = vmatprep.subr.bf16.mxu0 0
  %2835 = vmatpush1.bf16.msra.mxu0 0
  %2836 = vmatprep.subr.bf16.mxu0 0
  %2837 = vmatpush1.bf16.msra.mxu0 0
  %2838 = vmatprep.subr.bf16.mxu0 0
  %2839 = vmatpush1.bf16.msra.mxu0 0
  %2840 = vmatprep.subr.bf16.mxu0 0
  %2841 = vmatpush1.bf16.msra.mxu0 0
  %2842 = vmatprep.subr.bf16.mxu0 0
  %2843 = vmatpush1.bf16.msra.mxu0 0
  %2844 = vmatprep.subr.bf16.mxu0 0
  %2845 = vmatpush1.bf16.msra.mxu0 0
  %2846 = vmatprep.subr.bf16.mxu0 0
  %2847 = vmatpush1.bf16.msra.mxu0 0
  %2848 = vmatprep.subr.bf16.mxu0 0
  %2849 = vmatpush1.bf16.msra.mxu0 0
  %2850 = vmatprep.subr.bf16.mxu0 0
  %2851 = vmatpush1.bf16.msra.mxu0 0
  %2852 = vmatprep.mubr.bf16.mxu0 0
  %2853 = vmatmul.mubr.bf16.gmra.mrb[0].mxu0 %v2775
  %v2854 = vpop.f32.mrb[0].mxu0
  %v2855 = vadd.f32 0.0, %v2854
  %v2856 = vpop.f32.mrb[0].mxu0
  %v2857 = vadd.f32 0.0, %v2856
  %v2858 = vpop.f32.mrb[0].mxu0
  %v2859 = vadd.f32 0.0, %v2858
  %v2860 = vpop.f32.mrb[0].mxu0
  %v2861 = vadd.f32 0.0, %v2860
  %2862 = vdwg.mxu0
  %v2863 = vmax.f32 %v2518, 0.0
  %v2864 = vmax.f32 %v2520, 0.0
  %v2865 = vmax.f32 %v2579, 0.0
  %v2866 = vmax.f32 %v2581, 0.0
  %v2867 = vmax.f32 %v2522, 0.0
  %v2868 = vmax.f32 %v2524, 0.0
  %v2869 = vmax.f32 %v2583, 0.0
  %v2870 = vmax.f32 %v2585, 0.0
  %v2871 = vmul.f32 %v2863, %v2812
  %v2872 = vmul.f32 %v2864, %v2814
  %v2873 = vmul.f32 %v2865, %v2855
  %v2874 = vmul.f32 %v2866, %v2857
  %v2875 = vmul.f32 %v2867, %v2816
  %v2876 = vmul.f32 %v2868, %v2818
  %v2877 = vmul.f32 %v2869, %v2859
  %v2878 = vmul.f32 %v2870, %v2861
  %v2879 = vld [vmem:[%s11] sm:$0xf]
  %v2880 = vld [vmem:[%s11 + $0x4] sm:$0xf]
  %v2881 = vpack.c.bf16 %v2875, %v2871
  %v2882 = vpack.c.bf16 %v2876, %v2872
  %v2883 = vpack.c.bf16 %v2877, %v2873
  %v2884 = vpack.c.bf16 %v2878, %v2874
  %v2887 = vunpack.c.l.b16 %v2879
  %v2888 = vunpack.c.l.b16 %v2880
  %v2889 = vpack.c.b16 %v2888, %v2887
  %v2891 = vsel %vm755, %v2889, 0
  %2893 = vmatprep.subr.bf16.mxu0 %v2882
  %2894 = vmatpush1.bf16.msra.mxu0 %v2881
  %2895 = vmatprep.subr.bf16.mxu0 0
  %2896 = vmatpush1.bf16.msra.mxu0 0
  %2897 = vmatprep.subr.bf16.mxu0 0
  %2898 = vmatpush1.bf16.msra.mxu0 0
  %2899 = vmatprep.subr.bf16.mxu0 0
  %2900 = vmatpush1.bf16.msra.mxu0 0
  %2901 = vmatprep.subr.bf16.mxu0 0
  %2902 = vmatpush1.bf16.msra.mxu0 0
  %2903 = vmatprep.subr.bf16.mxu0 0
  %2904 = vmatpush1.bf16.msra.mxu0 0
  %2905 = vmatprep.subr.bf16.mxu0 0
  %2906 = vmatpush1.bf16.msra.mxu0 0
  %2907 = vmatprep.subr.bf16.mxu0 0
  %2908 = vmatpush1.bf16.msra.mxu0 0
  %2909 = vmatprep.subr.bf16.mxu0 0
  %2910 = vmatpush1.bf16.msra.mxu0 0
  %2911 = vmatprep.subr.bf16.mxu0 0
  %2912 = vmatpush1.bf16.msra.mxu0 0
  %2913 = vmatprep.subr.bf16.mxu0 0
  %2914 = vmatpush1.bf16.msra.mxu0 0
  %2915 = vmatprep.subr.bf16.mxu0 0
  %2916 = vmatpush1.bf16.msra.mxu0 0
  %2917 = vmatprep.subr.bf16.mxu0 0
  %2918 = vmatpush1.bf16.msra.mxu0 0
  %2919 = vmatprep.subr.bf16.mxu0 0
  %2920 = vmatpush1.bf16.msra.mxu0 0
  %2921 = vmatprep.subr.bf16.mxu0 0
  %2922 = vmatpush1.bf16.msra.mxu0 0
  %2923 = vmatprep.subr.bf16.mxu0 0
  %2924 = vmatpush1.bf16.msra.mxu0 0
  %2925 = vmatprep.mubr.bf16.mxu0 0
  %2926 = vmatmul.mubr.bf16.gmra.mrb[0].mxu0 %v2891
  %v2927 = vpop.f32.mrb[0].mxu0
  %v2928 = vadd.f32 0.0, %v2927
  %v2929 = vpop.f32.mrb[0].mxu0
  %v2930 = vadd.f32 0.0, %v2929
  %v2931 = vpop.f32.mrb[0].mxu0
  %v2932 = vadd.f32 0.0, %v2931
  %v2933 = vpop.f32.mrb[0].mxu0
  %v2934 = vadd.f32 0.0, %v2933
  %2935 = vdwg.mxu0
  %2936 = vmatprep.subr.bf16.mxu0 %v2884
  %2937 = vmatpush1.bf16.msra.mxu0 %v2883
  %2938 = vmatprep.subr.bf16.mxu0 0
  %2939 = vmatpush1.bf16.msra.mxu0 0
  %2940 = vmatprep.subr.bf16.mxu0 0
  %2941 = vmatpush1.bf16.msra.mxu0 0
  %2942 = vmatprep.subr.bf16.mxu0 0
  %2943 = vmatpush1.bf16.msra.mxu0 0
  %2944 = vmatprep.subr.bf16.mxu0 0
  %2945 = vmatpush1.bf16.msra.mxu0 0
  %2946 = vmatprep.subr.bf16.mxu0 0
  %2947 = vmatpush1.bf16.msra.mxu0 0
  %2948 = vmatprep.subr.bf16.mxu0 0
  %2949 = vmatpush1.bf16.msra.mxu0 0
  %2950 = vmatprep.subr.bf16.mxu0 0
  %2951 = vmatpush1.bf16.msra.mxu0 0
  %2952 = vmatprep.subr.bf16.mxu0 0
  %2953 = vmatpush1.bf16.msra.mxu0 0
  %2954 = vmatprep.subr.bf16.mxu0 0
  %2955 = vmatpush1.bf16.msra.mxu0 0
  %2956 = vmatprep.subr.bf16.mxu0 0
  %2957 = vmatpush1.bf16.msra.mxu0 0
  %2958 = vmatprep.subr.bf16.mxu0 0
  %2959 = vmatpush1.bf16.msra.mxu0 0
  %2960 = vmatprep.subr.bf16.mxu0 0
  %2961 = vmatpush1.bf16.msra.mxu0 0
  %2962 = vmatprep.subr.bf16.mxu0 0
  %2963 = vmatpush1.bf16.msra.mxu0 0
  %2964 = vmatprep.subr.bf16.mxu0 0
  %2965 = vmatpush1.bf16.msra.mxu0 0
  %2966 = vmatprep.subr.bf16.mxu0 0
  %2967 = vmatpush1.bf16.msra.mxu0 0
  %2968 = vmatprep.mubr.bf16.mxu0 0
  %2969 = vmatmul.mubr.bf16.gmra.mrb[0].mxu0 %v2891
  %v2970 = vpop.f32.mrb[0].mxu0
  %v2971 = vadd.f32 0.0, %v2970
  %v2972 = vpop.f32.mrb[0].mxu0
  %v2973 = vadd.f32 0.0, %v2972
  %v2974 = vpop.f32.mrb[0].mxu0
  %v2975 = vadd.f32 0.0, %v2974
  %v2976 = vpop.f32.mrb[0].mxu0
  %v2977 = vadd.f32 0.0, %v2976
  %2978 = vdwg.mxu0
  %v2979 = vadd.f32 %v2312, %v2928
  %v2980 = vadd.f32 %v2313, %v2930
  %v2981 = vadd.f32 %v2314, %v2971
  %v2982 = vadd.f32 %v2315, %v2973
  %v2983 = vadd.f32 %v2316, %v2932
  %v2984 = vadd.f32 %v2317, %v2934
  %v2985 = vadd.f32 %v2318, %v2975
  %v2986 = vadd.f32 %v2319, %v2977
  %2987 = vset.pattern.permute.xlu0 16
  %2988 = vperm.xlu0 %2987, %v59
  %v2989 = vpop.permute.xlu0 %2988
  %2991 = vset.pattern.permute.xlu0 16
  %2992 = vperm.xlu0 %2991, %v60
  %v2993 = vpop.permute.xlu0 %2992
  %v2995 = vadd.f32 %v2979, %v2989
  %v2996 = vadd.f32 %v2980, %v2989
  %v2997 = vadd.f32 %v2981, %v2989
  %v2998 = vadd.f32 %v2982, %v2989
  %v2999 = vadd.f32 %v2983, %v2993
  %v3000 = vadd.f32 %v2984, %v2993
  %v3001 = vadd.f32 %v2985, %v2993
  %v3002 = vadd.f32 %v2986, %v2993
  %v3003 = vadd.f32 %v2995, %v2996
  %v3004 = vadd.f32 %v3003, %v2999
  %v3005 = vadd.f32 %v3004, %v3000
  %3006 = vadd.xlane.f32.xlu0 %v3005
  %v3007 = vpop.xlane.xlu0 %3006
  %v3008 = vrot.slane %v3007, 4
  %v3009 = vadd.f32 %v3007, %v3008
  %v3010 = vrot.slane %v3009, 2
  %v3011 = vadd.f32 %v3009, %v3010
  %v3012 = vrot.slane %v3011, 1
  %v3013 = vadd.f32 %v3011, %v3012
  %s3014 = vtos %v3013
  %v3015 = vmul.f32 %v2995, %v2995
  %v3016 = vmul.f32 %v2996, %v2996
  %v3017 = vmul.f32 %v2999, %v2999
  %v3018 = vmul.f32 %v3000, %v3000
  %v3019 = vadd.f32 %v3015, %v3016
  %v3020 = vadd.f32 %v3019, %v3017
  %v3021 = vadd.f32 %v3020, %v3018
  %3022 = vadd.xlane.f32.xlu0 %v3021
  %v3023 = vpop.xlane.xlu0 %3022
  %v3024 = vrot.slane %v3023, 4
  %v3025 = vadd.f32 %v3023, %v3024
  %v3026 = vrot.slane %v3025, 2
  %v3027 = vadd.f32 %v3025, %v3026
  %v3028 = vrot.slane %v3027, 1
  %v3029 = vadd.f32 %v3027, %v3028
  %s3030 = vtos %v3029
  %v3031 = vrcp.pop 4096.0
  %s3032 = vtos %v3031
  %s3033 = smul.f32 %s3014, %s3032
  %v3034 = vrcp.pop 4096.0
  %s3035 = vtos %v3034
  %s3036 = smul.f32 %s3030, %s3035
  %s3037 = smul.f32 %s3033, %s3033
  %s3038 = ssub.f32 %s3036, %s3037
  %v3039 = vstv %s3033
  %s3040 = sadd.f32 %s3038, 1e-05
  %v3041 = vstv %s3040
  %v3042 = vrsqrt.pop %v3041
  %s3043 = vtos %v3042
  %v3044 = vstv %s3043
  %v3045 = vadd.f32 %v2997, %v2998
  %v3046 = vadd.f32 %v3045, %v3001
  %v3047 = vadd.f32 %v3046, %v3002
  %3048 = vadd.xlane.f32.xlu0 %v3047
  %v3049 = vpop.xlane.xlu0 %3048
  %v3050 = vrot.slane %v3049, 4
  %v3051 = vadd.f32 %v3049, %v3050
  %v3052 = vrot.slane %v3051, 2
  %v3053 = vadd.f32 %v3051, %v3052
  %v3054 = vrot.slane %v3053, 1
  %v3055 = vadd.f32 %v3053, %v3054
  %s3056 = vtos %v3055
  %v3057 = vmul.f32 %v2997, %v2997
  %v3058 = vmul.f32 %v2998, %v2998
  %v3059 = vmul.f32 %v3001, %v3001
  %v3060 = vmul.f32 %v3002, %v3002
  %v3061 = vadd.f32 %v3057, %v3058
  %v3062 = vadd.f32 %v3061, %v3059
  %v3063 = vadd.f32 %v3062, %v3060
  %3064 = vadd.xlane.f32.xlu0 %v3063
  %v3065 = vpop.xlane.xlu0 %3064
  %v3066 = vrot.slane %v3065, 4
  %v3067 = vadd.f32 %v3065, %v3066
  %v3068 = vrot.slane %v3067, 2
  %v3069 = vadd.f32 %v3067, %v3068
  %v3070 = vrot.slane %v3069, 1
  %v3071 = vadd.f32 %v3069, %v3070
  %s3072 = vtos %v3071
  %v3073 = vrcp.pop 4096.0
  %s3074 = vtos %v3073
  %s3075 = smul.f32 %s3056, %s3074
  %v3076 = vrcp.pop 4096.0
  %s3077 = vtos %v3076
  %s3078 = smul.f32 %s3072, %s3077
  %s3079 = smul.f32 %s3075, %s3075
  %s3080 = ssub.f32 %s3078, %s3079
  %v3081 = vstv %s3075
  %s3082 = sadd.f32 %s3080, 1e-05
  %v3083 = vstv %s3082
  %v3084 = vrsqrt.pop %v3083
  %s3085 = vtos %v3084
  %v3086 = vstv %s3085
  %v3087 = vlaneseq
  %v3088 = vshrl.u32 %v3087, 7
  %v3089 = vsub.s32 0, %v3088
  %v3090 = vlaneseq
  %v3091 = vshrl.u32 %v3090, 7
  %v3092 = vsub.s32 0, %v3091
  %v3093 = vsub.f32 %v2995, %v3039
  %v3094 = vsub.f32 %v2996, %v3039
  %v3095 = vsub.f32 %v2997, %v3081
  %v3096 = vsub.f32 %v2998, %v3081
  %v3097 = vsub.f32 %v2999, %v3039
  %v3098 = vsub.f32 %v3000, %v3039
  %v3099 = vsub.f32 %v3001, %v3081
  %v3100 = vsub.f32 %v3002, %v3081
  %v3101 = vlaneseq
  %v3102 = vshrl.u32 %v3101, 7
  %v3103 = vsub.s32 0, %v3102
  %v3104 = vlaneseq
  %v3105 = vshrl.u32 %v3104, 7
  %v3106 = vsub.s32 0, %v3105
  %v3107 = vmul.f32 %v3093, %v3044
  %v3108 = vmul.f32 %v3094, %v3044
  %v3109 = vmul.f32 %v3095, %v3086
  %v3110 = vmul.f32 %v3096, %v3086
  %v3111 = vmul.f32 %v3097, %v3044
  %v3112 = vmul.f32 %v3098, %v3044
  %v3113 = vmul.f32 %v3099, %v3086
  %v3114 = vmul.f32 %v3100, %v3086
  %v3115 = vpack.c.bf16 %v3111, %v3107
  %v3116 = vpack.c.bf16 %v3112, %v3108
  %v3117 = vpack.c.bf16 %v3113, %v3109
  %v3118 = vpack.c.bf16 %v3114, %v3110
  %v3119 = vld [vmem:[%s12] sm:$0xf]
  %v3120 = vld [vmem:[%s12 + $0x4] sm:$0xf]
  %v3121 = vld [vmem:[%s12 + $0x8] sm:$0xf]
  %v3122 = vld [vmem:[%s12 + $0xc] sm:$0xf]
  %3123 = vset.pattern.permute.xlu0 17
  %3124 = vperm.xlu0 %3123, %v911
  %v3125 = vpop.permute.xlu0 %3124
  %3127 = vset.pattern.permute.xlu0 17
  %3128 = vperm.xlu0 %3127, %v912
  %v3129 = vpop.permute.xlu0 %3128
  %3131 = vset.pattern.permute.xlu0 17
  %3132 = vperm.xlu0 %3131, %v913
  %v3133 = vpop.permute.xlu0 %3132
  %3135 = vset.pattern.permute.xlu0 17
  %3136 = vperm.xlu0 %3135, %v914
  %v3137 = vpop.permute.xlu0 %3136
  %v3143 = vunpack.c.l.b16 %v3119
  %v3144 = vunpack.c.l.b16 %v3120
  %v3145 = vunpack.c.l.b16 %v3121
  %v3146 = vunpack.c.l.b16 %v3122
  %v3147 = vpack.c.b16 %v3144, %v3143
  %v3148 = vpack.c.b16 %v3146, %v3145
  %v3150 = vsel %vm755, %v3147, 0
  %v3153 = vsel %vm755, %v3148, 0
  %3155 = vmatprep.subr.bf16.mxu0 %v3116
  %3156 = vmatpush1.bf16.msra.mxu0 %v3115
  %3157 = vmatprep.subr.bf16.mxu0 0
  %3158 = vmatpush1.bf16.msra.mxu0 0
  %3159 = vmatprep.subr.bf16.mxu0 0
  %3160 = vmatpush1.bf16.msra.mxu0 0
  %3161 = vmatprep.subr.bf16.mxu0 0
  %3162 = vmatpush1.bf16.msra.mxu0 0
  %3163 = vmatprep.subr.bf16.mxu0 0
  %3164 = vmatpush1.bf16.msra.mxu0 0
  %3165 = vmatprep.subr.bf16.mxu0 0
  %3166 = vmatpush1.bf16.msra.mxu0 0
  %3167 = vmatprep.subr.bf16.mxu0 0
  %3168 = vmatpush1.bf16.msra.mxu0 0
  %3169 = vmatprep.subr.bf16.mxu0 0
  %3170 = vmatpush1.bf16.msra.mxu0 0
  %3171 = vmatprep.subr.bf16.mxu0 0
  %3172 = vmatpush1.bf16.msra.mxu0 0
  %3173 = vmatprep.subr.bf16.mxu0 0
  %3174 = vmatpush1.bf16.msra.mxu0 0
  %3175 = vmatprep.subr.bf16.mxu0 0
  %3176 = vmatpush1.bf16.msra.mxu0 0
  %3177 = vmatprep.subr.bf16.mxu0 0
  %3178 = vmatpush1.bf16.msra.mxu0 0
  %3179 = vmatprep.subr.bf16.mxu0 0
  %3180 = vmatpush1.bf16.msra.mxu0 0
  %3181 = vmatprep.subr.bf16.mxu0 0
  %3182 = vmatpush1.bf16.msra.mxu0 0
  %3183 = vmatprep.subr.bf16.mxu0 0
  %3184 = vmatpush1.bf16.msra.mxu0 0
  %3185 = vmatprep.subr.bf16.mxu0 0
  %3186 = vmatpush1.bf16.msra.mxu0 0
  %3187 = vmatprep.mubr.bf16.mxu0 0
  %3188 = vmatmul.mubr.bf16.gmra.mrb[0].mxu0 %v3150
  %v3189 = vpop.f32.mrb[0].mxu0
  %v3190 = vadd.f32 %v3125, %v3189
  %v3191 = vpop.f32.mrb[0].mxu0
  %v3192 = vadd.f32 %v3125, %v3191
  %v3193 = vpop.f32.mrb[0].mxu0
  %v3194 = vadd.f32 %v3129, %v3193
  %v3195 = vpop.f32.mrb[0].mxu0
  %v3196 = vadd.f32 %v3129, %v3195
  %3197 = vmatprep.mubr.bf16.mxu0 0
  %3198 = vmatmul.mubr.bf16.gmra.mrb[0].mxu0 %v3153
  %v3199 = vpop.f32.mrb[0].mxu0
  %v3200 = vadd.f32 %v3133, %v3199
  %v3201 = vpop.f32.mrb[0].mxu0
  %v3202 = vadd.f32 %v3133, %v3201
  %v3203 = vpop.f32.mrb[0].mxu0
  %v3204 = vadd.f32 %v3137, %v3203
  %v3205 = vpop.f32.mrb[0].mxu0
  %v3206 = vadd.f32 %v3137, %v3205
  %3207 = vdwg.mxu0
  %3208 = vmatprep.subr.bf16.mxu0 %v3118
  %3209 = vmatpush1.bf16.msra.mxu0 %v3117
  %3210 = vmatprep.subr.bf16.mxu0 0
  %3211 = vmatpush1.bf16.msra.mxu0 0
  %3212 = vmatprep.subr.bf16.mxu0 0
  %3213 = vmatpush1.bf16.msra.mxu0 0
  %3214 = vmatprep.subr.bf16.mxu0 0
  %3215 = vmatpush1.bf16.msra.mxu0 0
  %3216 = vmatprep.subr.bf16.mxu0 0
  %3217 = vmatpush1.bf16.msra.mxu0 0
  %3218 = vmatprep.subr.bf16.mxu0 0
  %3219 = vmatpush1.bf16.msra.mxu0 0
  %3220 = vmatprep.subr.bf16.mxu0 0
  %3221 = vmatpush1.bf16.msra.mxu0 0
  %3222 = vmatprep.subr.bf16.mxu0 0
  %3223 = vmatpush1.bf16.msra.mxu0 0
  %3224 = vmatprep.subr.bf16.mxu0 0
  %3225 = vmatpush1.bf16.msra.mxu0 0
  %3226 = vmatprep.subr.bf16.mxu0 0
  %3227 = vmatpush1.bf16.msra.mxu0 0
  %3228 = vmatprep.subr.bf16.mxu0 0
  %3229 = vmatpush1.bf16.msra.mxu0 0
  %3230 = vmatprep.subr.bf16.mxu0 0
  %3231 = vmatpush1.bf16.msra.mxu0 0
  %3232 = vmatprep.subr.bf16.mxu0 0
  %3233 = vmatpush1.bf16.msra.mxu0 0
  %3234 = vmatprep.subr.bf16.mxu0 0
  %3235 = vmatpush1.bf16.msra.mxu0 0
  %3236 = vmatprep.subr.bf16.mxu0 0
  %3237 = vmatpush1.bf16.msra.mxu0 0
  %3238 = vmatprep.subr.bf16.mxu0 0
  %3239 = vmatpush1.bf16.msra.mxu0 0
  %3240 = vmatprep.mubr.bf16.mxu0 0
  %3241 = vmatmul.mubr.bf16.gmra.mrb[0].mxu0 %v3150
  %v3242 = vpop.f32.mrb[0].mxu0
  %v3243 = vadd.f32 %v3125, %v3242
  %v3244 = vpop.f32.mrb[0].mxu0
  %v3245 = vadd.f32 %v3125, %v3244
  %v3246 = vpop.f32.mrb[0].mxu0
  %v3247 = vadd.f32 %v3129, %v3246
  %v3248 = vpop.f32.mrb[0].mxu0
  %v3249 = vadd.f32 %v3129, %v3248
  %3250 = vmatprep.mubr.bf16.mxu0 0
  %3251 = vmatmul.mubr.bf16.gmra.mrb[0].mxu0 %v3153
  %v3252 = vpop.f32.mrb[0].mxu0
  %v3253 = vadd.f32 %v3133, %v3252
  %v3254 = vpop.f32.mrb[0].mxu0
  %v3255 = vadd.f32 %v3133, %v3254
  %v3256 = vpop.f32.mrb[0].mxu0
  %v3257 = vadd.f32 %v3137, %v3256
  %v3258 = vpop.f32.mrb[0].mxu0
  %v3259 = vadd.f32 %v3137, %v3258
  %3260 = vdwg.mxu0
  %v3261 = vxor.u32 %v3190, 2147483648
  %v3262 = vxor.u32 %v3192, 2147483648
  %v3263 = vxor.u32 %v3243, 2147483648
  %v3264 = vxor.u32 %v3245, 2147483648
  %v3265 = vxor.u32 %v3194, 2147483648
  %v3266 = vxor.u32 %v3196, 2147483648
  %v3267 = vxor.u32 %v3247, 2147483648
  %v3268 = vxor.u32 %v3249, 2147483648
  %v3269 = vxor.u32 %v3200, 2147483648
  %v3270 = vxor.u32 %v3202, 2147483648
  %v3271 = vxor.u32 %v3253, 2147483648
  %v3272 = vxor.u32 %v3255, 2147483648
  %v3273 = vxor.u32 %v3204, 2147483648
  %v3274 = vxor.u32 %v3206, 2147483648
  %v3275 = vxor.u32 %v3257, 2147483648
  %v3276 = vxor.u32 %v3259, 2147483648
  %v3277 = vmul.f32 %v3261, 1.442695
  %v3278 = vpow.pop %v3277
  %v3279 = vmul.f32 %v3262, 1.442695
  %v3280 = vpow.pop %v3279
  %v3281 = vmul.f32 %v3263, 1.442695
  %v3282 = vpow.pop %v3281
  %v3283 = vmul.f32 %v3264, 1.442695
  %v3284 = vpow.pop %v3283
  %v3285 = vmul.f32 %v3265, 1.442695
  %v3286 = vpow.pop %v3285
  %v3287 = vmul.f32 %v3266, 1.442695
  %v3288 = vpow.pop %v3287
  %v3289 = vmul.f32 %v3267, 1.442695
  %v3290 = vpow.pop %v3289
  %v3291 = vmul.f32 %v3268, 1.442695
  %v3292 = vpow.pop %v3291
  %v3293 = vmul.f32 %v3269, 1.442695
  %v3294 = vpow.pop %v3293
  %v3295 = vmul.f32 %v3270, 1.442695
  %v3296 = vpow.pop %v3295
  %v3297 = vmul.f32 %v3271, 1.442695
  %v3298 = vpow.pop %v3297
  %v3299 = vmul.f32 %v3272, 1.442695
  %v3300 = vpow.pop %v3299
  %v3301 = vmul.f32 %v3273, 1.442695
  %v3302 = vpow.pop %v3301
  %v3303 = vmul.f32 %v3274, 1.442695
  %v3304 = vpow.pop %v3303
  %v3305 = vmul.f32 %v3275, 1.442695
  %v3306 = vpow.pop %v3305
  %v3307 = vmul.f32 %v3276, 1.442695
  %v3308 = vpow.pop %v3307
  %v3309 = vadd.f32 %v3278, 1.0
  %v3310 = vadd.f32 %v3280, 1.0
  %v3311 = vadd.f32 %v3282, 1.0
  %v3312 = vadd.f32 %v3284, 1.0
  %v3313 = vadd.f32 %v3286, 1.0
  %v3314 = vadd.f32 %v3288, 1.0
  %v3315 = vadd.f32 %v3290, 1.0
  %v3316 = vadd.f32 %v3292, 1.0
  %v3317 = vadd.f32 %v3294, 1.0
  %v3318 = vadd.f32 %v3296, 1.0
  %v3319 = vadd.f32 %v3298, 1.0
  %v3320 = vadd.f32 %v3300, 1.0
  %v3321 = vadd.f32 %v3302, 1.0
  %v3322 = vadd.f32 %v3304, 1.0
  %v3323 = vadd.f32 %v3306, 1.0
  %v3324 = vadd.f32 %v3308, 1.0
  %v3325 = vrcp.pop %v3309
  %v3326 = vmul.f32 1.0, %v3325
  %v3327 = vrcp.pop %v3310
  %v3328 = vmul.f32 1.0, %v3327
  %v3329 = vrcp.pop %v3311
  %v3330 = vmul.f32 1.0, %v3329
  %v3331 = vrcp.pop %v3312
  %v3332 = vmul.f32 1.0, %v3331
  %v3333 = vrcp.pop %v3313
  %v3334 = vmul.f32 1.0, %v3333
  %v3335 = vrcp.pop %v3314
  %v3336 = vmul.f32 1.0, %v3335
  %v3337 = vrcp.pop %v3315
  %v3338 = vmul.f32 1.0, %v3337
  %v3339 = vrcp.pop %v3316
  %v3340 = vmul.f32 1.0, %v3339
  %v3341 = vrcp.pop %v3317
  %v3342 = vmul.f32 1.0, %v3341
  %v3343 = vrcp.pop %v3318
  %v3344 = vmul.f32 1.0, %v3343
  %v3345 = vrcp.pop %v3319
  %v3346 = vmul.f32 1.0, %v3345
  %v3347 = vrcp.pop %v3320
  %v3348 = vmul.f32 1.0, %v3347
  %v3349 = vrcp.pop %v3321
  %v3350 = vmul.f32 1.0, %v3349
  %v3351 = vrcp.pop %v3322
  %v3352 = vmul.f32 1.0, %v3351
  %v3353 = vrcp.pop %v3323
  %v3354 = vmul.f32 1.0, %v3353
  %v3355 = vrcp.pop %v3324
  %v3356 = vmul.f32 1.0, %v3355
  %v3357 = vmul.f32 %v3190, %v3326
  %v3358 = vmul.f32 %v3192, %v3328
  %v3359 = vmul.f32 %v3243, %v3330
  %v3360 = vmul.f32 %v3245, %v3332
  %v3361 = vmul.f32 %v3194, %v3334
  %v3362 = vmul.f32 %v3196, %v3336
  %v3363 = vmul.f32 %v3247, %v3338
  %v3364 = vmul.f32 %v3249, %v3340
  %v3365 = vmul.f32 %v3200, %v3342
  %v3366 = vmul.f32 %v3202, %v3344
  %v3367 = vmul.f32 %v3253, %v3346
  %v3368 = vmul.f32 %v3255, %v3348
  %v3369 = vmul.f32 %v3204, %v3350
  %v3370 = vmul.f32 %v3206, %v3352
  %v3371 = vmul.f32 %v3257, %v3354
  %v3372 = vmul.f32 %v3259, %v3356
  %v3373 = vld [vmem:[%s13] sm:$0xf]
  %v3374 = vld [vmem:[%s13 + $0x4] sm:$0xf]
  %v3375 = vpack.c.bf16 %v3361, %v3357
  %v3376 = vpack.c.bf16 %v3362, %v3358
  %v3377 = vpack.c.bf16 %v3363, %v3359
  %v3378 = vpack.c.bf16 %v3364, %v3360
  %v3379 = vpack.c.bf16 %v3369, %v3365
  %v3380 = vpack.c.bf16 %v3370, %v3366
  %v3381 = vpack.c.bf16 %v3371, %v3367
  %v3382 = vpack.c.bf16 %v3372, %v3368
  %v3385 = vunpack.c.l.b16 %v3373
  %v3386 = vunpack.c.l.b16 %v3374
  %v3387 = vpack.c.b16 %v3386, %v3385
  %v3389 = vsel %vm2206, %v3387, 0
  %3391 = vmatprep.subr.bf16.mxu0 %v3376
  %3392 = vmatpush1.bf16.msra.mxu0 %v3375
  %3393 = vmatprep.subr.bf16.mxu0 %v3380
  %3394 = vmatpush1.bf16.msra.mxu0 %v3379
  %3395 = vmatprep.subr.bf16.mxu0 0
  %3396 = vmatpush1.bf16.msra.mxu0 0
  %3397 = vmatprep.subr.bf16.mxu0 0
  %3398 = vmatpush1.bf16.msra.mxu0 0
  %3399 = vmatprep.subr.bf16.mxu0 0
  %3400 = vmatpush1.bf16.msra.mxu0 0
  %3401 = vmatprep.subr.bf16.mxu0 0
  %3402 = vmatpush1.bf16.msra.mxu0 0
  %3403 = vmatprep.subr.bf16.mxu0 0
  %3404 = vmatpush1.bf16.msra.mxu0 0
  %3405 = vmatprep.subr.bf16.mxu0 0
  %3406 = vmatpush1.bf16.msra.mxu0 0
  %3407 = vmatprep.subr.bf16.mxu0 0
  %3408 = vmatpush1.bf16.msra.mxu0 0
  %3409 = vmatprep.subr.bf16.mxu0 0
  %3410 = vmatpush1.bf16.msra.mxu0 0
  %3411 = vmatprep.subr.bf16.mxu0 0
  %3412 = vmatpush1.bf16.msra.mxu0 0
  %3413 = vmatprep.subr.bf16.mxu0 0
  %3414 = vmatpush1.bf16.msra.mxu0 0
  %3415 = vmatprep.subr.bf16.mxu0 0
  %3416 = vmatpush1.bf16.msra.mxu0 0
  %3417 = vmatprep.subr.bf16.mxu0 0
  %3418 = vmatpush1.bf16.msra.mxu0 0
  %3419 = vmatprep.subr.bf16.mxu0 0
  %3420 = vmatpush1.bf16.msra.mxu0 0
  %3421 = vmatprep.subr.bf16.mxu0 0
  %3422 = vmatpush1.bf16.msra.mxu0 0
  %3423 = vmatprep.mubr.bf16.mxu0 0
  %3424 = vmatmul.mubr.bf16.gmra.mrb[0].mxu0 %v3389
  %v3425 = vpop.f32.mrb[0].mxu0
  %v3426 = vadd.f32 0.0, %v3425
  %v3427 = vpop.f32.mrb[0].mxu0
  %v3428 = vadd.f32 0.0, %v3427
  %v3429 = vpop.f32.mrb[0].mxu0
  %v3430 = vadd.f32 0.0, %v3429
  %v3431 = vpop.f32.mrb[0].mxu0
  %v3432 = vadd.f32 0.0, %v3431
  %3433 = vdwg.mxu0
  %3434 = vmatprep.subr.bf16.mxu0 %v3378
  %3435 = vmatpush1.bf16.msra.mxu0 %v3377
  %3436 = vmatprep.subr.bf16.mxu0 %v3382
  %3437 = vmatpush1.bf16.msra.mxu0 %v3381
  %3438 = vmatprep.subr.bf16.mxu0 0
  %3439 = vmatpush1.bf16.msra.mxu0 0
  %3440 = vmatprep.subr.bf16.mxu0 0
  %3441 = vmatpush1.bf16.msra.mxu0 0
  %3442 = vmatprep.subr.bf16.mxu0 0
  %3443 = vmatpush1.bf16.msra.mxu0 0
  %3444 = vmatprep.subr.bf16.mxu0 0
  %3445 = vmatpush1.bf16.msra.mxu0 0
  %3446 = vmatprep.subr.bf16.mxu0 0
  %3447 = vmatpush1.bf16.msra.mxu0 0
  %3448 = vmatprep.subr.bf16.mxu0 0
  %3449 = vmatpush1.bf16.msra.mxu0 0
  %3450 = vmatprep.subr.bf16.mxu0 0
  %3451 = vmatpush1.bf16.msra.mxu0 0
  %3452 = vmatprep.subr.bf16.mxu0 0
  %3453 = vmatpush1.bf16.msra.mxu0 0
  %3454 = vmatprep.subr.bf16.mxu0 0
  %3455 = vmatpush1.bf16.msra.mxu0 0
  %3456 = vmatprep.subr.bf16.mxu0 0
  %3457 = vmatpush1.bf16.msra.mxu0 0
  %3458 = vmatprep.subr.bf16.mxu0 0
  %3459 = vmatpush1.bf16.msra.mxu0 0
  %3460 = vmatprep.subr.bf16.mxu0 0
  %3461 = vmatpush1.bf16.msra.mxu0 0
  %3462 = vmatprep.subr.bf16.mxu0 0
  %3463 = vmatpush1.bf16.msra.mxu0 0
  %3464 = vmatprep.subr.bf16.mxu0 0
  %3465 = vmatpush1.bf16.msra.mxu0 0
  %3466 = vmatprep.mubr.bf16.mxu0 0
  %3467 = vmatmul.mubr.bf16.gmra.mrb[0].mxu0 %v3389
  %v3468 = vpop.f32.mrb[0].mxu0
  %v3469 = vadd.f32 0.0, %v3468
  %v3470 = vpop.f32.mrb[0].mxu0
  %v3471 = vadd.f32 0.0, %v3470
  %v3472 = vpop.f32.mrb[0].mxu0
  %v3473 = vadd.f32 0.0, %v3472
  %v3474 = vpop.f32.mrb[0].mxu0
  %v3475 = vadd.f32 0.0, %v3474
  %3476 = vdwg.mxu0
  %v3477 = vadd.f32 %v2995, %v3426
  %v3478 = vadd.f32 %v2996, %v3428
  %v3479 = vadd.f32 %v2997, %v3469
  %v3480 = vadd.f32 %v2998, %v3471
  %v3481 = vadd.f32 %v2999, %v3430
  %v3482 = vadd.f32 %v3000, %v3432
  %v3483 = vadd.f32 %v3001, %v3473
  %v3484 = vadd.f32 %v3002, %v3475
  %3485 = vset.pattern.permute.xlu0 18
  %3486 = vperm.xlu0 %3485, %v59
  %v3487 = vpop.permute.xlu0 %3486
  %3489 = vset.pattern.permute.xlu0 18
  %3490 = vperm.xlu0 %3489, %v60
  %v3491 = vpop.permute.xlu0 %3490
  %v3493 = vadd.f32 %v3477, %v3487
  %v3494 = vadd.f32 %v3478, %v3487
  %v3495 = vadd.f32 %v3479, %v3487
  %v3496 = vadd.f32 %v3480, %v3487
  %v3497 = vadd.f32 %v3481, %v3491
  %v3498 = vadd.f32 %v3482, %v3491
  %v3499 = vadd.f32 %v3483, %v3491
  %v3500 = vadd.f32 %v3484, %v3491
  %v3501 = vadd.f32 %v3493, %v3494
  %v3502 = vadd.f32 %v3501, %v3497
  %v3503 = vadd.f32 %v3502, %v3498
  %3504 = vadd.xlane.f32.xlu0 %v3503
  %v3505 = vpop.xlane.xlu0 %3504
  %v3506 = vrot.slane %v3505, 4
  %v3507 = vadd.f32 %v3505, %v3506
  %v3508 = vrot.slane %v3507, 2
  %v3509 = vadd.f32 %v3507, %v3508
  %v3510 = vrot.slane %v3509, 1
  %v3511 = vadd.f32 %v3509, %v3510
  %s3512 = vtos %v3511
  %v3513 = vmul.f32 %v3493, %v3493
  %v3514 = vmul.f32 %v3494, %v3494
  %v3515 = vmul.f32 %v3497, %v3497
  %v3516 = vmul.f32 %v3498, %v3498
  %v3517 = vadd.f32 %v3513, %v3514
  %v3518 = vadd.f32 %v3517, %v3515
  %v3519 = vadd.f32 %v3518, %v3516
  %3520 = vadd.xlane.f32.xlu0 %v3519
  %v3521 = vpop.xlane.xlu0 %3520
  %v3522 = vrot.slane %v3521, 4
  %v3523 = vadd.f32 %v3521, %v3522
  %v3524 = vrot.slane %v3523, 2
  %v3525 = vadd.f32 %v3523, %v3524
  %v3526 = vrot.slane %v3525, 1
  %v3527 = vadd.f32 %v3525, %v3526
  %s3528 = vtos %v3527
  %v3529 = vrcp.pop 4096.0
  %s3530 = vtos %v3529
  %s3531 = smul.f32 %s3512, %s3530
  %v3532 = vrcp.pop 4096.0
  %s3533 = vtos %v3532
  %s3534 = smul.f32 %s3528, %s3533
  %s3535 = smul.f32 %s3531, %s3531
  %s3536 = ssub.f32 %s3534, %s3535
  %v3537 = vstv %s3531
  %s3538 = sadd.f32 %s3536, 1e-05
  %v3539 = vstv %s3538
  %v3540 = vrsqrt.pop %v3539
  %s3541 = vtos %v3540
  %v3542 = vstv %s3541
  %v3543 = vadd.f32 %v3495, %v3496
  %v3544 = vadd.f32 %v3543, %v3499
  %v3545 = vadd.f32 %v3544, %v3500
  %3546 = vadd.xlane.f32.xlu0 %v3545
  %v3547 = vpop.xlane.xlu0 %3546
  %v3548 = vrot.slane %v3547, 4
  %v3549 = vadd.f32 %v3547, %v3548
  %v3550 = vrot.slane %v3549, 2
  %v3551 = vadd.f32 %v3549, %v3550
  %v3552 = vrot.slane %v3551, 1
  %v3553 = vadd.f32 %v3551, %v3552
  %s3554 = vtos %v3553
  %v3555 = vmul.f32 %v3495, %v3495
  %v3556 = vmul.f32 %v3496, %v3496
  %v3557 = vmul.f32 %v3499, %v3499
  %v3558 = vmul.f32 %v3500, %v3500
  %v3559 = vadd.f32 %v3555, %v3556
  %v3560 = vadd.f32 %v3559, %v3557
  %v3561 = vadd.f32 %v3560, %v3558
  %3562 = vadd.xlane.f32.xlu0 %v3561
  %v3563 = vpop.xlane.xlu0 %3562
  %v3564 = vrot.slane %v3563, 4
  %v3565 = vadd.f32 %v3563, %v3564
  %v3566 = vrot.slane %v3565, 2
  %v3567 = vadd.f32 %v3565, %v3566
  %v3568 = vrot.slane %v3567, 1
  %v3569 = vadd.f32 %v3567, %v3568
  %s3570 = vtos %v3569
  %v3571 = vrcp.pop 4096.0
  %s3572 = vtos %v3571
  %s3573 = smul.f32 %s3554, %s3572
  %v3574 = vrcp.pop 4096.0
  %s3575 = vtos %v3574
  %s3576 = smul.f32 %s3570, %s3575
  %s3577 = smul.f32 %s3573, %s3573
  %s3578 = ssub.f32 %s3576, %s3577
  %v3579 = vstv %s3573
  %s3580 = sadd.f32 %s3578, 1e-05
  %v3581 = vstv %s3580
  %v3582 = vrsqrt.pop %v3581
  %s3583 = vtos %v3582
  %v3584 = vstv %s3583
  %v3585 = vlaneseq
  %v3586 = vshrl.u32 %v3585, 7
  %v3587 = vsub.s32 0, %v3586
  %v3588 = vlaneseq
  %v3589 = vshrl.u32 %v3588, 7
  %v3590 = vsub.s32 0, %v3589
  %v3591 = vsub.f32 %v3493, %v3537
  %v3592 = vsub.f32 %v3494, %v3537
  %v3593 = vsub.f32 %v3495, %v3579
  %v3594 = vsub.f32 %v3496, %v3579
  %v3595 = vsub.f32 %v3497, %v3537
  %v3596 = vsub.f32 %v3498, %v3537
  %v3597 = vsub.f32 %v3499, %v3579
  %v3598 = vsub.f32 %v3500, %v3579
  %v3599 = vlaneseq
  %v3600 = vshrl.u32 %v3599, 7
  %v3601 = vsub.s32 0, %v3600
  %v3602 = vlaneseq
  %v3603 = vshrl.u32 %v3602, 7
  %v3604 = vsub.s32 0, %v3603
  %v3605 = vmul.f32 %v3591, %v3542
  %v3606 = vmul.f32 %v3592, %v3542
  %v3607 = vmul.f32 %v3593, %v3584
  %v3608 = vmul.f32 %v3594, %v3584
  %v3609 = vmul.f32 %v3595, %v3542
  %v3610 = vmul.f32 %v3596, %v3542
  %v3611 = vmul.f32 %v3597, %v3584
  %v3612 = vmul.f32 %v3598, %v3584
  %v3613 = vpack.c.bf16 %v3609, %v3605
  %v3614 = vpack.c.bf16 %v3610, %v3606
  %v3615 = vpack.c.bf16 %v3611, %v3607
  %v3616 = vpack.c.bf16 %v3612, %v3608
  %v3617 = vld [vmem:[%s14] sm:$0xf]
  %v3618 = vld [vmem:[%s14 + $0x4] sm:$0xf]
  %3619 = vset.pattern.permute.xlu0 10
  %3620 = vperm.xlu0 %3619, %v59
  %v3621 = vpop.permute.xlu0 %3620
  %3623 = vset.pattern.permute.xlu0 10
  %3624 = vperm.xlu0 %3623, %v60
  %v3625 = vpop.permute.xlu0 %3624
  %v3629 = vunpack.c.l.b16 %v3617
  %v3630 = vunpack.c.l.b16 %v3618
  %v3631 = vpack.c.b16 %v3630, %v3629
  %v3633 = vsel %vm755, %v3631, 0
  %3635 = vmatprep.subr.bf16.mxu0 %v3614
  %3636 = vmatpush1.bf16.msra.mxu0 %v3613
  %3637 = vmatprep.subr.bf16.mxu0 0
  %3638 = vmatpush1.bf16.msra.mxu0 0
  %3639 = vmatprep.subr.bf16.mxu0 0
  %3640 = vmatpush1.bf16.msra.mxu0 0
  %3641 = vmatprep.subr.bf16.mxu0 0
  %3642 = vmatpush1.bf16.msra.mxu0 0
  %3643 = vmatprep.subr.bf16.mxu0 0
  %3644 = vmatpush1.bf16.msra.mxu0 0
  %3645 = vmatprep.subr.bf16.mxu0 0
  %3646 = vmatpush1.bf16.msra.mxu0 0
  %3647 = vmatprep.subr.bf16.mxu0 0
  %3648 = vmatpush1.bf16.msra.mxu0 0
  %3649 = vmatprep.subr.bf16.mxu0 0
  %3650 = vmatpush1.bf16.msra.mxu0 0
  %3651 = vmatprep.subr.bf16.mxu0 0
  %3652 = vmatpush1.bf16.msra.mxu0 0
  %3653 = vmatprep.subr.bf16.mxu0 0
  %3654 = vmatpush1.bf16.msra.mxu0 0
  %3655 = vmatprep.subr.bf16.mxu0 0
  %3656 = vmatpush1.bf16.msra.mxu0 0
  %3657 = vmatprep.subr.bf16.mxu0 0
  %3658 = vmatpush1.bf16.msra.mxu0 0
  %3659 = vmatprep.subr.bf16.mxu0 0
  %3660 = vmatpush1.bf16.msra.mxu0 0
  %3661 = vmatprep.subr.bf16.mxu0 0
  %3662 = vmatpush1.bf16.msra.mxu0 0
  %3663 = vmatprep.subr.bf16.mxu0 0
  %3664 = vmatpush1.bf16.msra.mxu0 0
  %3665 = vmatprep.subr.bf16.mxu0 0
  %3666 = vmatpush1.bf16.msra.mxu0 0
  %3667 = vmatprep.mubr.bf16.mxu0 0
  %3668 = vmatmul.mubr.bf16.gmra.mrb[0].mxu0 %v3633
  %v3669 = vpop.f32.mrb[0].mxu0
  %v3670 = vadd.f32 %v3621, %v3669
  %v3671 = vpop.f32.mrb[0].mxu0
  %v3672 = vadd.f32 %v3621, %v3671
  %v3673 = vpop.f32.mrb[0].mxu0
  %v3674 = vadd.f32 %v3625, %v3673
  %v3675 = vpop.f32.mrb[0].mxu0
  %v3676 = vadd.f32 %v3625, %v3675
  %3677 = vdwg.mxu0
  %3678 = vmatprep.subr.bf16.mxu0 %v3616
  %3679 = vmatpush1.bf16.msra.mxu0 %v3615
  %3680 = vmatprep.subr.bf16.mxu0 0
  %3681 = vmatpush1.bf16.msra.mxu0 0
  %3682 = vmatprep.subr.bf16.mxu0 0
  %3683 = vmatpush1.bf16.msra.mxu0 0
  %3684 = vmatprep.subr.bf16.mxu0 0
  %3685 = vmatpush1.bf16.msra.mxu0 0
  %3686 = vmatprep.subr.bf16.mxu0 0
  %3687 = vmatpush1.bf16.msra.mxu0 0
  %3688 = vmatprep.subr.bf16.mxu0 0
  %3689 = vmatpush1.bf16.msra.mxu0 0
  %3690 = vmatprep.subr.bf16.mxu0 0
  %3691 = vmatpush1.bf16.msra.mxu0 0
  %3692 = vmatprep.subr.bf16.mxu0 0
  %3693 = vmatpush1.bf16.msra.mxu0 0
  %3694 = vmatprep.subr.bf16.mxu0 0
  %3695 = vmatpush1.bf16.msra.mxu0 0
  %3696 = vmatprep.subr.bf16.mxu0 0
  %3697 = vmatpush1.bf16.msra.mxu0 0
  %3698 = vmatprep.subr.bf16.mxu0 0
  %3699 = vmatpush1.bf16.msra.mxu0 0
  %3700 = vmatprep.subr.bf16.mxu0 0
  %3701 = vmatpush1.bf16.msra.mxu0 0
  %3702 = vmatprep.subr.bf16.mxu0 0
  %3703 = vmatpush1.bf16.msra.mxu0 0
  %3704 = vmatprep.subr.bf16.mxu0 0
  %3705 = vmatpush1.bf16.msra.mxu0 0
  %3706 = vmatprep.subr.bf16.mxu0 0
  %3707 = vmatpush1.bf16.msra.mxu0 0
  %3708 = vmatprep.subr.bf16.mxu0 0
  %3709 = vmatpush1.bf16.msra.mxu0 0
  %3710 = vmatprep.mubr.bf16.mxu0 0
  %3711 = vmatmul.mubr.bf16.gmra.mrb[0].mxu0 %v3633
  %v3712 = vpop.f32.mrb[0].mxu0
  %v3713 = vadd.f32 %v3621, %v3712
  %v3714 = vpop.f32.mrb[0].mxu0
  %v3715 = vadd.f32 %v3621, %v3714
  %v3716 = vpop.f32.mrb[0].mxu0
  %v3717 = vadd.f32 %v3625, %v3716
  %v3718 = vpop.f32.mrb[0].mxu0
  %v3719 = vadd.f32 %v3625, %v3718
  %3720 = vdwg.mxu0
  %3721 = vst [vmem:[%s15] sm:$0xff] %v3670
  %3722 = vst [vmem:[%s15 + $0x8] sm:$0xff] %v3672
  %3723 = vst [vmem:[%s15 + $0x10] sm:$0xff] %v3713
  %3724 = vst [vmem:[%s15 + $0x18] sm:$0xff] %v3715
  %3725 = vst [vmem:[%s15 + $0x20] sm:$0xff] %v3674
  %3726 = vst [vmem:[%s15 + $0x28] sm:$0xff] %v3676
  %3727 = vst [vmem:[%s15 + $0x30] sm:$0xff] %v3717
  %3728 = vst [vmem:[%s15 + $0x38] sm:$0xff] %v3719
  // Predicated region
  $region62: #{mobilevit_v2_block.1} parent=0 // pred_check
    _
  $region63: #{mobilevit_v2_block.1} parent=0 // pred_check_branch
    %3730 = sbr.rel (0) target = $region65
  $region64: #{mobilevit_v2_block.1} parent=0 // pred_region
    _
  $region65: #{mobilevit_v2_block.1} parent=0 // pred_fallthru
    _
  // Predicated region
  $region66: #{mobilevit_v2_block.1} parent=0 // pred_check
    _
  $region67: #{mobilevit_v2_block.1} parent=0 // pred_check_branch
    %3732 = sbr.rel (0) target = $region69
  $region68: #{mobilevit_v2_block.1} parent=0 // pred_region
    _
  $region69: #{mobilevit_v2_block.1} parent=0 // pred_fallthru
    _

</llo_original>
